<compile_context>
chip_gen: v7x
topology: tpu7x:2x2x1
jax: 0.10.0
libtpu: 0.0.40
codegen_flags: <defaults>
</compile_context>

<pallas_src>
import jax
import jax.numpy as jnp
from jax import lax
from jax.experimental import pallas as pl
from jax.experimental.pallas import tpu as pltpu

N_EMBD = 64
N_HEAD = 8
HEAD_SIZE = N_EMBD // N_HEAD
BLOCK_SIZE = 8          # sequence length T
LN_EPS = 1e-5
NEG_INF = -1e30


def _layernorm(x, w, b):
    # PyTorch LayerNorm: biased variance, eps inside the sqrt.
    mu = jnp.mean(x, axis=-1, keepdims=True)
    xc = x - mu
    var = jnp.mean(xc * xc, axis=-1, keepdims=True)
    return xc * lax.rsqrt(var + LN_EPS) * w + b


def block_kernel(x_ref, wqkv_ref, wproj_ref, w1_ref, w2_ref, vecs_ref, b1_ref,
                 hm_ref, sbias_ref, o_ref):
    BB, T, C = x_ref.shape              # batch tile, seq, embd
    H = N_HEAD
    PT, PHT = sbias_ref.shape           # (P*T, P*H*T)
    P = PT // T                         # batch elements packed per attention slab
    G = BB // P                         # slabs per grid step

    vecs = vecs_ref[...]                # (6, C): ln1w, ln1b, ln2w, ln2b, bproj, b2
    ln1w, ln1b = vecs[0:1, :], vecs[1:2, :]
    ln2w, ln2b = vecs[2:3, :], vecs[3:4, :]
    bproj, b2 = vecs[4:5, :], vecs[5:6, :]

    x = x_ref[...].reshape(BB * T, C)   # (BB*T, C) f32

    # ---------------- ln1 + fused QKV projection (bf16 MXU, f32 acc) ---------
    h = _layernorm(x, ln1w, ln1b).astype(jnp.bfloat16)
    qkv = jnp.dot(h, wqkv_ref[...], preferred_element_type=jnp.float32)  # (BB*T, 3C)

    hm = hm_ref[...]                    # (P*HT, C) bf16 0/1 per-head channel mask
    q = qkv[:, 0:C].astype(jnp.bfloat16).reshape(G, PT, C)   # scale folded into Wq

    def head_blockdiag(cols):
        # (BB*T, C) slice -> (G, P*H*T, C) block-diagonal-masked bf16 slab.
        y = cols.astype(jnp.bfloat16).reshape(G * P, 1, T, C)
        y = jnp.broadcast_to(y, (G * P, H, T, C)).reshape(G, PHT, C)
        return y * hm

    kbd = head_blockdiag(qkv[:, C:2 * C])
    vbd = head_blockdiag(qkv[:, 2 * C:3 * C])

    # ---------------- P-packed multi-head causal attention -------------------
    s = lax.dot_general(q, kbd, (((2,), (2,)), ((0,), (0,))),
                        preferred_element_type=jnp.float32)   # (G, PT, PHT)
    s = s + sbias_ref[...]              # 0 where valid, -1e30 cross-batch / causal

    # Softmax per (row, head) T-lane group; the global row max cancels inside
    # each group. TODO(synk): a per-(row,head) max would be more robust when
    # real checkpoints make one head's scores vastly larger than another's.
    m_row = jnp.max(s, axis=-1, keepdims=True)
    e = jnp.exp(s - m_row).astype(jnp.bfloat16)               # (G, PT, PHT)

    att = lax.dot_general(e, vbd, (((2,), (1,)), ((0,), (0,))),
                          preferred_element_type=jnp.float32)  # (G, PT, C)
    denom = jnp.dot(e.reshape(BB * T, PHT), hm,
                    preferred_element_type=jnp.float32)        # (BB*T, C)
    # +1e-30 guards fully-underflowed / foreign-batch groups (att is 0 there).
    att = att.reshape(BB * T, C) * pl.reciprocal(denom + 1e-30, approx=True)

    sa = jnp.dot(att.astype(jnp.bfloat16), wproj_ref[...],
                 preferred_element_type=jnp.float32) + bproj
    x = x + sa                          # residual 1 (dropout = 0.0 -> identity)

    # ---------------- ln2 + feed-forward --------------------------------------
    h2 = _layernorm(x, ln2w, ln2b).astype(jnp.bfloat16)
    hid = jnp.dot(h2, w1_ref[...], preferred_element_type=jnp.float32) + b1_ref[...]
    hid = jnp.maximum(hid, 0.0).astype(jnp.bfloat16)
    ff = jnp.dot(hid, w2_ref[...], preferred_element_type=jnp.float32) + b2
    x = x + ff                          # residual 2

    o_ref[...] = x.reshape(BB, T, C).astype(o_ref.dtype)


def _pick_p():
    # Attention pack factor: score-matmul N = P*H*T lanes.
    # 4 -> 256 lanes (fills v6e/v7x's 256-wide MXU); 2 -> 128 lanes for v5e.
    try:
        kind = jax.devices()[0].device_kind.lower()
    except Exception:
        return 4
    if "v5" in kind and ("lite" in kind or "5e" in kind):
        return 2
    return 4


def make_params(key):
    """Mathematical (f32, unpacked) parameters, mirroring the PyTorch module."""
    ks = jax.random.split(key, 13)
    s = 0.02
    C = N_EMBD
    wq = s * jax.random.normal(ks[0], (C, C), jnp.float32)
    wk = s * jax.random.normal(ks[1], (C, C), jnp.float32)
    wv = s * jax.random.normal(ks[2], (C, C), jnp.float32)
    wproj = s * jax.random.normal(ks[3], (C, C), jnp.float32)
    bproj = s * jax.random.normal(ks[4], (C,), jnp.float32)
    ln1w = 1.0 + 0.1 * jax.random.normal(ks[5], (C,), jnp.float32)
    ln1b = 0.05 * jax.random.normal(ks[6], (C,), jnp.float32)
    ln2w = 1.0 + 0.1 * jax.random.normal(ks[7], (C,), jnp.float32)
    ln2b = 0.05 * jax.random.normal(ks[8], (C,), jnp.float32)
    w1 = s * jax.random.normal(ks[9], (C, 4 * C), jnp.float32)
    b1 = s * jax.random.normal(ks[10], (4 * C,), jnp.float32)
    w2 = s * jax.random.normal(ks[11], (4 * C, C), jnp.float32)
    b2 = s * jax.random.normal(ks[12], (C,), jnp.float32)
    return (wq, wk, wv, wproj, bproj, ln1w, ln1b, ln2w, ln2b, w1, b1, w2, b2)


def pack_params(params, P):
    """Kernel-side packing: bf16 weight slabs, folded scale, precomputed masks."""
    (wq, wk, wv, wproj, bproj, ln1w, ln1b, ln2w, ln2b, w1, b1, w2, b2) = params
    C, H, D, T = N_EMBD, N_HEAD, HEAD_SIZE, BLOCK_SIZE
    HT = H * T
    scale = C ** (-0.5)                 # reference scales by n_embd**-0.5
    wqkv = jnp.concatenate([wq * scale, wk, wv], axis=1).astype(jnp.bfloat16)
    vecs = jnp.stack([ln1w, ln1b, ln2w, ln2b, bproj, b2], axis=0)  # (6, C) f32

    # (P*HT, C) 0/1 head mask: row n=(p,h,t) keeps channels of head h.
    chan = jnp.arange(C)[None, :]
    rown = jnp.arange(P * HT)[:, None]
    hm = ((chan // D) == ((rown % HT) // T)).astype(jnp.bfloat16)

    # (P*T, P*HT) additive score bias: 0 if same packed batch & causal, else -1e30.
    r = jnp.arange(P * T)[:, None]
    c = jnp.arange(P * HT)[None, :]
    valid = ((r // T) == (c // HT)) & ((c % T) <= (r % T))
    sbias = jnp.where(valid, 0.0, NEG_INF).astype(jnp.float32)

    return (wqkv, wproj.astype(jnp.bfloat16), w1.astype(jnp.bfloat16),
            w2.astype(jnp.bfloat16), vecs, b1.reshape(1, 4 * C), hm, sbias)


def transformer_block(x, kparams):
    wqkv, wproj, w1, w2, vecs, b1, hm, sbias = kparams
    B, T, C = x.shape
    P = sbias.shape[0] // T

    # Batch tile: largest power-of-two <= 64 that still leaves >=4 grid steps
    # when the batch allows (pipelining + v7x's 2 TCs); always a multiple of P.
    BB = 64
    while BB > 2 * P and (B + BB - 1) // BB < 4:
        BB //= 2
    BB = max(P, (BB // P) * P)

    Bp = ((B + BB - 1) // BB) * BB      # pad batch to a multiple of the tile
    xp = x if Bp == B else jnp.concatenate(
        [x, jnp.zeros((Bp - B, T, C), x.dtype)], axis=0)
    grid = (Bp // BB,)

    def const_spec(a):
        n = a.ndim
        return pl.BlockSpec(a.shape, lambda b, _n=n: (0,) * _n)

    in_specs = [pl.BlockSpec((BB, T, C), lambda b: (b, 0, 0)),
                const_spec(wqkv), const_spec(wproj), const_spec(w1),
                const_spec(w2), const_spec(vecs), const_spec(b1),
                const_spec(hm), const_spec(sbias)]
    out_spec = pl.BlockSpec((BB, T, C), lambda b: (b, 0, 0))

    out = pl.pallas_call(
        block_kernel,
        out_shape=jax.ShapeDtypeStruct((Bp, T, C), x.dtype),
        grid_spec=pltpu.PrefetchScalarGridSpec(
            num_scalar_prefetch=0,
            grid=grid,
            in_specs=in_specs,
            out_specs=out_spec,
        ),
        compiler_params=pltpu.CompilerParams(
            dimension_semantics=("parallel",),
            vmem_limit_bytes=32 * 1024 * 1024),
    )(xp, wqkv, wproj, w1, w2, vecs, b1, hm, sbias)
    return out if Bp == B else out[:B]


def reference_block(x, params):
    # Pure-JAX f32 reference mirroring the PyTorch forward pass exactly.
    (wq, wk, wv, wproj, bproj, ln1w, ln1b, ln2w, ln2b, w1, b1, w2, b2) = params
    B, T, C = x.shape
    h = _layernorm(x, ln1w, ln1b)
    q, k, v = h @ wq, h @ wk, h @ wv
    scale = C ** (-0.5)
    tril = jnp.tril(jnp.ones((T, T), bool))
    outs = []
    for hd in range(N_HEAD):
        lo = hd * HEAD_SIZE
        qh, kh, vh = (a[..., lo:lo + HEAD_SIZE] for a in (q, k, v))
        wei = jnp.einsum('btd,bsd->bts', qh, kh) * scale
        wei = jnp.where(tril, wei, -jnp.inf)
        wei = jax.nn.softmax(wei, axis=-1)
        outs.append(jnp.einsum('bts,bsd->btd', wei, vh))
    sa = jnp.concatenate(outs, axis=-1) @ wproj + bproj
    x = x + sa
    h2 = _layernorm(x, ln2w, ln2b)
    ff = jnp.maximum(h2 @ w1 + b1, 0.0) @ w2 + b2
    return x + ff


if __name__ == "__main__":
    key = jax.random.PRNGKey(0)
    kx, kp = jax.random.split(key)
    B, T, C = 64, BLOCK_SIZE, N_EMBD
    x = jax.random.normal(kx, (B, T, C), jnp.float32)

    params = make_params(kp)
    kparams = pack_params(params, P=_pick_p())

    out = jax.block_until_ready(transformer_block(x, kparams))
    ref = reference_block(x, params)

    assert out.shape == (B, T, C)
    max_err = float(jnp.max(jnp.abs(out - ref)))
    # bf16 MXU operands + approx reciprocal -> a few 1e-4 absolute error.
    assert jnp.allclose(out, ref, atol=5e-3, rtol=5e-3), (
        f"mismatch vs reference (max |err| = {max_err})")
    print("KERNEL_OK")
</pallas_src>

<mosaic_0001>
module attributes {stable_mosaic.version = 11 : i64} {
  func.func @block_kernel(%arg0: i32, %arg1: memref<16x8x64xf32, #tpu.memory_space<vmem>>, %arg2: memref<64x192xbf16, #tpu.memory_space<vmem>>, %arg3: memref<64x64xbf16, #tpu.memory_space<vmem>>, %arg4: memref<64x256xbf16, #tpu.memory_space<vmem>>, %arg5: memref<256x64xbf16, #tpu.memory_space<vmem>>, %arg6: memref<6x64xf32, #tpu.memory_space<vmem>>, %arg7: memref<1x256xf32, #tpu.memory_space<vmem>>, %arg8: memref<256x64xbf16, #tpu.memory_space<vmem>>, %arg9: memref<32x256xf32, #tpu.memory_space<vmem>>, %arg10: memref<16x8x64xf32, #tpu.memory_space<vmem>>) attributes {dimension_semantics = [#tpu.dimension_semantics<parallel>], iteration_bounds = array<i64: 4>, scalar_prefetch = 0 : i64, scratch_operands = 0 : i64, tpu.core_type = #tpu.core_type<tc>, window_params = [{transform_indices = @transform_0, window_bounds = array<i64: 16, 8, 64>}, {pipeline_mode = #tpu.pipeline_mode<synchronous>, transform_indices = @transform_1, window_bounds = array<i64: 64, 192>}, {pipeline_mode = #tpu.pipeline_mode<synchronous>, transform_indices = @transform_2, window_bounds = array<i64: 64, 64>}, {pipeline_mode = #tpu.pipeline_mode<synchronous>, transform_indices = @transform_3, window_bounds = array<i64: 64, 256>}, {pipeline_mode = #tpu.pipeline_mode<synchronous>, transform_indices = @transform_4, window_bounds = array<i64: 256, 64>}, {pipeline_mode = #tpu.pipeline_mode<synchronous>, transform_indices = @transform_5, window_bounds = array<i64: 6, 64>}, {pipeline_mode = #tpu.pipeline_mode<synchronous>, transform_indices = @transform_6, window_bounds = array<i64: 1, 256>}, {pipeline_mode = #tpu.pipeline_mode<synchronous>, transform_indices = @transform_7, window_bounds = array<i64: 256, 64>}, {pipeline_mode = #tpu.pipeline_mode<synchronous>, transform_indices = @transform_8, window_bounds = array<i64: 32, 256>}, {transform_indices = @transform_9, window_bounds = array<i64: 16, 8, 64>}]} {
    %c0 = arith.constant 0 : index
    %c0_0 = arith.constant 0 : index
    %0 = vector.load %arg6[%c0, %c0_0] : memref<6x64xf32, #tpu.memory_space<vmem>>, vector<6x64xf32>
    %1 = vector.extract_strided_slice %0 {offsets = [0, 0], sizes = [1, 64], strides = [1, 1]} : vector<6x64xf32> to vector<1x64xf32>
    %2 = vector.extract_strided_slice %0 {offsets = [1, 0], sizes = [1, 64], strides = [1, 1]} : vector<6x64xf32> to vector<1x64xf32>
    %3 = vector.extract_strided_slice %0 {offsets = [2, 0], sizes = [1, 64], strides = [1, 1]} : vector<6x64xf32> to vector<1x64xf32>
    %4 = vector.extract_strided_slice %0 {offsets = [3, 0], sizes = [1, 64], strides = [1, 1]} : vector<6x64xf32> to vector<1x64xf32>
    %5 = vector.extract_strided_slice %0 {offsets = [4, 0], sizes = [1, 64], strides = [1, 1]} : vector<6x64xf32> to vector<1x64xf32>
    %6 = vector.extract_strided_slice %0 {offsets = [5, 0], sizes = [1, 64], strides = [1, 1]} : vector<6x64xf32> to vector<1x64xf32>
    %c0_1 = arith.constant 0 : index
    %c0_2 = arith.constant 0 : index
    %c0_3 = arith.constant 0 : index
    %7 = vector.load %arg1[%c0_1, %c0_2, %c0_3] : memref<16x8x64xf32, #tpu.memory_space<vmem>>, vector<16x8x64xf32>
    %8 = vector.shape_cast %7 : vector<16x8x64xf32> to vector<128x64xf32>
    %cst = arith.constant dense<0.000000e+00> : vector<128xf32>
    %9 = vector.multi_reduction <add>, %8, %cst [1] : vector<128x64xf32> to vector<128xf32>
    %10 = vector.shape_cast %9 : vector<128xf32> to vector<128x1xf32>
    %cst_4 = arith.constant 6.400000e+01 : f32
    %11 = vector.broadcast %cst_4 : f32 to vector<128x1xf32>
    %12 = arith.divf %10, %11 : vector<128x1xf32>
    %13 = vector.broadcast %12 : vector<128x1xf32> to vector<128x64xf32>
    %14 = arith.subf %8, %13 : vector<128x64xf32>
    %15 = arith.mulf %14, %14 : vector<128x64xf32>
    %cst_5 = arith.constant dense<0.000000e+00> : vector<128xf32>
    %16 = vector.multi_reduction <add>, %15, %cst_5 [1] : vector<128x64xf32> to vector<128xf32>
    %17 = vector.shape_cast %16 : vector<128xf32> to vector<128x1xf32>
    %cst_6 = arith.constant 6.400000e+01 : f32
    %18 = vector.broadcast %cst_6 : f32 to vector<128x1xf32>
    %19 = arith.divf %17, %18 : vector<128x1xf32>
    %cst_7 = arith.constant 9.99999974E-6 : f32
    %20 = vector.broadcast %cst_7 : f32 to vector<128x1xf32>
    %21 = arith.addf %19, %20 : vector<128x1xf32>
    %22 = math.rsqrt %21 : vector<128x1xf32>
    %23 = vector.broadcast %22 : vector<128x1xf32> to vector<128x64xf32>
    %24 = arith.mulf %14, %23 : vector<128x64xf32>
    %25 = vector.broadcast %1 : vector<1x64xf32> to vector<128x64xf32>
    %26 = arith.mulf %24, %25 : vector<128x64xf32>
    %27 = vector.broadcast %2 : vector<1x64xf32> to vector<128x64xf32>
    %28 = arith.addf %26, %27 : vector<128x64xf32>
    %29 = arith.truncf %28 : vector<128x64xf32> to vector<128x64xbf16>
    %c0_8 = arith.constant 0 : index
    %c0_9 = arith.constant 0 : index
    %30 = vector.load %arg2[%c0_8, %c0_9] : memref<64x192xbf16, #tpu.memory_space<vmem>>, vector<64x192xbf16>
    %cst_10 = arith.constant dense<0.000000e+00> : vector<128x192xf32>
    %31 = tpu.matmul %29, %30, %cst_10 {dimension_numbers = #tpu.dot_dimension_numbers<[1], [0], [0], [1], [0, 0, 1, 1], [], []>} : vector<128x64xbf16>, vector<64x192xbf16>, vector<128x192xf32> -> vector<128x192xf32>
    %c0_11 = arith.constant 0 : index
    %c0_12 = arith.constant 0 : index
    %32 = vector.load %arg8[%c0_11, %c0_12] : memref<256x64xbf16, #tpu.memory_space<vmem>>, vector<256x64xbf16>
    %33 = vector.extract_strided_slice %31 {offsets = [0, 0], sizes = [128, 64], strides = [1, 1]} : vector<128x192xf32> to vector<128x64xf32>
    %34 = arith.truncf %33 : vector<128x64xf32> to vector<128x64xbf16>
    %35 = vector.shape_cast %34 : vector<128x64xbf16> to vector<4x32x64xbf16>
    %36 = vector.extract_strided_slice %31 {offsets = [0, 64], sizes = [128, 64], strides = [1, 1]} : vector<128x192xf32> to vector<128x64xf32>
    %37 = arith.truncf %36 : vector<128x64xf32> to vector<128x64xbf16>
    %38 = vector.shape_cast %37 : vector<128x64xbf16> to vector<16x1x8x64xbf16>
    %39 = vector.shape_cast %38 : vector<16x1x8x64xbf16> to vector<16x1x8x64xbf16>
    %40 = vector.broadcast %39 : vector<16x1x8x64xbf16> to vector<16x8x8x64xbf16>
    %41 = vector.shape_cast %40 : vector<16x8x8x64xbf16> to vector<4x256x64xbf16>
    %42 = vector.shape_cast %32 : vector<256x64xbf16> to vector<1x256x64xbf16>
    %43 = vector.broadcast %42 : vector<1x256x64xbf16> to vector<4x256x64xbf16>
    %44 = arith.mulf %41, %43 : vector<4x256x64xbf16>
    %45 = vector.extract_strided_slice %31 {offsets = [0, 128], sizes = [128, 64], strides = [1, 1]} : vector<128x192xf32> to vector<128x64xf32>
    %46 = arith.truncf %45 : vector<128x64xf32> to vector<128x64xbf16>
    %47 = vector.shape_cast %46 : vector<128x64xbf16> to vector<16x1x8x64xbf16>
    %48 = vector.shape_cast %47 : vector<16x1x8x64xbf16> to vector<16x1x8x64xbf16>
    %49 = vector.broadcast %48 : vector<16x1x8x64xbf16> to vector<16x8x8x64xbf16>
    %50 = vector.shape_cast %49 : vector<16x8x8x64xbf16> to vector<4x256x64xbf16>
    %51 = vector.shape_cast %32 : vector<256x64xbf16> to vector<1x256x64xbf16>
    %52 = vector.broadcast %51 : vector<1x256x64xbf16> to vector<4x256x64xbf16>
    %53 = arith.mulf %50, %52 : vector<4x256x64xbf16>
    %cst_13 = arith.constant dense<0.000000e+00> : vector<4x32x256xf32>
    %54 = tpu.matmul %35, %44, %cst_13 {dimension_numbers = #tpu.dot_dimension_numbers<[2], [2], [1], [1], [0, 0, 0, 1, 1, 1], [0], [0]>} : vector<4x32x64xbf16>, vector<4x256x64xbf16>, vector<4x32x256xf32> -> vector<4x32x256xf32>
    %c0_14 = arith.constant 0 : index
    %c0_15 = arith.constant 0 : index
    %55 = vector.load %arg9[%c0_14, %c0_15] : memref<32x256xf32, #tpu.memory_space<vmem>>, vector<32x256xf32>
    %56 = vector.shape_cast %55 : vector<32x256xf32> to vector<1x32x256xf32>
    %57 = vector.broadcast %56 : vector<1x32x256xf32> to vector<4x32x256xf32>
    %58 = arith.addf %54, %57 : vector<4x32x256xf32>
    %cst_16 = arith.constant dense<0xFF800000> : vector<4x32xf32>
    %59 = vector.multi_reduction <maximumf>, %58, %cst_16 [2] : vector<4x32x256xf32> to vector<4x32xf32>
    %60 = vector.shape_cast %59 : vector<4x32xf32> to vector<4x32x1xf32>
    %61 = vector.broadcast %60 : vector<4x32x1xf32> to vector<4x32x256xf32>
    %62 = arith.subf %58, %61 : vector<4x32x256xf32>
    %63 = math.exp %62 : vector<4x32x256xf32>
    %64 = arith.truncf %63 : vector<4x32x256xf32> to vector<4x32x256xbf16>
    %cst_17 = arith.constant dense<0.000000e+00> : vector<4x32x64xf32>
    %65 = tpu.matmul %64, %53, %cst_17 {dimension_numbers = #tpu.dot_dimension_numbers<[2], [1], [1], [2], [0, 0, 0, 1, 1, 2], [0], [0]>} : vector<4x32x256xbf16>, vector<4x256x64xbf16>, vector<4x32x64xf32> -> vector<4x32x64xf32>
    %66 = vector.shape_cast %64 : vector<4x32x256xbf16> to vector<128x256xbf16>
    %cst_18 = arith.constant dense<0.000000e+00> : vector<128x64xf32>
    %67 = tpu.matmul %66, %32, %cst_18 {dimension_numbers = #tpu.dot_dimension_numbers<[1], [0], [0], [1], [0, 0, 1, 1], [], []>} : vector<128x256xbf16>, vector<256x64xbf16>, vector<128x64xf32> -> vector<128x64xf32>
    %68 = vector.shape_cast %65 : vector<4x32x64xf32> to vector<128x64xf32>
    %cst_19 = arith.constant 1.000000e-30 : f32
    %69 = vector.broadcast %cst_19 : f32 to vector<128x64xf32>
    %70 = arith.addf %67, %69 : vector<128x64xf32>
    %71 = tpu.reciprocal %70 {approx = true} : vector<128x64xf32> -> vector<128x64xf32>
    %72 = arith.mulf %68, %71 : vector<128x64xf32>
    %73 = arith.truncf %72 : vector<128x64xf32> to vector<128x64xbf16>
    %c0_20 = arith.constant 0 : index
    %c0_21 = arith.constant 0 : index
    %74 = vector.load %arg3[%c0_20, %c0_21] : memref<64x64xbf16, #tpu.memory_space<vmem>>, vector<64x64xbf16>
    %cst_22 = arith.constant dense<0.000000e+00> : vector<128x64xf32>
    %75 = tpu.matmul %73, %74, %cst_22 {dimension_numbers = #tpu.dot_dimension_numbers<[1], [0], [0], [1], [0, 0, 1, 1], [], []>} : vector<128x64xbf16>, vector<64x64xbf16>, vector<128x64xf32> -> vector<128x64xf32>
    %76 = vector.broadcast %5 : vector<1x64xf32> to vector<128x64xf32>
    %77 = arith.addf %75, %76 : vector<128x64xf32>
    %78 = arith.addf %8, %77 : vector<128x64xf32>
    %cst_23 = arith.constant dense<0.000000e+00> : vector<128xf32>
    %79 = vector.multi_reduction <add>, %78, %cst_23 [1] : vector<128x64xf32> to vector<128xf32>
    %80 = vector.shape_cast %79 : vector<128xf32> to vector<128x1xf32>
    %cst_24 = arith.constant 6.400000e+01 : f32
    %81 = vector.broadcast %cst_24 : f32 to vector<128x1xf32>
    %82 = arith.divf %80, %81 : vector<128x1xf32>
    %83 = vector.broadcast %82 : vector<128x1xf32> to vector<128x64xf32>
    %84 = arith.subf %78, %83 : vector<128x64xf32>
    %85 = arith.mulf %84, %84 : vector<128x64xf32>
    %cst_25 = arith.constant dense<0.000000e+00> : vector<128xf32>
    %86 = vector.multi_reduction <add>, %85, %cst_25 [1] : vector<128x64xf32> to vector<128xf32>
    %87 = vector.shape_cast %86 : vector<128xf32> to vector<128x1xf32>
    %cst_26 = arith.constant 6.400000e+01 : f32
    %88 = vector.broadcast %cst_26 : f32 to vector<128x1xf32>
    %89 = arith.divf %87, %88 : vector<128x1xf32>
    %cst_27 = arith.constant 9.99999974E-6 : f32
    %90 = vector.broadcast %cst_27 : f32 to vector<128x1xf32>
    %91 = arith.addf %89, %90 : vector<128x1xf32>
    %92 = math.rsqrt %91 : vector<128x1xf32>
    %93 = vector.broadcast %92 : vector<128x1xf32> to vector<128x64xf32>
    %94 = arith.mulf %84, %93 : vector<128x64xf32>
    %95 = vector.broadcast %3 : vector<1x64xf32> to vector<128x64xf32>
    %96 = arith.mulf %94, %95 : vector<128x64xf32>
    %97 = vector.broadcast %4 : vector<1x64xf32> to vector<128x64xf32>
    %98 = arith.addf %96, %97 : vector<128x64xf32>
    %99 = arith.truncf %98 : vector<128x64xf32> to vector<128x64xbf16>
    %c0_28 = arith.constant 0 : index
    %c0_29 = arith.constant 0 : index
    %100 = vector.load %arg4[%c0_28, %c0_29] : memref<64x256xbf16, #tpu.memory_space<vmem>>, vector<64x256xbf16>
    %cst_30 = arith.constant dense<0.000000e+00> : vector<128x256xf32>
    %101 = tpu.matmul %99, %100, %cst_30 {dimension_numbers = #tpu.dot_dimension_numbers<[1], [0], [0], [1], [0, 0, 1, 1], [], []>} : vector<128x64xbf16>, vector<64x256xbf16>, vector<128x256xf32> -> vector<128x256xf32>
    %c0_31 = arith.constant 0 : index
    %c0_32 = arith.constant 0 : index
    %102 = vector.load %arg7[%c0_31, %c0_32] : memref<1x256xf32, #tpu.memory_space<vmem>>, vector<1x256xf32>
    %103 = vector.broadcast %102 : vector<1x256xf32> to vector<128x256xf32>
    %104 = arith.addf %101, %103 : vector<128x256xf32>
    %cst_33 = arith.constant 0.000000e+00 : f32
    %105 = vector.broadcast %cst_33 : f32 to vector<128x256xf32>
    %106 = arith.maximumf %104, %105 : vector<128x256xf32>
    %107 = arith.truncf %106 : vector<128x256xf32> to vector<128x256xbf16>
    %c0_34 = arith.constant 0 : index
    %c0_35 = arith.constant 0 : index
    %108 = vector.load %arg5[%c0_34, %c0_35] : memref<256x64xbf16, #tpu.memory_space<vmem>>, vector<256x64xbf16>
    %cst_36 = arith.constant dense<0.000000e+00> : vector<128x64xf32>
    %109 = tpu.matmul %107, %108, %cst_36 {dimension_numbers = #tpu.dot_dimension_numbers<[1], [0], [0], [1], [0, 0, 1, 1], [], []>} : vector<128x256xbf16>, vector<256x64xbf16>, vector<128x64xf32> -> vector<128x64xf32>
    %110 = vector.broadcast %6 : vector<1x64xf32> to vector<128x64xf32>
    %111 = arith.addf %109, %110 : vector<128x64xf32>
    %112 = arith.addf %78, %111 : vector<128x64xf32>
    %113 = vector.shape_cast %112 : vector<128x64xf32> to vector<16x8x64xf32>
    %c0_37 = arith.constant 0 : index
    %c0_38 = arith.constant 0 : index
    %c0_39 = arith.constant 0 : index
    %114 = vector.load %arg10[%c0_37, %c0_38, %c0_39] : memref<16x8x64xf32, #tpu.memory_space<vmem>>, vector<16x8x64xf32>
    tpu.vector_store %arg10[%c0_37, %c0_38, %c0_39], %113 {strides = array<i32>} : memref<16x8x64xf32, #tpu.memory_space<vmem>>, vector<16x8x64xf32>,
    return
  }
  func.func @transform_0(%arg0: i32) -> (i32, i32, i32) {
    %c0_i32 = arith.constant 0 : i32
    %c0_i32_0 = arith.constant 0 : i32
    %c0_i32_1 = arith.constant 0 : i32
    return %arg0, %c0_i32, %c0_i32_0 : i32, i32, i32
  }
  func.func @transform_1(%arg0: i32) -> (i32, i32) {
    %c0_i32 = arith.constant 0 : i32
    %c0_i32_0 = arith.constant 0 : i32
    %c0_i32_1 = arith.constant 0 : i32
    return %c0_i32, %c0_i32_0 : i32, i32
  }
  func.func @transform_2(%arg0: i32) -> (i32, i32) {
    %c0_i32 = arith.constant 0 : i32
    %c0_i32_0 = arith.constant 0 : i32
    %c0_i32_1 = arith.constant 0 : i32
    return %c0_i32, %c0_i32_0 : i32, i32
  }
  func.func @transform_3(%arg0: i32) -> (i32, i32) {
    %c0_i32 = arith.constant 0 : i32
    %c0_i32_0 = arith.constant 0 : i32
    %c0_i32_1 = arith.constant 0 : i32
    return %c0_i32, %c0_i32_0 : i32, i32
  }
  func.func @transform_4(%arg0: i32) -> (i32, i32) {
    %c0_i32 = arith.constant 0 : i32
    %c0_i32_0 = arith.constant 0 : i32
    %c0_i32_1 = arith.constant 0 : i32
    return %c0_i32, %c0_i32_0 : i32, i32
  }
  func.func @transform_5(%arg0: i32) -> (i32, i32) {
    %c0_i32 = arith.constant 0 : i32
    %c0_i32_0 = arith.constant 0 : i32
    %c0_i32_1 = arith.constant 0 : i32
    return %c0_i32, %c0_i32_0 : i32, i32
  }
  func.func @transform_6(%arg0: i32) -> (i32, i32) {
    %c0_i32 = arith.constant 0 : i32
    %c0_i32_0 = arith.constant 0 : i32
    %c0_i32_1 = arith.constant 0 : i32
    return %c0_i32, %c0_i32_0 : i32, i32
  }
  func.func @transform_7(%arg0: i32) -> (i32, i32) {
    %c0_i32 = arith.constant 0 : i32
    %c0_i32_0 = arith.constant 0 : i32
    %c0_i32_1 = arith.constant 0 : i32
    return %c0_i32, %c0_i32_0 : i32, i32
  }
  func.func @transform_8(%arg0: i32) -> (i32, i32) {
    %c0_i32 = arith.constant 0 : i32
    %c0_i32_0 = arith.constant 0 : i32
    %c0_i32_1 = arith.constant 0 : i32
    return %c0_i32, %c0_i32_0 : i32, i32
  }
  func.func @transform_9(%arg0: i32) -> (i32, i32, i32) {
    %c0_i32 = arith.constant 0 : i32
    %c0_i32_0 = arith.constant 0 : i32
    %c0_i32_1 = arith.constant 0 : i32
    return %arg0, %c0_i32, %c0_i32_0 : i32, i32, i32
  }
}

</mosaic_0001>

<llo_original>
// kernel: tpu_custom_call.1
$region0: #{tpu_custom_call.1}
  #allocation0 [shape = 'u32[]', space=smem, size = 0x4, offset = 0x4, fixed_abs, tag = 'smem constant byte address 0x4 - core index']
  #allocation1 [shape = 'u32[144,128]{1,0:T(1,128)}', space=vmem, size = 0x12000, scoped, tag = 'internal scratch']
  %s0 = inlined_call_operand.hbm [shape: f32[64,8,64], index: 0, kind: input, shape index: {}]
  %s1 = inlined_call_operand.vmem [shape: bf16[64,192], index: 1, kind: input, shape index: {}]
  %s2 = inlined_call_operand.vmem [shape: bf16[64,64], index: 2, kind: input, shape index: {}]
  %s3 = inlined_call_operand.vmem [shape: bf16[64,256], index: 3, kind: input, shape index: {}]
  %s4 = inlined_call_operand.vmem [shape: bf16[256,64], index: 4, kind: input, shape index: {}]
  %s5 = inlined_call_operand.vmem [shape: f32[6,64], index: 5, kind: input, shape index: {}]
  %s6 = inlined_call_operand.vmem [shape: f32[1,256], index: 6, kind: input, shape index: {}]
  %s7 = inlined_call_operand.vmem [shape: bf16[256,64], index: 7, kind: input, shape index: {}]
  %s8 = inlined_call_operand.vmem [shape: f32[32,256], index: 8, kind: input, shape index: {}]
  %s9 = inlined_call_operand.hbm [shape: f32[64,8,64], index: 9, kind: output, shape index: {}]
  %s10 = sld [smem:[#allocation0]]
  $region73: #{tpu_custom_call.1} parent=0
    _
  %s12 = ssub.s32 1, %s10
  %s13 = scalar_select 0, %s12, %s10
  $region1: #{tpu_custom_call.1} parent=0
    #allocation2 [shape = 'u8[131072]{0}', space=vmem, size = 0x20000, scoped, tag = 'input window, operand 0']
    #allocation3 [shape = 's32[2]{0}', space=sflag, size = 0x8, scoped, tag = 'scoped memory for tpu_custom_call.1']
    #allocation4 [shape = 's32[2]{0}', space=sflag, size = 0x8, scoped, tag = 'scoped memory for tpu_custom_call.1']
    #allocation5 [shape = 'u8[131072]{0}', space=vmem, size = 0x20000, scoped, tag = 'output window, operand 0']
    %14 = vsyncpa [#allocation3], 0
    %s15 = scalar_lea.sflag [#allocation3], 1
    %16 = vsyncpa %s15, 0
    %17 = vsyncpa [#allocation4], 0
    %s18 = scalar_lea.sflag [#allocation4], 1
    %19 = vsyncpa %s18, 0
    loop: start=0, step=1, limit=6
    $region2: #{tpu_custom_call.1} parent=1 // loop_pre_header
      _
    $region3: #{tpu_custom_call.1} parent=1 // loop_header
      %s21 = sphi 0, %s25
      %p22 = scmp.ge.s32.totalorder %s21, 6
      %s31 = sphi 0, %s33
      %s34 = sphi 0, %s31
      %s35 = sphi 0, %s34
      %s51 = sphi 0, %s35
      %s55 = sphi 0, %s55
      %s57 = sphi 0, %s55
      %s58 = sphi 0, %s57
      %s72 = sphi 0, %s58
      %s76 = sphi 0, %s76
      %s78 = sphi 0, %s76
      %s79 = sphi 0, %s78
      %s93 = sphi 0, %s79
      %s97 = sphi 0, %s97
      %s99 = sphi 0, %s97
      %s100 = sphi 0, %s99
      %s114 = sphi 0, %s100
      %s118 = sphi 0, %s118
      %s120 = sphi 0, %s118
      %s121 = sphi 0, %s120
      %s135 = sphi 0, %s121
      %s139 = sphi 0, %s139
      %s141 = sphi 0, %s139
      %s142 = sphi 0, %s141
      %s156 = sphi 0, %s142
      %s160 = sphi 0, %s160
      %s162 = sphi 0, %s160
      %s163 = sphi 0, %s162
      %s177 = sphi 0, %s163
      %s181 = sphi 0, %s181
      %s183 = sphi 0, %s181
      %s184 = sphi 0, %s183
      %s198 = sphi 0, %s184
      %s202 = sphi 0, %s202
      %s204 = sphi 0, %s202
      %s205 = sphi 0, %s204
      %s219 = sphi 0, %s205
      %s225 = sphi 0, %s227
      %s228 = sphi 0, %s225
      %s229 = sphi 0, %s228
      %s245 = sphi 0, %s229
    $region4: #{tpu_custom_call.1} parent=1 // loop_header_branch
      %24 = sbr.rel (%p22) target = $region8
    $region5: #{tpu_custom_call.1} parent=1 // loop_body
      %s26 = ssub.s32 %s21, 1
      %s27 = ssub.s32 %s21, 2
      %s28 = sadd.s32 %s21, 1
      %s29 = ssub.s32 %s21, %s28
      %p30 = scmp.eq.s32.totalorder %s29, 0
      %s32 = sadd.s32 %s31, 1
      %s33 = scalar_select %p30, %s31, %s32
      %p36 = pneg %p30
      %p37 = scmp.eq.s32.totalorder %s21, 3
      %p38 = por %p36, %p37
      %p39 = scmp.ne.s32.totalorder %s31, %s34
      %p40 = scmp.eq.s32.totalorder %s21, 0
      %p41 = por %p39, %p40
      %p42 = scmp.ne.s32.totalorder %s31, %s34
      %p43 = scmp.eq.s32.totalorder %s26, 3
      %p44 = por %p42, %p43
      %p45 = scmp.ne.s32.totalorder %s34, %s35
      %p46 = scmp.eq.s32.totalorder %s26, 0
      %p47 = por %p45, %p46
      %p48 = scmp.ne.s32.totalorder %s34, %s35
      %p49 = scmp.eq.s32.totalorder %s27, 3
      %p50 = por %p48, %p49
      %p52 = scmp.ne.s32.totalorder %s35, %s51
      %p53 = scmp.eq.s32.totalorder %s27, 0
      %p54 = por %p52, %p53
      %s56 = sadd.s32 %s55, 1
      %p59 = scmp.eq.s32.totalorder %s21, 3
      %p60 = scmp.ne.s32.totalorder %s55, %s57
      %p61 = scmp.eq.s32.totalorder %s21, 0
      %p62 = por %p60, %p61
      %p63 = scmp.ne.s32.totalorder %s55, %s57
      %p64 = scmp.eq.s32.totalorder %s26, 3
      %p65 = por %p63, %p64
      %p66 = scmp.ne.s32.totalorder %s57, %s58
      %p67 = scmp.eq.s32.totalorder %s26, 0
      %p68 = por %p66, %p67
      %p69 = scmp.ne.s32.totalorder %s57, %s58
      %p70 = scmp.eq.s32.totalorder %s27, 3
      %p71 = por %p69, %p70
      %p73 = scmp.ne.s32.totalorder %s58, %s72
      %p74 = scmp.eq.s32.totalorder %s27, 0
      %p75 = por %p73, %p74
      %s77 = sadd.s32 %s76, 1
      %p80 = scmp.eq.s32.totalorder %s21, 3
      %p81 = scmp.ne.s32.totalorder %s76, %s78
      %p82 = scmp.eq.s32.totalorder %s21, 0
      %p83 = por %p81, %p82
      %p84 = scmp.ne.s32.totalorder %s76, %s78
      %p85 = scmp.eq.s32.totalorder %s26, 3
      %p86 = por %p84, %p85
      %p87 = scmp.ne.s32.totalorder %s78, %s79
      %p88 = scmp.eq.s32.totalorder %s26, 0
      %p89 = por %p87, %p88
      %p90 = scmp.ne.s32.totalorder %s78, %s79
      %p91 = scmp.eq.s32.totalorder %s27, 3
      %p92 = por %p90, %p91
      %p94 = scmp.ne.s32.totalorder %s79, %s93
      %p95 = scmp.eq.s32.totalorder %s27, 0
      %p96 = por %p94, %p95
      %s98 = sadd.s32 %s97, 1
      %p101 = scmp.eq.s32.totalorder %s21, 3
      %p102 = scmp.ne.s32.totalorder %s97, %s99
      %p103 = scmp.eq.s32.totalorder %s21, 0
      %p104 = por %p102, %p103
      %p105 = scmp.ne.s32.totalorder %s97, %s99
      %p106 = scmp.eq.s32.totalorder %s26, 3
      %p107 = por %p105, %p106
      %p108 = scmp.ne.s32.totalorder %s99, %s100
      %p109 = scmp.eq.s32.totalorder %s26, 0
      %p110 = por %p108, %p109
      %p111 = scmp.ne.s32.totalorder %s99, %s100
      %p112 = scmp.eq.s32.totalorder %s27, 3
      %p113 = por %p111, %p112
      %p115 = scmp.ne.s32.totalorder %s100, %s114
      %p116 = scmp.eq.s32.totalorder %s27, 0
      %p117 = por %p115, %p116
      %s119 = sadd.s32 %s118, 1
      %p122 = scmp.eq.s32.totalorder %s21, 3
      %p123 = scmp.ne.s32.totalorder %s118, %s120
      %p124 = scmp.eq.s32.totalorder %s21, 0
      %p125 = por %p123, %p124
      %p126 = scmp.ne.s32.totalorder %s118, %s120
      %p127 = scmp.eq.s32.totalorder %s26, 3
      %p128 = por %p126, %p127
      %p129 = scmp.ne.s32.totalorder %s120, %s121
      %p130 = scmp.eq.s32.totalorder %s26, 0
      %p131 = por %p129, %p130
      %p132 = scmp.ne.s32.totalorder %s120, %s121
      %p133 = scmp.eq.s32.totalorder %s27, 3
      %p134 = por %p132, %p133
      %p136 = scmp.ne.s32.totalorder %s121, %s135
      %p137 = scmp.eq.s32.totalorder %s27, 0
      %p138 = por %p136, %p137
      %s140 = sadd.s32 %s139, 1
      %p143 = scmp.eq.s32.totalorder %s21, 3
      %p144 = scmp.ne.s32.totalorder %s139, %s141
      %p145 = scmp.eq.s32.totalorder %s21, 0
      %p146 = por %p144, %p145
      %p147 = scmp.ne.s32.totalorder %s139, %s141
      %p148 = scmp.eq.s32.totalorder %s26, 3
      %p149 = por %p147, %p148
      %p150 = scmp.ne.s32.totalorder %s141, %s142
      %p151 = scmp.eq.s32.totalorder %s26, 0
      %p152 = por %p150, %p151
      %p153 = scmp.ne.s32.totalorder %s141, %s142
      %p154 = scmp.eq.s32.totalorder %s27, 3
      %p155 = por %p153, %p154
      %p157 = scmp.ne.s32.totalorder %s142, %s156
      %p158 = scmp.eq.s32.totalorder %s27, 0
      %p159 = por %p157, %p158
      %s161 = sadd.s32 %s160, 1
      %p164 = scmp.eq.s32.totalorder %s21, 3
      %p165 = scmp.ne.s32.totalorder %s160, %s162
      %p166 = scmp.eq.s32.totalorder %s21, 0
      %p167 = por %p165, %p166
      %p168 = scmp.ne.s32.totalorder %s160, %s162
      %p169 = scmp.eq.s32.totalorder %s26, 3
      %p170 = por %p168, %p169
      %p171 = scmp.ne.s32.totalorder %s162, %s163
      %p172 = scmp.eq.s32.totalorder %s26, 0
      %p173 = por %p171, %p172
      %p174 = scmp.ne.s32.totalorder %s162, %s163
      %p175 = scmp.eq.s32.totalorder %s27, 3
      %p176 = por %p174, %p175
      %p178 = scmp.ne.s32.totalorder %s163, %s177
      %p179 = scmp.eq.s32.totalorder %s27, 0
      %p180 = por %p178, %p179
      %s182 = sadd.s32 %s181, 1
      %p185 = scmp.eq.s32.totalorder %s21, 3
      %p186 = scmp.ne.s32.totalorder %s181, %s183
      %p187 = scmp.eq.s32.totalorder %s21, 0
      %p188 = por %p186, %p187
      %p189 = scmp.ne.s32.totalorder %s181, %s183
      %p190 = scmp.eq.s32.totalorder %s26, 3
      %p191 = por %p189, %p190
      %p192 = scmp.ne.s32.totalorder %s183, %s184
      %p193 = scmp.eq.s32.totalorder %s26, 0
      %p194 = por %p192, %p193
      %p195 = scmp.ne.s32.totalorder %s183, %s184
      %p196 = scmp.eq.s32.totalorder %s27, 3
      %p197 = por %p195, %p196
      %p199 = scmp.ne.s32.totalorder %s184, %s198
      %p200 = scmp.eq.s32.totalorder %s27, 0
      %p201 = por %p199, %p200
      %s203 = sadd.s32 %s202, 1
      %p206 = scmp.eq.s32.totalorder %s21, 3
      %p207 = scmp.ne.s32.totalorder %s202, %s204
      %p208 = scmp.eq.s32.totalorder %s21, 0
      %p209 = por %p207, %p208
      %p210 = scmp.ne.s32.totalorder %s202, %s204
      %p211 = scmp.eq.s32.totalorder %s26, 3
      %p212 = por %p210, %p211
      %p213 = scmp.ne.s32.totalorder %s204, %s205
      %p214 = scmp.eq.s32.totalorder %s26, 0
      %p215 = por %p213, %p214
      %p216 = scmp.ne.s32.totalorder %s204, %s205
      %p217 = scmp.eq.s32.totalorder %s27, 3
      %p218 = por %p216, %p217
      %p220 = scmp.ne.s32.totalorder %s205, %s219
      %p221 = scmp.eq.s32.totalorder %s27, 0
      %p222 = por %p220, %p221
      %s223 = ssub.s32 %s21, %s28
      %p224 = scmp.eq.s32.totalorder %s223, 0
      %s226 = sadd.s32 %s225, 1
      %s227 = scalar_select %p224, %s225, %s226
      %p230 = pneg %p224
      %p231 = scmp.eq.s32.totalorder %s21, 3
      %p232 = por %p230, %p231
      %p233 = scmp.ne.s32.totalorder %s225, %s228
      %p234 = scmp.eq.s32.totalorder %s21, 0
      %p235 = por %p233, %p234
      %p236 = scmp.ne.s32.totalorder %s225, %s228
      %p237 = scmp.eq.s32.totalorder %s26, 3
      %p238 = por %p236, %p237
      %p239 = scmp.ne.s32.totalorder %s228, %s229
      %p240 = scmp.eq.s32.totalorder %s26, 0
      %p241 = por %p239, %p240
      %p242 = scmp.ne.s32.totalorder %s228, %s229
      %p243 = scmp.eq.s32.totalorder %s27, 3
      %p244 = por %p242, %p243
      %p246 = scmp.ne.s32.totalorder %s229, %s245
      %p247 = scmp.eq.s32.totalorder %s27, 0
      %p248 = por %p246, %p247
      %p249 = scmp.le.s32.totalorder 1, %s21
      %p250 = scmp.lt.s32.totalorder %s21, 5
      %p251 = pnand %p249, %p250
      %p252 = pneg %p251
      // Predicated region
      $region9: #{tpu_custom_call.1} parent=5 // pred_check
        _
      $region10: #{tpu_custom_call.1} parent=5 // pred_check_branch
        %254 = sbr.rel (%p251) target = $region12
      $region11: #{tpu_custom_call.1} parent=5 // pred_region
        %s255 = ssub.s32 %s21, 1
        // Predicated region
        $region13: #{tpu_custom_call.1} parent=11 // pred_check
          %p256 = pneg %p68
        $region14: #{tpu_custom_call.1} parent=11 // pred_check_branch
          %258 = sbr.rel (%p256) target = $region16
        $region15: #{tpu_custom_call.1} parent=11 // pred_region
          _
        $region16: #{tpu_custom_call.1} parent=11 // pred_fallthru
          _
        // Predicated region
        $region17: #{tpu_custom_call.1} parent=11 // pred_check
          %p259 = pneg %p89
        $region18: #{tpu_custom_call.1} parent=11 // pred_check_branch
          %261 = sbr.rel (%p259) target = $region20
        $region19: #{tpu_custom_call.1} parent=11 // pred_region
          _
        $region20: #{tpu_custom_call.1} parent=11 // pred_fallthru
          _
        // Predicated region
        $region21: #{tpu_custom_call.1} parent=11 // pred_check
          %p262 = pneg %p110
        $region22: #{tpu_custom_call.1} parent=11 // pred_check_branch
          %264 = sbr.rel (%p262) target = $region24
        $region23: #{tpu_custom_call.1} parent=11 // pred_region
          _
        $region24: #{tpu_custom_call.1} parent=11 // pred_fallthru
          _
        // Predicated region
        $region25: #{tpu_custom_call.1} parent=11 // pred_check
          %p265 = pneg %p131
        $region26: #{tpu_custom_call.1} parent=11 // pred_check_branch
          %267 = sbr.rel (%p265) target = $region28
        $region27: #{tpu_custom_call.1} parent=11 // pred_region
          _
        $region28: #{tpu_custom_call.1} parent=11 // pred_fallthru
          _
        // Predicated region
        $region29: #{tpu_custom_call.1} parent=11 // pred_check
          %p268 = pneg %p152
        $region30: #{tpu_custom_call.1} parent=11 // pred_check_branch
          %270 = sbr.rel (%p268) target = $region32
        $region31: #{tpu_custom_call.1} parent=11 // pred_region
          _
        $region32: #{tpu_custom_call.1} parent=11 // pred_fallthru
          _
        // Predicated region
        $region33: #{tpu_custom_call.1} parent=11 // pred_check
          %p271 = pneg %p173
        $region34: #{tpu_custom_call.1} parent=11 // pred_check_branch
          %273 = sbr.rel (%p271) target = $region36
        $region35: #{tpu_custom_call.1} parent=11 // pred_region
          _
        $region36: #{tpu_custom_call.1} parent=11 // pred_fallthru
          _
        // Predicated region
        $region37: #{tpu_custom_call.1} parent=11 // pred_check
          %p274 = pneg %p194
        $region38: #{tpu_custom_call.1} parent=11 // pred_check_branch
          %276 = sbr.rel (%p274) target = $region40
        $region39: #{tpu_custom_call.1} parent=11 // pred_region
          _
        $region40: #{tpu_custom_call.1} parent=11 // pred_fallthru
          _
        // Predicated region
        $region41: #{tpu_custom_call.1} parent=11 // pred_check
          %p277 = pneg %p215
        $region42: #{tpu_custom_call.1} parent=11 // pred_check_branch
          %279 = sbr.rel (%p277) target = $region44
        $region43: #{tpu_custom_call.1} parent=11 // pred_region
          _
        $region44: #{tpu_custom_call.1} parent=11 // pred_fallthru
          _
      $region12: #{tpu_custom_call.1} parent=5 // pred_fallthru
        _
      %p280 = scmp.lt.s32.totalorder %s21, 4
      // Predicated region
      $region45: #{tpu_custom_call.1} parent=5 // pred_check
        %p281 = pneg %p280
      $region46: #{tpu_custom_call.1} parent=5 // pred_check_branch
        %283 = sbr.rel (%p281) target = $region48
      $region47: #{tpu_custom_call.1} parent=5 // pred_region
        // Predicated region
        $region49: #{tpu_custom_call.1} parent=47 // pred_check
          %p284 = pneg %p41
        $region50: #{tpu_custom_call.1} parent=47 // pred_check_branch
          %286 = sbr.rel (%p284) target = $region52
        $region51: #{tpu_custom_call.1} parent=47 // pred_region
          %s287 = sand.u32 %s31, 1
          %s288 = scalar_lea.sflag [#allocation3], %s287
          %s289 = sand.u32 %s31, 1
          %s290 = smul.addr %s289, 128
          %s291 = scalar_lea.vmem [#allocation2], %s290
          %s292 = smul.u32 16, %s21
          %s294 = ssub.s32 2048, 2048
          %295 = vsyncadd %s288, %s294
          %s296 = smul.addr %s292, 128
          %s297 = scalar_lea.hbm %s0, %s296
          %s298 = sshll.u32 %s291, 4
          %s299 = int_to_ptr.vmem [resolvable:$true] %s298
          %304 = dma.hbm_to_vmem [thread:$0]  %s297, 2048, %s299, %s288, 128, 128, 8
        $region52: #{tpu_custom_call.1} parent=47 // pred_fallthru
          _
      $region48: #{tpu_custom_call.1} parent=5 // pred_fallthru
        _
      %p305 = scmp.le.s32.totalorder 1, %s21
      %p306 = scmp.lt.s32.totalorder %s21, 5
      %p307 = pnand %p305, %p306
      %p308 = pneg %p307
      // Predicated region
      $region53: #{tpu_custom_call.1} parent=5 // pred_check
        _
      $region54: #{tpu_custom_call.1} parent=5 // pred_check_branch
        %310 = sbr.rel (%p307) target = $region56
      $region55: #{tpu_custom_call.1} parent=5 // pred_region
        %s311 = ssub.s32 %s21, 1
        %s312 = sand.u32 %s34, 1
        %s313 = scalar_lea.sflag [#allocation3], %s312
        %s314 = sand.u32 %s34, 1
        %s315 = smul.addr %s314, 128
        %s316 = scalar_lea.vmem [#allocation2], %s315
        // Predicated region
        $region57: #{tpu_custom_call.1} parent=55 // pred_check
          %p317 = pneg %p47
        $region58: #{tpu_custom_call.1} parent=55 // pred_check_branch
          %319 = sbr.rel (%p317) target = $region60
        $region59: #{tpu_custom_call.1} parent=55 // pred_region
          %320 = dma.done %s313, 2048
        $region60: #{tpu_custom_call.1} parent=55 // pred_fallthru
          _
        %s321 = sand.u32 %s34, 1
        %s322 = scalar_lea.sflag [#allocation3], %s321
        %s323 = sand.u32 %s34, 1
        %s324 = smul.addr %s323, 128
        %s325 = scalar_lea.vmem [#allocation2], %s324
        %p326 = pneg %p47
        %p327 = pneg %p44
        %p328 = pneg %p68
        %p329 = pneg %p65
        %p330 = pneg %p89
        %p331 = pneg %p86
        %p332 = pneg %p110
        %p333 = pneg %p107
        %p334 = pneg %p131
        %p335 = pneg %p128
        %p336 = pneg %p152
        %p337 = pneg %p149
        %p338 = pneg %p173
        %p339 = pneg %p170
        %p340 = pneg %p194
        %p341 = pneg %p191
        %p342 = pneg %p215
        %p343 = pneg %p212
        %p344 = pneg %p241
        %p345 = pneg %p238
        %s346 = sand.u32 %s228, 1
        %s347 = scalar_lea.sflag [#allocation4], %s346
        %s348 = sand.u32 %s228, 1
        %s349 = smul.addr %s348, 128
        %s350 = scalar_lea.vmem [#allocation5], %s349
        %s351 = smul.u32 16, %s26
        %s352 = smul.u32 16, %s26
        %v354 = vld [vmem:[%s5] sm:$0x3f]
        %v355 = vld [vmem:[%s316] sm:$0xff]
        %v356 = vld [vmem:[%s316 + $0x8] sm:$0xff]
        %v357 = vld [vmem:[%s316 + $0x10] sm:$0xff]
        %v358 = vld [vmem:[%s316 + $0x18] sm:$0xff]
        %v359 = vld [vmem:[%s316 + $0x20] sm:$0xff]
        %v360 = vld [vmem:[%s316 + $0x28] sm:$0xff]
        %v361 = vld [vmem:[%s316 + $0x30] sm:$0xff]
        %v362 = vld [vmem:[%s316 + $0x38] sm:$0xff]
        %v363 = vld [vmem:[%s316 + $0x40] sm:$0xff]
        %v364 = vld [vmem:[%s316 + $0x48] sm:$0xff]
        %v365 = vld [vmem:[%s316 + $0x50] sm:$0xff]
        %v366 = vld [vmem:[%s316 + $0x58] sm:$0xff]
        %v367 = vld [vmem:[%s316 + $0x60] sm:$0xff]
        %v368 = vld [vmem:[%s316 + $0x68] sm:$0xff]
        %v369 = vld [vmem:[%s316 + $0x70] sm:$0xff]
        %v370 = vld [vmem:[%s316 + $0x78] sm:$0xff]
        %vm371 = vcmask 523264
        %v372 = vsel %vm371, %v355, 0.0
        %373 = vadd.xlane.f32.xlu0 %v372
        %v374 = vpop.xlane.xlu0 %373
        %v375 = vsel %vm371, %v356, 0.0
        %376 = vadd.xlane.f32.xlu0 %v375
        %v377 = vpop.xlane.xlu0 %376
        %v378 = vsel %vm371, %v357, 0.0
        %379 = vadd.xlane.f32.xlu0 %v378
        %v380 = vpop.xlane.xlu0 %379
        %v381 = vsel %vm371, %v358, 0.0
        %382 = vadd.xlane.f32.xlu0 %v381
        %v383 = vpop.xlane.xlu0 %382
        %v384 = vsel %vm371, %v359, 0.0
        %385 = vadd.xlane.f32.xlu0 %v384
        %v386 = vpop.xlane.xlu0 %385
        %v387 = vsel %vm371, %v360, 0.0
        %388 = vadd.xlane.f32.xlu0 %v387
        %v389 = vpop.xlane.xlu0 %388
        %v390 = vsel %vm371, %v361, 0.0
        %391 = vadd.xlane.f32.xlu0 %v390
        %v392 = vpop.xlane.xlu0 %391
        %v393 = vsel %vm371, %v362, 0.0
        %394 = vadd.xlane.f32.xlu0 %v393
        %v395 = vpop.xlane.xlu0 %394
        %v396 = vsel %vm371, %v363, 0.0
        %397 = vadd.xlane.f32.xlu0 %v396
        %v398 = vpop.xlane.xlu0 %397
        %v399 = vsel %vm371, %v364, 0.0
        %400 = vadd.xlane.f32.xlu0 %v399
        %v401 = vpop.xlane.xlu0 %400
        %v402 = vsel %vm371, %v365, 0.0
        %403 = vadd.xlane.f32.xlu0 %v402
        %v404 = vpop.xlane.xlu0 %403
        %v405 = vsel %vm371, %v366, 0.0
        %406 = vadd.xlane.f32.xlu0 %v405
        %v407 = vpop.xlane.xlu0 %406
        %v408 = vsel %vm371, %v367, 0.0
        %409 = vadd.xlane.f32.xlu0 %v408
        %v410 = vpop.xlane.xlu0 %409
        %v411 = vsel %vm371, %v368, 0.0
        %412 = vadd.xlane.f32.xlu0 %v411
        %v413 = vpop.xlane.xlu0 %412
        %v414 = vsel %vm371, %v369, 0.0
        %415 = vadd.xlane.f32.xlu0 %v414
        %v416 = vpop.xlane.xlu0 %415
        %v417 = vsel %vm371, %v370, 0.0
        %418 = vadd.xlane.f32.xlu0 %v417
        %v419 = vpop.xlane.xlu0 %418
        %v420 = vrcp.pop 64.0
        %v421 = vmul.f32 %v374, %v420
        %v422 = vmul.f32 %v377, %v420
        %v423 = vmul.f32 %v380, %v420
        %v424 = vmul.f32 %v383, %v420
        %v425 = vmul.f32 %v386, %v420
        %v426 = vmul.f32 %v389, %v420
        %v427 = vmul.f32 %v392, %v420
        %v428 = vmul.f32 %v395, %v420
        %v429 = vmul.f32 %v398, %v420
        %v430 = vmul.f32 %v401, %v420
        %v431 = vmul.f32 %v404, %v420
        %v432 = vmul.f32 %v407, %v420
        %v433 = vmul.f32 %v410, %v420
        %v434 = vmul.f32 %v413, %v420
        %v435 = vmul.f32 %v416, %v420
        %v436 = vmul.f32 %v419, %v420
        %v437 = vsub.f32 %v355, %v421
        %v438 = vsub.f32 %v356, %v422
        %v439 = vsub.f32 %v357, %v423
        %v440 = vsub.f32 %v358, %v424
        %v441 = vsub.f32 %v359, %v425
        %v442 = vsub.f32 %v360, %v426
        %v443 = vsub.f32 %v361, %v427
        %v444 = vsub.f32 %v362, %v428
        %v445 = vsub.f32 %v363, %v429
        %v446 = vsub.f32 %v364, %v430
        %v447 = vsub.f32 %v365, %v431
        %v448 = vsub.f32 %v366, %v432
        %v449 = vsub.f32 %v367, %v433
        %v450 = vsub.f32 %v368, %v434
        %v451 = vsub.f32 %v369, %v435
        %v452 = vsub.f32 %v370, %v436
        %v453 = vmul.f32 %v437, %v437
        %v454 = vmul.f32 %v438, %v438
        %v455 = vmul.f32 %v439, %v439
        %v456 = vmul.f32 %v440, %v440
        %v457 = vmul.f32 %v441, %v441
        %v458 = vmul.f32 %v442, %v442
        %v459 = vmul.f32 %v443, %v443
        %v460 = vmul.f32 %v444, %v444
        %v461 = vmul.f32 %v445, %v445
        %v462 = vmul.f32 %v446, %v446
        %v463 = vmul.f32 %v447, %v447
        %v464 = vmul.f32 %v448, %v448
        %v465 = vmul.f32 %v449, %v449
        %v466 = vmul.f32 %v450, %v450
        %v467 = vmul.f32 %v451, %v451
        %v468 = vmul.f32 %v452, %v452
        %v469 = vsel %vm371, %v453, 0.0
        %470 = vadd.xlane.f32.xlu0 %v469
        %v471 = vpop.xlane.xlu0 %470
        %v472 = vsel %vm371, %v454, 0.0
        %473 = vadd.xlane.f32.xlu0 %v472
        %v474 = vpop.xlane.xlu0 %473
        %v475 = vsel %vm371, %v455, 0.0
        %476 = vadd.xlane.f32.xlu0 %v475
        %v477 = vpop.xlane.xlu0 %476
        %v478 = vsel %vm371, %v456, 0.0
        %479 = vadd.xlane.f32.xlu0 %v478
        %v480 = vpop.xlane.xlu0 %479
        %v481 = vsel %vm371, %v457, 0.0
        %482 = vadd.xlane.f32.xlu0 %v481
        %v483 = vpop.xlane.xlu0 %482
        %v484 = vsel %vm371, %v458, 0.0
        %485 = vadd.xlane.f32.xlu0 %v484
        %v486 = vpop.xlane.xlu0 %485
        %v487 = vsel %vm371, %v459, 0.0
        %488 = vadd.xlane.f32.xlu0 %v487
        %v489 = vpop.xlane.xlu0 %488
        %v490 = vsel %vm371, %v460, 0.0
        %491 = vadd.xlane.f32.xlu0 %v490
        %v492 = vpop.xlane.xlu0 %491
        %v493 = vsel %vm371, %v461, 0.0
        %494 = vadd.xlane.f32.xlu0 %v493
        %v495 = vpop.xlane.xlu0 %494
        %v496 = vsel %vm371, %v462, 0.0
        %497 = vadd.xlane.f32.xlu0 %v496
        %v498 = vpop.xlane.xlu0 %497
        %v499 = vsel %vm371, %v463, 0.0
        %500 = vadd.xlane.f32.xlu0 %v499
        %v501 = vpop.xlane.xlu0 %500
        %v502 = vsel %vm371, %v464, 0.0
        %503 = vadd.xlane.f32.xlu0 %v502
        %v504 = vpop.xlane.xlu0 %503
        %v505 = vsel %vm371, %v465, 0.0
        %506 = vadd.xlane.f32.xlu0 %v505
        %v507 = vpop.xlane.xlu0 %506
        %v508 = vsel %vm371, %v466, 0.0
        %509 = vadd.xlane.f32.xlu0 %v508
        %v510 = vpop.xlane.xlu0 %509
        %v511 = vsel %vm371, %v467, 0.0
        %512 = vadd.xlane.f32.xlu0 %v511
        %v513 = vpop.xlane.xlu0 %512
        %v514 = vsel %vm371, %v468, 0.0
        %515 = vadd.xlane.f32.xlu0 %v514
        %v516 = vpop.xlane.xlu0 %515
        %v517 = vmul.f32 %v471, %v420
        %v518 = vmul.f32 %v474, %v420
        %v519 = vmul.f32 %v477, %v420
        %v520 = vmul.f32 %v480, %v420
        %v521 = vmul.f32 %v483, %v420
        %v522 = vmul.f32 %v486, %v420
        %v523 = vmul.f32 %v489, %v420
        %v524 = vmul.f32 %v492, %v420
        %v525 = vmul.f32 %v495, %v420
        %v526 = vmul.f32 %v498, %v420
        %v527 = vmul.f32 %v501, %v420
        %v528 = vmul.f32 %v504, %v420
        %v529 = vmul.f32 %v507, %v420
        %v530 = vmul.f32 %v510, %v420
        %v531 = vmul.f32 %v513, %v420
        %v532 = vmul.f32 %v516, %v420
        %v533 = vadd.f32 %v517, 1e-05
        %v534 = vadd.f32 %v518, 1e-05
        %v535 = vadd.f32 %v519, 1e-05
        %v536 = vadd.f32 %v520, 1e-05
        %v537 = vadd.f32 %v521, 1e-05
        %v538 = vadd.f32 %v522, 1e-05
        %v539 = vadd.f32 %v523, 1e-05
        %v540 = vadd.f32 %v524, 1e-05
        %v541 = vadd.f32 %v525, 1e-05
        %v542 = vadd.f32 %v526, 1e-05
        %v543 = vadd.f32 %v527, 1e-05
        %v544 = vadd.f32 %v528, 1e-05
        %v545 = vadd.f32 %v529, 1e-05
        %v546 = vadd.f32 %v530, 1e-05
        %v547 = vadd.f32 %v531, 1e-05
        %v548 = vadd.f32 %v532, 1e-05
        %v549 = vrsqrt.pop %v533
        %v550 = vrsqrt.pop %v534
        %v551 = vrsqrt.pop %v535
        %v552 = vrsqrt.pop %v536
        %v553 = vrsqrt.pop %v537
        %v554 = vrsqrt.pop %v538
        %v555 = vrsqrt.pop %v539
        %v556 = vrsqrt.pop %v540
        %v557 = vrsqrt.pop %v541
        %v558 = vrsqrt.pop %v542
        %v559 = vrsqrt.pop %v543
        %v560 = vrsqrt.pop %v544
        %v561 = vrsqrt.pop %v545
        %v562 = vrsqrt.pop %v546
        %v563 = vrsqrt.pop %v547
        %v564 = vrsqrt.pop %v548
        %v565 = vmul.f32 %v437, %v549
        %v566 = vmul.f32 %v438, %v550
        %v567 = vmul.f32 %v439, %v551
        %v568 = vmul.f32 %v440, %v552
        %v569 = vmul.f32 %v441, %v553
        %v570 = vmul.f32 %v442, %v554
        %v571 = vmul.f32 %v443, %v555
        %v572 = vmul.f32 %v444, %v556
        %v573 = vmul.f32 %v445, %v557
        %v574 = vmul.f32 %v446, %v558
        %v575 = vmul.f32 %v447, %v559
        %v576 = vmul.f32 %v448, %v560
        %v577 = vmul.f32 %v449, %v561
        %v578 = vmul.f32 %v450, %v562
        %v579 = vmul.f32 %v451, %v563
        %v580 = vmul.f32 %v452, %v564
        %v581 = vlaneseq
        %v582 = vshrl.u32 %v581, 7
        %v583 = vsub.s32 0, %v582
        %v584 = vrot.slane %v354, %v583
        %v585 = vmul.f32 %v565, %v584
        %v586 = vmul.f32 %v566, %v584
        %v587 = vmul.f32 %v567, %v584
        %v588 = vmul.f32 %v568, %v584
        %v589 = vmul.f32 %v569, %v584
        %v590 = vmul.f32 %v570, %v584
        %v591 = vmul.f32 %v571, %v584
        %v592 = vmul.f32 %v572, %v584
        %v593 = vmul.f32 %v573, %v584
        %v594 = vmul.f32 %v574, %v584
        %v595 = vmul.f32 %v575, %v584
        %v596 = vmul.f32 %v576, %v584
        %v597 = vmul.f32 %v577, %v584
        %v598 = vmul.f32 %v578, %v584
        %v599 = vmul.f32 %v579, %v584
        %v600 = vmul.f32 %v580, %v584
        %v601 = vlaneseq
        %v602 = vshrl.u32 %v601, 7
        %v603 = vsub.s32 1, %v602
        %v604 = vrot.slane %v354, %v603
        %v605 = vadd.f32 %v585, %v604
        %v606 = vadd.f32 %v586, %v604
        %v607 = vadd.f32 %v587, %v604
        %v608 = vadd.f32 %v588, %v604
        %v609 = vadd.f32 %v589, %v604
        %v610 = vadd.f32 %v590, %v604
        %v611 = vadd.f32 %v591, %v604
        %v612 = vadd.f32 %v592, %v604
        %v613 = vadd.f32 %v593, %v604
        %v614 = vadd.f32 %v594, %v604
        %v615 = vadd.f32 %v595, %v604
        %v616 = vadd.f32 %v596, %v604
        %v617 = vadd.f32 %v597, %v604
        %v618 = vadd.f32 %v598, %v604
        %v619 = vadd.f32 %v599, %v604
        %v620 = vadd.f32 %v600, %v604
        %v621 = vpack.c.bf16 %v606, %v605
        %v622 = vpack.c.bf16 %v608, %v607
        %v623 = vpack.c.bf16 %v610, %v609
        %v624 = vpack.c.bf16 %v612, %v611
        %v625 = vpack.c.bf16 %v614, %v613
        %v626 = vpack.c.bf16 %v616, %v615
        %v627 = vpack.c.bf16 %v618, %v617
        %v628 = vpack.c.bf16 %v620, %v619
        %v629 = vld [vmem:[%s1] sm:$0xff]
        %v630 = vld [vmem:[%s1 + $0x8] sm:$0xff]
        %v631 = vld [vmem:[%s1 + $0x10] sm:$0xff]
        %v632 = vld [vmem:[%s1 + $0x18] sm:$0xff]
        %v633 = vld [vmem:[%s1 + $0x20] sm:$0xff]
        %v634 = vld [vmem:[%s1 + $0x28] sm:$0xff]
        %v635 = vld [vmem:[%s1 + $0x30] sm:$0xff]
        %v636 = vld [vmem:[%s1 + $0x38] sm:$0xff]
        %v645 = vunpack.c.l.b16 %v629
        %v646 = vunpack.c.h.b16 %v629
        %v647 = vunpack.c.l.b16 %v630
        %v648 = vunpack.c.h.b16 %v630
        %v649 = vunpack.c.l.b16 %v631
        %v650 = vunpack.c.h.b16 %v631
        %v651 = vunpack.c.l.b16 %v632
        %v652 = vunpack.c.h.b16 %v632
        %v653 = vunpack.c.l.b16 %v633
        %v654 = vunpack.c.h.b16 %v633
        %v655 = vunpack.c.l.b16 %v634
        %v656 = vunpack.c.h.b16 %v634
        %v657 = vunpack.c.l.b16 %v635
        %v658 = vunpack.c.h.b16 %v635
        %v659 = vunpack.c.l.b16 %v636
        %v660 = vunpack.c.h.b16 %v636
        %v661 = vpack.c.b16 %v647, %v645
        %v662 = vpack.c.b16 %v648, %v646
        %v663 = vpack.c.b16 %v651, %v649
        %v664 = vpack.c.b16 %v652, %v650
        %v665 = vpack.c.b16 %v655, %v653
        %v666 = vpack.c.b16 %v656, %v654
        %v667 = vpack.c.b16 %v659, %v657
        %v668 = vpack.c.b16 %v660, %v658
        %v678 = vsel %vm371, %v621, 0
        %v681 = vsel %vm371, %v622, 0
        %v684 = vsel %vm371, %v623, 0
        %v687 = vsel %vm371, %v624, 0
        %v690 = vsel %vm371, %v625, 0
        %v693 = vsel %vm371, %v626, 0
        %v696 = vsel %vm371, %v627, 0
        %v699 = vsel %vm371, %v628, 0
        %701 = vmatprep.subr.bf16.mxu0 %v662
        %702 = vmatpush1.bf16.msra.mxu0 %v661
        %703 = vmatprep.subr.bf16.mxu0 %v664
        %704 = vmatpush1.bf16.msra.mxu0 %v663
        %705 = vmatprep.subr.bf16.mxu0 %v666
        %706 = vmatpush1.bf16.msra.mxu0 %v665
        %707 = vmatprep.subr.bf16.mxu0 %v668
        %708 = vmatpush1.bf16.msra.mxu0 %v667
        %709 = vmatprep.subr.bf16.mxu0 0
        %710 = vmatpush1.bf16.msra.mxu0 0
        %711 = vmatprep.subr.bf16.mxu0 0
        %712 = vmatpush1.bf16.msra.mxu0 0
        %713 = vmatprep.subr.bf16.mxu0 0
        %714 = vmatpush1.bf16.msra.mxu0 0
        %715 = vmatprep.subr.bf16.mxu0 0
        %716 = vmatpush1.bf16.msra.mxu0 0
        %717 = vmatprep.subr.bf16.mxu0 0
        %718 = vmatpush1.bf16.msra.mxu0 0
        %719 = vmatprep.subr.bf16.mxu0 0
        %720 = vmatpush1.bf16.msra.mxu0 0
        %721 = vmatprep.subr.bf16.mxu0 0
        %722 = vmatpush1.bf16.msra.mxu0 0
        %723 = vmatprep.subr.bf16.mxu0 0
        %724 = vmatpush1.bf16.msra.mxu0 0
        %725 = vmatprep.subr.bf16.mxu0 0
        %726 = vmatpush1.bf16.msra.mxu0 0
        %727 = vmatprep.subr.bf16.mxu0 0
        %728 = vmatpush1.bf16.msra.mxu0 0
        %729 = vmatprep.subr.bf16.mxu0 0
        %730 = vmatpush1.bf16.msra.mxu0 0
        %731 = vmatprep.subr.bf16.mxu0 0
        %732 = vmatpush1.bf16.msra.mxu0 0
        %733 = vmatprep.mubr.bf16.mxu0 0
        %734 = vmatmul.mubr.bf16.gmra.mrb[0].mxu0 %v678
        %v735 = vpop.f32.mrb[0].mxu0
        %v736 = vadd.f32 0.0, %v735
        %v737 = vpop.f32.mrb[0].mxu0
        %v738 = vadd.f32 0.0, %v737
        %v739 = vpop.f32.mrb[0].mxu0
        %v740 = vadd.f32 0.0, %v739
        %v741 = vpop.f32.mrb[0].mxu0
        %v742 = vadd.f32 0.0, %v741
        %743 = vmatprep.mubr.bf16.mxu0 0
        %744 = vmatmul.mubr.bf16.gmra.mrb[0].mxu0 %v681
        %v745 = vpop.f32.mrb[0].mxu0
        %v746 = vadd.f32 0.0, %v745
        %v747 = vpop.f32.mrb[0].mxu0
        %v748 = vadd.f32 0.0, %v747
        %v749 = vpop.f32.mrb[0].mxu0
        %v750 = vadd.f32 0.0, %v749
        %v751 = vpop.f32.mrb[0].mxu0
        %v752 = vadd.f32 0.0, %v751
        %753 = vmatprep.mubr.bf16.mxu0 0
        %754 = vmatmul.mubr.bf16.gmra.mrb[0].mxu0 %v684
        %v755 = vpop.f32.mrb[0].mxu0
        %v756 = vadd.f32 0.0, %v755
        %v757 = vpop.f32.mrb[0].mxu0
        %v758 = vadd.f32 0.0, %v757
        %v759 = vpop.f32.mrb[0].mxu0
        %v760 = vadd.f32 0.0, %v759
        %v761 = vpop.f32.mrb[0].mxu0
        %v762 = vadd.f32 0.0, %v761
        %763 = vmatprep.mubr.bf16.mxu0 0
        %764 = vmatmul.mubr.bf16.gmra.mrb[0].mxu0 %v687
        %v765 = vpop.f32.mrb[0].mxu0
        %v766 = vadd.f32 0.0, %v765
        %v767 = vpop.f32.mrb[0].mxu0
        %v768 = vadd.f32 0.0, %v767
        %v769 = vpop.f32.mrb[0].mxu0
        %v770 = vadd.f32 0.0, %v769
        %v771 = vpop.f32.mrb[0].mxu0
        %v772 = vadd.f32 0.0, %v771
        %773 = vmatprep.mubr.bf16.mxu0 0
        %774 = vmatmul.mubr.bf16.gmra.mrb[0].mxu0 %v690
        %v775 = vpop.f32.mrb[0].mxu0
        %v776 = vadd.f32 0.0, %v775
        %v777 = vpop.f32.mrb[0].mxu0
        %v778 = vadd.f32 0.0, %v777
        %v779 = vpop.f32.mrb[0].mxu0
        %v780 = vadd.f32 0.0, %v779
        %v781 = vpop.f32.mrb[0].mxu0
        %v782 = vadd.f32 0.0, %v781
        %783 = vmatprep.mubr.bf16.mxu0 0
        %784 = vmatmul.mubr.bf16.gmra.mrb[0].mxu0 %v693
        %v785 = vpop.f32.mrb[0].mxu0
        %v786 = vadd.f32 0.0, %v785
        %v787 = vpop.f32.mrb[0].mxu0
        %v788 = vadd.f32 0.0, %v787
        %v789 = vpop.f32.mrb[0].mxu0
        %v790 = vadd.f32 0.0, %v789
        %v791 = vpop.f32.mrb[0].mxu0
        %v792 = vadd.f32 0.0, %v791
        %793 = vmatprep.mubr.bf16.mxu0 0
        %794 = vmatmul.mubr.bf16.gmra.mrb[0].mxu0 %v696
        %v795 = vpop.f32.mrb[0].mxu0
        %v796 = vadd.f32 0.0, %v795
        %v797 = vpop.f32.mrb[0].mxu0
        %v798 = vadd.f32 0.0, %v797
        %v799 = vpop.f32.mrb[0].mxu0
        %v800 = vadd.f32 0.0, %v799
        %v801 = vpop.f32.mrb[0].mxu0
        %v802 = vadd.f32 0.0, %v801
        %803 = vmatprep.mubr.bf16.mxu0 0
        %804 = vmatmul.mubr.bf16.gmra.mrb[0].mxu0 %v699
        %v805 = vpop.f32.mrb[0].mxu0
        %v806 = vadd.f32 0.0, %v805
        %v807 = vpop.f32.mrb[0].mxu0
        %v808 = vadd.f32 0.0, %v807
        %v809 = vpop.f32.mrb[0].mxu0
        %v810 = vadd.f32 0.0, %v809
        %v811 = vpop.f32.mrb[0].mxu0
        %v812 = vadd.f32 0.0, %v811
        %813 = vdwg.mxu0
        %v814 = vld [vmem:[%s7] sm:$0xf]
        %v815 = vld [vmem:[%s7 + $0x4] sm:$0xf]
        %v816 = vld [vmem:[%s7 + $0x8] sm:$0xf]
        %v817 = vld [vmem:[%s7 + $0xc] sm:$0xf]
        %v818 = vld [vmem:[%s7 + $0x10] sm:$0xf]
        %v819 = vld [vmem:[%s7 + $0x14] sm:$0xf]
        %v820 = vld [vmem:[%s7 + $0x18] sm:$0xf]
        %v821 = vld [vmem:[%s7 + $0x1c] sm:$0xf]
        %v822 = vld [vmem:[%s7 + $0x20] sm:$0xf]
        %v823 = vld [vmem:[%s7 + $0x24] sm:$0xf]
        %v824 = vld [vmem:[%s7 + $0x28] sm:$0xf]
        %v825 = vld [vmem:[%s7 + $0x2c] sm:$0xf]
        %v826 = vld [vmem:[%s7 + $0x30] sm:$0xf]
        %v827 = vld [vmem:[%s7 + $0x34] sm:$0xf]
        %v828 = vld [vmem:[%s7 + $0x38] sm:$0xf]
        %v829 = vld [vmem:[%s7 + $0x3c] sm:$0xf]
        %v830 = vld [vmem:[%s7 + $0x40] sm:$0xf]
        %v831 = vld [vmem:[%s7 + $0x44] sm:$0xf]
        %v832 = vld [vmem:[%s7 + $0x48] sm:$0xf]
        %v833 = vld [vmem:[%s7 + $0x4c] sm:$0xf]
        %v834 = vld [vmem:[%s7 + $0x50] sm:$0xf]
        %v835 = vld [vmem:[%s7 + $0x54] sm:$0xf]
        %v836 = vld [vmem:[%s7 + $0x58] sm:$0xf]
        %v837 = vld [vmem:[%s7 + $0x5c] sm:$0xf]
        %v838 = vld [vmem:[%s7 + $0x60] sm:$0xf]
        %v839 = vld [vmem:[%s7 + $0x64] sm:$0xf]
        %v840 = vld [vmem:[%s7 + $0x68] sm:$0xf]
        %v841 = vld [vmem:[%s7 + $0x6c] sm:$0xf]
        %v842 = vld [vmem:[%s7 + $0x70] sm:$0xf]
        %v843 = vld [vmem:[%s7 + $0x74] sm:$0xf]
        %v844 = vld [vmem:[%s7 + $0x78] sm:$0xf]
        %v845 = vld [vmem:[%s7 + $0x7c] sm:$0xf]
        %v846 = vpack.c.bf16 %v740, %v736
        %v847 = vpack.c.bf16 %v750, %v746
        %v848 = vpack.c.bf16 %v760, %v756
        %v849 = vpack.c.bf16 %v770, %v766
        %v850 = vpack.c.bf16 %v780, %v776
        %v851 = vpack.c.bf16 %v790, %v786
        %v852 = vpack.c.bf16 %v800, %v796
        %v853 = vpack.c.bf16 %v810, %v806
        %v862 = vunpack.c.l.b16 %v846
        %v863 = vunpack.c.h.b16 %v846
        %v864 = vunpack.c.l.b16 %v847
        %v865 = vunpack.c.h.b16 %v847
        %v866 = vunpack.c.l.b16 %v848
        %v867 = vunpack.c.h.b16 %v848
        %v868 = vunpack.c.l.b16 %v849
        %v869 = vunpack.c.h.b16 %v849
        %v870 = vunpack.c.l.b16 %v850
        %v871 = vunpack.c.h.b16 %v850
        %v872 = vunpack.c.l.b16 %v851
        %v873 = vunpack.c.h.b16 %v851
        %v874 = vunpack.c.l.b16 %v852
        %v875 = vunpack.c.h.b16 %v852
        %v876 = vunpack.c.l.b16 %v853
        %v877 = vunpack.c.h.b16 %v853
        %v878 = vpack.c.b16 %v862, %v862
        %v879 = vpack.c.b16 %v863, %v863
        %v880 = vpack.c.b16 %v864, %v864
        %v881 = vpack.c.b16 %v865, %v865
        %v882 = vpack.c.b16 %v866, %v866
        %v883 = vpack.c.b16 %v867, %v867
        %v884 = vpack.c.b16 %v868, %v868
        %v885 = vpack.c.b16 %v869, %v869
        %v886 = vpack.c.b16 %v870, %v870
        %v887 = vpack.c.b16 %v871, %v871
        %v888 = vpack.c.b16 %v872, %v872
        %v889 = vpack.c.b16 %v873, %v873
        %v890 = vpack.c.b16 %v874, %v874
        %v891 = vpack.c.b16 %v875, %v875
        %v892 = vpack.c.b16 %v876, %v876
        %v893 = vpack.c.b16 %v877, %v877
        %942 = vrot.lane.b32.xlu0 %v814, 64
        %v943 = vpop.permute.xlu0 %942
        %944 = vrot.lane.b32.xlu0 %v815, 64
        %v945 = vpop.permute.xlu0 %944
        %946 = vrot.lane.b32.xlu0 %v816, 64
        %v947 = vpop.permute.xlu0 %946
        %948 = vrot.lane.b32.xlu0 %v817, 64
        %v949 = vpop.permute.xlu0 %948
        %950 = vrot.lane.b32.xlu0 %v818, 64
        %v951 = vpop.permute.xlu0 %950
        %952 = vrot.lane.b32.xlu0 %v819, 64
        %v953 = vpop.permute.xlu0 %952
        %954 = vrot.lane.b32.xlu0 %v820, 64
        %v955 = vpop.permute.xlu0 %954
        %956 = vrot.lane.b32.xlu0 %v821, 64
        %v957 = vpop.permute.xlu0 %956
        %958 = vrot.lane.b32.xlu0 %v822, 64
        %v959 = vpop.permute.xlu0 %958
        %960 = vrot.lane.b32.xlu0 %v823, 64
        %v961 = vpop.permute.xlu0 %960
        %962 = vrot.lane.b32.xlu0 %v824, 64
        %v963 = vpop.permute.xlu0 %962
        %964 = vrot.lane.b32.xlu0 %v825, 64
        %v965 = vpop.permute.xlu0 %964
        %966 = vrot.lane.b32.xlu0 %v826, 64
        %v967 = vpop.permute.xlu0 %966
        %968 = vrot.lane.b32.xlu0 %v827, 64
        %v969 = vpop.permute.xlu0 %968
        %970 = vrot.lane.b32.xlu0 %v828, 64
        %v971 = vpop.permute.xlu0 %970
        %972 = vrot.lane.b32.xlu0 %v829, 64
        %v973 = vpop.permute.xlu0 %972
        %974 = vrot.lane.b32.xlu0 %v830, 64
        %v975 = vpop.permute.xlu0 %974
        %976 = vrot.lane.b32.xlu0 %v831, 64
        %v977 = vpop.permute.xlu0 %976
        %978 = vrot.lane.b32.xlu0 %v832, 64
        %v979 = vpop.permute.xlu0 %978
        %980 = vrot.lane.b32.xlu0 %v833, 64
        %v981 = vpop.permute.xlu0 %980
        %982 = vrot.lane.b32.xlu0 %v834, 64
        %v983 = vpop.permute.xlu0 %982
        %984 = vrot.lane.b32.xlu0 %v835, 64
        %v985 = vpop.permute.xlu0 %984
        %986 = vrot.lane.b32.xlu0 %v836, 64
        %v987 = vpop.permute.xlu0 %986
        %988 = vrot.lane.b32.xlu0 %v837, 64
        %v989 = vpop.permute.xlu0 %988
        %990 = vrot.lane.b32.xlu0 %v838, 64
        %v991 = vpop.permute.xlu0 %990
        %992 = vrot.lane.b32.xlu0 %v839, 64
        %v993 = vpop.permute.xlu0 %992
        %994 = vrot.lane.b32.xlu0 %v840, 64
        %v995 = vpop.permute.xlu0 %994
        %996 = vrot.lane.b32.xlu0 %v841, 64
        %v997 = vpop.permute.xlu0 %996
        %998 = vrot.lane.b32.xlu0 %v842, 64
        %v999 = vpop.permute.xlu0 %998
        %1000 = vrot.lane.b32.xlu0 %v843, 64
        %v1001 = vpop.permute.xlu0 %1000
        %1002 = vrot.lane.b32.xlu0 %v844, 64
        %v1003 = vpop.permute.xlu0 %1002
        %1004 = vrot.lane.b32.xlu0 %v845, 64
        %v1005 = vpop.permute.xlu0 %1004
        %v1038 = vmul.bf16 %v878, %v943
        %v1039 = vmul.bf16 %v878, %v945
        %v1040 = vmul.bf16 %v878, %v947
        %v1041 = vmul.bf16 %v878, %v949
        %v1042 = vmul.bf16 %v878, %v951
        %v1043 = vmul.bf16 %v878, %v953
        %v1044 = vmul.bf16 %v878, %v955
        %v1045 = vmul.bf16 %v878, %v957
        %v1046 = vmul.bf16 %v879, %v959
        %v1047 = vmul.bf16 %v879, %v961
        %v1048 = vmul.bf16 %v879, %v963
        %v1049 = vmul.bf16 %v879, %v965
        %v1050 = vmul.bf16 %v879, %v967
        %v1051 = vmul.bf16 %v879, %v969
        %v1052 = vmul.bf16 %v879, %v971
        %v1053 = vmul.bf16 %v879, %v973
        %v1054 = vmul.bf16 %v880, %v975
        %v1055 = vmul.bf16 %v880, %v977
        %v1056 = vmul.bf16 %v880, %v979
        %v1057 = vmul.bf16 %v880, %v981
        %v1058 = vmul.bf16 %v880, %v983
        %v1059 = vmul.bf16 %v880, %v985
        %v1060 = vmul.bf16 %v880, %v987
        %v1061 = vmul.bf16 %v880, %v989
        %v1062 = vmul.bf16 %v881, %v991
        %v1063 = vmul.bf16 %v881, %v993
        %v1064 = vmul.bf16 %v881, %v995
        %v1065 = vmul.bf16 %v881, %v997
        %v1066 = vmul.bf16 %v881, %v999
        %v1067 = vmul.bf16 %v881, %v1001
        %v1068 = vmul.bf16 %v881, %v1003
        %v1069 = vmul.bf16 %v881, %v1005
        %v1070 = vmul.bf16 %v882, %v943
        %v1071 = vmul.bf16 %v882, %v945
        %v1072 = vmul.bf16 %v882, %v947
        %v1073 = vmul.bf16 %v882, %v949
        %v1074 = vmul.bf16 %v882, %v951
        %v1075 = vmul.bf16 %v882, %v953
        %v1076 = vmul.bf16 %v882, %v955
        %v1077 = vmul.bf16 %v882, %v957
        %v1078 = vmul.bf16 %v883, %v959
        %v1079 = vmul.bf16 %v883, %v961
        %v1080 = vmul.bf16 %v883, %v963
        %v1081 = vmul.bf16 %v883, %v965
        %v1082 = vmul.bf16 %v883, %v967
        %v1083 = vmul.bf16 %v883, %v969
        %v1084 = vmul.bf16 %v883, %v971
        %v1085 = vmul.bf16 %v883, %v973
        %v1086 = vmul.bf16 %v884, %v975
        %v1087 = vmul.bf16 %v884, %v977
        %v1088 = vmul.bf16 %v884, %v979
        %v1089 = vmul.bf16 %v884, %v981
        %v1090 = vmul.bf16 %v884, %v983
        %v1091 = vmul.bf16 %v884, %v985
        %v1092 = vmul.bf16 %v884, %v987
        %v1093 = vmul.bf16 %v884, %v989
        %v1094 = vmul.bf16 %v885, %v991
        %v1095 = vmul.bf16 %v885, %v993
        %v1096 = vmul.bf16 %v885, %v995
        %v1097 = vmul.bf16 %v885, %v997
        %v1098 = vmul.bf16 %v885, %v999
        %v1099 = vmul.bf16 %v885, %v1001
        %v1100 = vmul.bf16 %v885, %v1003
        %v1101 = vmul.bf16 %v885, %v1005
        %v1102 = vmul.bf16 %v886, %v943
        %v1103 = vmul.bf16 %v886, %v945
        %v1104 = vmul.bf16 %v886, %v947
        %v1105 = vmul.bf16 %v886, %v949
        %v1106 = vmul.bf16 %v886, %v951
        %v1107 = vmul.bf16 %v886, %v953
        %v1108 = vmul.bf16 %v886, %v955
        %v1109 = vmul.bf16 %v886, %v957
        %v1110 = vmul.bf16 %v887, %v959
        %v1111 = vmul.bf16 %v887, %v961
        %v1112 = vmul.bf16 %v887, %v963
        %v1113 = vmul.bf16 %v887, %v965
        %v1114 = vmul.bf16 %v887, %v967
        %v1115 = vmul.bf16 %v887, %v969
        %v1116 = vmul.bf16 %v887, %v971
        %v1117 = vmul.bf16 %v887, %v973
        %v1118 = vmul.bf16 %v888, %v975
        %v1119 = vmul.bf16 %v888, %v977
        %v1120 = vmul.bf16 %v888, %v979
        %v1121 = vmul.bf16 %v888, %v981
        %v1122 = vmul.bf16 %v888, %v983
        %v1123 = vmul.bf16 %v888, %v985
        %v1124 = vmul.bf16 %v888, %v987
        %v1125 = vmul.bf16 %v888, %v989
        %v1126 = vmul.bf16 %v889, %v991
        %v1127 = vmul.bf16 %v889, %v993
        %v1128 = vmul.bf16 %v889, %v995
        %v1129 = vmul.bf16 %v889, %v997
        %v1130 = vmul.bf16 %v889, %v999
        %v1131 = vmul.bf16 %v889, %v1001
        %v1132 = vmul.bf16 %v889, %v1003
        %v1133 = vmul.bf16 %v889, %v1005
        %v1134 = vmul.bf16 %v890, %v943
        %v1135 = vmul.bf16 %v890, %v945
        %v1136 = vmul.bf16 %v890, %v947
        %v1137 = vmul.bf16 %v890, %v949
        %v1138 = vmul.bf16 %v890, %v951
        %v1139 = vmul.bf16 %v890, %v953
        %v1140 = vmul.bf16 %v890, %v955
        %v1141 = vmul.bf16 %v890, %v957
        %v1142 = vmul.bf16 %v891, %v959
        %v1143 = vmul.bf16 %v891, %v961
        %v1144 = vmul.bf16 %v891, %v963
        %v1145 = vmul.bf16 %v891, %v965
        %v1146 = vmul.bf16 %v891, %v967
        %v1147 = vmul.bf16 %v891, %v969
        %v1148 = vmul.bf16 %v891, %v971
        %v1149 = vmul.bf16 %v891, %v973
        %v1150 = vmul.bf16 %v892, %v975
        %v1151 = vmul.bf16 %v892, %v977
        %v1152 = vmul.bf16 %v892, %v979
        %v1153 = vmul.bf16 %v892, %v981
        %v1154 = vmul.bf16 %v892, %v983
        %v1155 = vmul.bf16 %v892, %v985
        %v1156 = vmul.bf16 %v892, %v987
        %v1157 = vmul.bf16 %v892, %v989
        %v1158 = vmul.bf16 %v893, %v991
        %v1159 = vmul.bf16 %v893, %v993
        %v1160 = vmul.bf16 %v893, %v995
        %v1161 = vmul.bf16 %v893, %v997
        %v1162 = vmul.bf16 %v893, %v999
        %v1163 = vmul.bf16 %v893, %v1001
        %v1164 = vmul.bf16 %v893, %v1003
        %v1165 = vmul.bf16 %v893, %v1005
        %v1166 = vpack.c.bf16 %v742, %v738
        %v1167 = vpack.c.bf16 %v752, %v748
        %v1168 = vpack.c.bf16 %v762, %v758
        %v1169 = vpack.c.bf16 %v772, %v768
        %v1170 = vpack.c.bf16 %v782, %v778
        %v1171 = vpack.c.bf16 %v792, %v788
        %v1172 = vpack.c.bf16 %v802, %v798
        %v1173 = vpack.c.bf16 %v812, %v808
        %v1182 = vunpack.c.l.b16 %v1166
        %v1183 = vunpack.c.h.b16 %v1166
        %v1184 = vunpack.c.l.b16 %v1167
        %v1185 = vunpack.c.h.b16 %v1167
        %v1186 = vunpack.c.l.b16 %v1168
        %v1187 = vunpack.c.h.b16 %v1168
        %v1188 = vunpack.c.l.b16 %v1169
        %v1189 = vunpack.c.h.b16 %v1169
        %v1190 = vunpack.c.l.b16 %v1170
        %v1191 = vunpack.c.h.b16 %v1170
        %v1192 = vunpack.c.l.b16 %v1171
        %v1193 = vunpack.c.h.b16 %v1171
        %v1194 = vunpack.c.l.b16 %v1172
        %v1195 = vunpack.c.h.b16 %v1172
        %v1196 = vunpack.c.l.b16 %v1173
        %v1197 = vunpack.c.h.b16 %v1173
        %v1198 = vpack.c.b16 %v1182, %v1182
        %v1199 = vpack.c.b16 %v1183, %v1183
        %v1200 = vpack.c.b16 %v1184, %v1184
        %v1201 = vpack.c.b16 %v1185, %v1185
        %v1202 = vpack.c.b16 %v1186, %v1186
        %v1203 = vpack.c.b16 %v1187, %v1187
        %v1204 = vpack.c.b16 %v1188, %v1188
        %v1205 = vpack.c.b16 %v1189, %v1189
        %v1206 = vpack.c.b16 %v1190, %v1190
        %v1207 = vpack.c.b16 %v1191, %v1191
        %v1208 = vpack.c.b16 %v1192, %v1192
        %v1209 = vpack.c.b16 %v1193, %v1193
        %v1210 = vpack.c.b16 %v1194, %v1194
        %v1211 = vpack.c.b16 %v1195, %v1195
        %v1212 = vpack.c.b16 %v1196, %v1196
        %v1213 = vpack.c.b16 %v1197, %v1197
        %v1230 = vmul.bf16 %v1198, %v814
        %v1231 = vmul.bf16 %v1198, %v815
        %v1232 = vmul.bf16 %v1198, %v816
        %v1233 = vmul.bf16 %v1198, %v817
        %v1234 = vmul.bf16 %v1198, %v818
        %v1235 = vmul.bf16 %v1198, %v819
        %v1236 = vmul.bf16 %v1198, %v820
        %v1237 = vmul.bf16 %v1198, %v821
        %v1238 = vmul.bf16 %v1199, %v822
        %v1239 = vmul.bf16 %v1199, %v823
        %v1240 = vmul.bf16 %v1199, %v824
        %v1241 = vmul.bf16 %v1199, %v825
        %v1242 = vmul.bf16 %v1199, %v826
        %v1243 = vmul.bf16 %v1199, %v827
        %v1244 = vmul.bf16 %v1199, %v828
        %v1245 = vmul.bf16 %v1199, %v829
        %v1246 = vmul.bf16 %v1200, %v830
        %v1247 = vmul.bf16 %v1200, %v831
        %v1248 = vmul.bf16 %v1200, %v832
        %v1249 = vmul.bf16 %v1200, %v833
        %v1250 = vmul.bf16 %v1200, %v834
        %v1251 = vmul.bf16 %v1200, %v835
        %v1252 = vmul.bf16 %v1200, %v836
        %v1253 = vmul.bf16 %v1200, %v837
        %v1254 = vmul.bf16 %v1201, %v838
        %v1255 = vmul.bf16 %v1201, %v839
        %v1256 = vmul.bf16 %v1201, %v840
        %v1257 = vmul.bf16 %v1201, %v841
        %v1258 = vmul.bf16 %v1201, %v842
        %v1259 = vmul.bf16 %v1201, %v843
        %v1260 = vmul.bf16 %v1201, %v844
        %v1261 = vmul.bf16 %v1201, %v845
        %v1262 = vmul.bf16 %v1202, %v814
        %v1263 = vmul.bf16 %v1202, %v815
        %v1264 = vmul.bf16 %v1202, %v816
        %v1265 = vmul.bf16 %v1202, %v817
        %v1266 = vmul.bf16 %v1202, %v818
        %v1267 = vmul.bf16 %v1202, %v819
        %v1268 = vmul.bf16 %v1202, %v820
        %v1269 = vmul.bf16 %v1202, %v821
        %v1270 = vmul.bf16 %v1203, %v822
        %v1271 = vmul.bf16 %v1203, %v823
        %v1272 = vmul.bf16 %v1203, %v824
        %v1273 = vmul.bf16 %v1203, %v825
        %v1274 = vmul.bf16 %v1203, %v826
        %v1275 = vmul.bf16 %v1203, %v827
        %v1276 = vmul.bf16 %v1203, %v828
        %v1277 = vmul.bf16 %v1203, %v829
        %v1278 = vmul.bf16 %v1204, %v830
        %v1279 = vmul.bf16 %v1204, %v831
        %v1280 = vmul.bf16 %v1204, %v832
        %v1281 = vmul.bf16 %v1204, %v833
        %v1282 = vmul.bf16 %v1204, %v834
        %v1283 = vmul.bf16 %v1204, %v835
        %v1284 = vmul.bf16 %v1204, %v836
        %v1285 = vmul.bf16 %v1204, %v837
        %v1286 = vmul.bf16 %v1205, %v838
        %v1287 = vmul.bf16 %v1205, %v839
        %v1288 = vmul.bf16 %v1205, %v840
        %v1289 = vmul.bf16 %v1205, %v841
        %v1290 = vmul.bf16 %v1205, %v842
        %v1291 = vmul.bf16 %v1205, %v843
        %v1292 = vmul.bf16 %v1205, %v844
        %v1293 = vmul.bf16 %v1205, %v845
        %v1294 = vmul.bf16 %v1206, %v814
        %v1295 = vmul.bf16 %v1206, %v815
        %v1296 = vmul.bf16 %v1206, %v816
        %v1297 = vmul.bf16 %v1206, %v817
        %v1298 = vmul.bf16 %v1206, %v818
        %v1299 = vmul.bf16 %v1206, %v819
        %v1300 = vmul.bf16 %v1206, %v820
        %v1301 = vmul.bf16 %v1206, %v821
        %v1302 = vmul.bf16 %v1207, %v822
        %v1303 = vmul.bf16 %v1207, %v823
        %v1304 = vmul.bf16 %v1207, %v824
        %v1305 = vmul.bf16 %v1207, %v825
        %v1306 = vmul.bf16 %v1207, %v826
        %v1307 = vmul.bf16 %v1207, %v827
        %v1308 = vmul.bf16 %v1207, %v828
        %v1309 = vmul.bf16 %v1207, %v829
        %v1310 = vmul.bf16 %v1208, %v830
        %v1311 = vmul.bf16 %v1208, %v831
        %v1312 = vmul.bf16 %v1208, %v832
        %v1313 = vmul.bf16 %v1208, %v833
        %v1314 = vmul.bf16 %v1208, %v834
        %v1315 = vmul.bf16 %v1208, %v835
        %v1316 = vmul.bf16 %v1208, %v836
        %v1317 = vmul.bf16 %v1208, %v837
        %v1318 = vmul.bf16 %v1209, %v838
        %v1319 = vmul.bf16 %v1209, %v839
        %v1320 = vmul.bf16 %v1209, %v840
        %v1321 = vmul.bf16 %v1209, %v841
        %v1322 = vmul.bf16 %v1209, %v842
        %v1323 = vmul.bf16 %v1209, %v843
        %v1324 = vmul.bf16 %v1209, %v844
        %v1325 = vmul.bf16 %v1209, %v845
        %v1326 = vmul.bf16 %v1210, %v814
        %v1327 = vmul.bf16 %v1210, %v815
        %v1328 = vmul.bf16 %v1210, %v816
        %v1329 = vmul.bf16 %v1210, %v817
        %v1330 = vmul.bf16 %v1210, %v818
        %v1331 = vmul.bf16 %v1210, %v819
        %v1332 = vmul.bf16 %v1210, %v820
        %v1333 = vmul.bf16 %v1210, %v821
        %v1334 = vmul.bf16 %v1211, %v822
        %v1335 = vmul.bf16 %v1211, %v823
        %v1336 = vmul.bf16 %v1211, %v824
        %v1337 = vmul.bf16 %v1211, %v825
        %v1338 = vmul.bf16 %v1211, %v826
        %v1339 = vmul.bf16 %v1211, %v827
        %v1340 = vmul.bf16 %v1211, %v828
        %v1341 = vmul.bf16 %v1211, %v829
        %v1342 = vmul.bf16 %v1212, %v830
        %v1343 = vmul.bf16 %v1212, %v831
        %v1344 = vmul.bf16 %v1212, %v832
        %v1345 = vmul.bf16 %v1212, %v833
        %v1346 = vmul.bf16 %v1212, %v834
        %v1347 = vmul.bf16 %v1212, %v835
        %v1348 = vmul.bf16 %v1212, %v836
        %v1349 = vmul.bf16 %v1212, %v837
        %v1350 = vmul.bf16 %v1213, %v838
        %v1351 = vmul.bf16 %v1213, %v839
        %v1352 = vmul.bf16 %v1213, %v840
        %v1353 = vmul.bf16 %v1213, %v841
        %v1354 = vmul.bf16 %v1213, %v842
        %v1355 = vmul.bf16 %v1213, %v843
        %v1356 = vmul.bf16 %v1213, %v844
        %v1357 = vmul.bf16 %v1213, %v845
        %v1358 = vld [vmem:[%s8] sm:$0xff]
        %v1359 = vld [vmem:[%s8 + $0x8] sm:$0xff]
        %v1360 = vld [vmem:[%s8 + $0x10] sm:$0xff]
        %v1361 = vld [vmem:[%s8 + $0x18] sm:$0xff]
        %v1362 = vld [vmem:[%s8 + $0x20] sm:$0xff]
        %v1363 = vld [vmem:[%s8 + $0x28] sm:$0xff]
        %v1364 = vld [vmem:[%s8 + $0x30] sm:$0xff]
        %v1365 = vld [vmem:[%s8 + $0x38] sm:$0xff]
        %v1398 = vunpack.c.l.b16 %v1038
        %v1399 = vunpack.c.l.b16 %v1039
        %v1400 = vunpack.c.l.b16 %v1040
        %v1401 = vunpack.c.l.b16 %v1041
        %v1402 = vunpack.c.l.b16 %v1042
        %v1403 = vunpack.c.l.b16 %v1043
        %v1404 = vunpack.c.l.b16 %v1044
        %v1405 = vunpack.c.l.b16 %v1045
        %v1406 = vunpack.c.l.b16 %v1046
        %v1407 = vunpack.c.l.b16 %v1047
        %v1408 = vunpack.c.l.b16 %v1048
        %v1409 = vunpack.c.l.b16 %v1049
        %v1410 = vunpack.c.l.b16 %v1050
        %v1411 = vunpack.c.l.b16 %v1051
        %v1412 = vunpack.c.l.b16 %v1052
        %v1413 = vunpack.c.l.b16 %v1053
        %v1414 = vunpack.c.l.b16 %v1054
        %v1415 = vunpack.c.l.b16 %v1055
        %v1416 = vunpack.c.l.b16 %v1056
        %v1417 = vunpack.c.l.b16 %v1057
        %v1418 = vunpack.c.l.b16 %v1058
        %v1419 = vunpack.c.l.b16 %v1059
        %v1420 = vunpack.c.l.b16 %v1060
        %v1421 = vunpack.c.l.b16 %v1061
        %v1422 = vunpack.c.l.b16 %v1062
        %v1423 = vunpack.c.l.b16 %v1063
        %v1424 = vunpack.c.l.b16 %v1064
        %v1425 = vunpack.c.l.b16 %v1065
        %v1426 = vunpack.c.l.b16 %v1066
        %v1427 = vunpack.c.l.b16 %v1067
        %v1428 = vunpack.c.l.b16 %v1068
        %v1429 = vunpack.c.l.b16 %v1069
        %v1430 = vpack.c.b16 %v1399, %v1398
        %v1431 = vpack.c.b16 %v1401, %v1400
        %v1432 = vpack.c.b16 %v1403, %v1402
        %v1433 = vpack.c.b16 %v1405, %v1404
        %v1434 = vpack.c.b16 %v1407, %v1406
        %v1435 = vpack.c.b16 %v1409, %v1408
        %v1436 = vpack.c.b16 %v1411, %v1410
        %v1437 = vpack.c.b16 %v1413, %v1412
        %v1438 = vpack.c.b16 %v1415, %v1414
        %v1439 = vpack.c.b16 %v1417, %v1416
        %v1440 = vpack.c.b16 %v1419, %v1418
        %v1441 = vpack.c.b16 %v1421, %v1420
        %v1442 = vpack.c.b16 %v1423, %v1422
        %v1443 = vpack.c.b16 %v1425, %v1424
        %v1444 = vpack.c.b16 %v1427, %v1426
        %v1445 = vpack.c.b16 %v1429, %v1428
        %1446 = vrot.lane.b32.xlu0 %v1430, 64
        %v1447 = vpop.permute.xlu0 %1446
        %1448 = vrot.lane.b32.xlu0 %v1431, 64
        %v1449 = vpop.permute.xlu0 %1448
        %1450 = vrot.lane.b32.xlu0 %v1432, 64
        %v1451 = vpop.permute.xlu0 %1450
        %1452 = vrot.lane.b32.xlu0 %v1433, 64
        %v1453 = vpop.permute.xlu0 %1452
        %1454 = vrot.lane.b32.xlu0 %v1434, 64
        %v1455 = vpop.permute.xlu0 %1454
        %1456 = vrot.lane.b32.xlu0 %v1435, 64
        %v1457 = vpop.permute.xlu0 %1456
        %1458 = vrot.lane.b32.xlu0 %v1436, 64
        %v1459 = vpop.permute.xlu0 %1458
        %1460 = vrot.lane.b32.xlu0 %v1437, 64
        %v1461 = vpop.permute.xlu0 %1460
        %1462 = vrot.lane.b32.xlu0 %v1438, 64
        %v1463 = vpop.permute.xlu0 %1462
        %1464 = vrot.lane.b32.xlu0 %v1439, 64
        %v1465 = vpop.permute.xlu0 %1464
        %1466 = vrot.lane.b32.xlu0 %v1440, 64
        %v1467 = vpop.permute.xlu0 %1466
        %1468 = vrot.lane.b32.xlu0 %v1441, 64
        %v1469 = vpop.permute.xlu0 %1468
        %1470 = vrot.lane.b32.xlu0 %v1442, 64
        %v1471 = vpop.permute.xlu0 %1470
        %1472 = vrot.lane.b32.xlu0 %v1443, 64
        %v1473 = vpop.permute.xlu0 %1472
        %1474 = vrot.lane.b32.xlu0 %v1444, 64
        %v1475 = vpop.permute.xlu0 %1474
        %1476 = vrot.lane.b32.xlu0 %v1445, 64
        %v1477 = vpop.permute.xlu0 %1476
        %v1479 = vsel %vm371, %v846, 0
        %v1482 = vsel %vm371, %v847, 0
        %v1485 = vsel %vm371, %v1447, 0
        %v1488 = vsel %vm371, %v1449, 0
        %v1491 = vsel %vm371, %v1451, 0
        %v1494 = vsel %vm371, %v1453, 0
        %v1497 = vsel %vm371, %v1455, 0
        %v1500 = vsel %vm371, %v1457, 0
        %v1503 = vsel %vm371, %v1459, 0
        %v1506 = vsel %vm371, %v1461, 0
        %v1509 = vsel %vm371, %v1463, 0
        %v1512 = vsel %vm371, %v1465, 0
        %v1515 = vsel %vm371, %v1467, 0
        %v1518 = vsel %vm371, %v1469, 0
        %v1521 = vsel %vm371, %v1471, 0
        %v1524 = vsel %vm371, %v1473, 0
        %v1527 = vsel %vm371, %v1475, 0
        %v1530 = vsel %vm371, %v1477, 0
        %1532 = vmatprep.subr.bf16.mxu0 0
        %1533 = vmatpush1.bf16.xpose.msra.mxu0 %v1485
        %1534 = vmatprep.subr.bf16.mxu0 0
        %1535 = vmatpush1.bf16.xpose.msra.mxu0 %v1488
        %1536 = vmatprep.subr.bf16.mxu0 0
        %1537 = vmatpush1.bf16.xpose.msra.mxu0 %v1491
        %1538 = vmatprep.subr.bf16.mxu0 0
        %1539 = vmatpush1.bf16.xpose.msra.mxu0 %v1494
        %1540 = vmatprep.subr.bf16.mxu0 0
        %1541 = vmatpush1.bf16.xpose.msra.mxu0 %v1497
        %1542 = vmatprep.subr.bf16.mxu0 0
        %1543 = vmatpush1.bf16.xpose.msra.mxu0 %v1500
        %1544 = vmatprep.subr.bf16.mxu0 0
        %1545 = vmatpush1.bf16.xpose.msra.mxu0 %v1503
        %1546 = vmatprep.subr.bf16.mxu0 0
        %1547 = vmatpush1.bf16.xpose.msra.mxu0 %v1506
        %1548 = vmatprep.subr.bf16.mxu0 0
        %1549 = vmatpush1.bf16.xpose.msra.mxu0 %v1509
        %1550 = vmatprep.subr.bf16.mxu0 0
        %1551 = vmatpush1.bf16.xpose.msra.mxu0 %v1512
        %1552 = vmatprep.subr.bf16.mxu0 0
        %1553 = vmatpush1.bf16.xpose.msra.mxu0 %v1515
        %1554 = vmatprep.subr.bf16.mxu0 0
        %1555 = vmatpush1.bf16.xpose.msra.mxu0 %v1518
        %1556 = vmatprep.subr.bf16.mxu0 0
        %1557 = vmatpush1.bf16.xpose.msra.mxu0 %v1521
        %1558 = vmatprep.subr.bf16.mxu0 0
        %1559 = vmatpush1.bf16.xpose.msra.mxu0 %v1524
        %1560 = vmatprep.subr.bf16.mxu0 0
        %1561 = vmatpush1.bf16.xpose.msra.mxu0 %v1527
        %1562 = vmatprep.subr.bf16.mxu0 0
        %1563 = vmatpush1.bf16.xpose.msra.mxu0 %v1530
        %1564 = vmatprep.mubr.bf16.mxu0 0
        %1565 = vmatmul.mubr.bf16.gmra.mrb[0].mxu0 %v1479
        %v1566 = vpop.f32.mrb[0].mxu0
        %v1567 = vadd.f32 %v1358, %v1566
        %v1568 = vpop.f32.mrb[0].mxu0
        %v1569 = vadd.f32 %v1359, %v1568
        %v1570 = vpop.f32.mrb[0].mxu0
        %v1571 = vadd.f32 %v1360, %v1570
        %v1572 = vpop.f32.mrb[0].mxu0
        %v1573 = vadd.f32 %v1361, %v1572
        %1574 = vmatprep.mubr.bf16.mxu0 0
        %1575 = vmatmul.mubr.bf16.gmra.mrb[0].mxu0 %v1482
        %v1576 = vpop.f32.mrb[0].mxu0
        %v1577 = vadd.f32 %v1362, %v1576
        %v1578 = vpop.f32.mrb[0].mxu0
        %v1579 = vadd.f32 %v1363, %v1578
        %v1580 = vpop.f32.mrb[0].mxu0
        %v1581 = vadd.f32 %v1364, %v1580
        %v1582 = vpop.f32.mrb[0].mxu0
        %v1583 = vadd.f32 %v1365, %v1582
        %1584 = vdwg.mxu0
        %v1617 = vunpack.c.l.b16 %v1070
        %v1618 = vunpack.c.l.b16 %v1071
        %v1619 = vunpack.c.l.b16 %v1072
        %v1620 = vunpack.c.l.b16 %v1073
        %v1621 = vunpack.c.l.b16 %v1074
        %v1622 = vunpack.c.l.b16 %v1075
        %v1623 = vunpack.c.l.b16 %v1076
        %v1624 = vunpack.c.l.b16 %v1077
        %v1625 = vunpack.c.l.b16 %v1078
        %v1626 = vunpack.c.l.b16 %v1079
        %v1627 = vunpack.c.l.b16 %v1080
        %v1628 = vunpack.c.l.b16 %v1081
        %v1629 = vunpack.c.l.b16 %v1082
        %v1630 = vunpack.c.l.b16 %v1083
        %v1631 = vunpack.c.l.b16 %v1084
        %v1632 = vunpack.c.l.b16 %v1085
        %v1633 = vunpack.c.l.b16 %v1086
        %v1634 = vunpack.c.l.b16 %v1087
        %v1635 = vunpack.c.l.b16 %v1088
        %v1636 = vunpack.c.l.b16 %v1089
        %v1637 = vunpack.c.l.b16 %v1090
        %v1638 = vunpack.c.l.b16 %v1091
        %v1639 = vunpack.c.l.b16 %v1092
        %v1640 = vunpack.c.l.b16 %v1093
        %v1641 = vunpack.c.l.b16 %v1094
        %v1642 = vunpack.c.l.b16 %v1095
        %v1643 = vunpack.c.l.b16 %v1096
        %v1644 = vunpack.c.l.b16 %v1097
        %v1645 = vunpack.c.l.b16 %v1098
        %v1646 = vunpack.c.l.b16 %v1099
        %v1647 = vunpack.c.l.b16 %v1100
        %v1648 = vunpack.c.l.b16 %v1101
        %v1649 = vpack.c.b16 %v1618, %v1617
        %v1650 = vpack.c.b16 %v1620, %v1619
        %v1651 = vpack.c.b16 %v1622, %v1621
        %v1652 = vpack.c.b16 %v1624, %v1623
        %v1653 = vpack.c.b16 %v1626, %v1625
        %v1654 = vpack.c.b16 %v1628, %v1627
        %v1655 = vpack.c.b16 %v1630, %v1629
        %v1656 = vpack.c.b16 %v1632, %v1631
        %v1657 = vpack.c.b16 %v1634, %v1633
        %v1658 = vpack.c.b16 %v1636, %v1635
        %v1659 = vpack.c.b16 %v1638, %v1637
        %v1660 = vpack.c.b16 %v1640, %v1639
        %v1661 = vpack.c.b16 %v1642, %v1641
        %v1662 = vpack.c.b16 %v1644, %v1643
        %v1663 = vpack.c.b16 %v1646, %v1645
        %v1664 = vpack.c.b16 %v1648, %v1647
        %1665 = vrot.lane.b32.xlu0 %v1649, 64
        %v1666 = vpop.permute.xlu0 %1665
        %1667 = vrot.lane.b32.xlu0 %v1650, 64
        %v1668 = vpop.permute.xlu0 %1667
        %1669 = vrot.lane.b32.xlu0 %v1651, 64
        %v1670 = vpop.permute.xlu0 %1669
        %1671 = vrot.lane.b32.xlu0 %v1652, 64
        %v1672 = vpop.permute.xlu0 %1671
        %1673 = vrot.lane.b32.xlu0 %v1653, 64
        %v1674 = vpop.permute.xlu0 %1673
        %1675 = vrot.lane.b32.xlu0 %v1654, 64
        %v1676 = vpop.permute.xlu0 %1675
        %1677 = vrot.lane.b32.xlu0 %v1655, 64
        %v1678 = vpop.permute.xlu0 %1677
        %1679 = vrot.lane.b32.xlu0 %v1656, 64
        %v1680 = vpop.permute.xlu0 %1679
        %1681 = vrot.lane.b32.xlu0 %v1657, 64
        %v1682 = vpop.permute.xlu0 %1681
        %1683 = vrot.lane.b32.xlu0 %v1658, 64
        %v1684 = vpop.permute.xlu0 %1683
        %1685 = vrot.lane.b32.xlu0 %v1659, 64
        %v1686 = vpop.permute.xlu0 %1685
        %1687 = vrot.lane.b32.xlu0 %v1660, 64
        %v1688 = vpop.permute.xlu0 %1687
        %1689 = vrot.lane.b32.xlu0 %v1661, 64
        %v1690 = vpop.permute.xlu0 %1689
        %1691 = vrot.lane.b32.xlu0 %v1662, 64
        %v1692 = vpop.permute.xlu0 %1691
        %1693 = vrot.lane.b32.xlu0 %v1663, 64
        %v1694 = vpop.permute.xlu0 %1693
        %1695 = vrot.lane.b32.xlu0 %v1664, 64
        %v1696 = vpop.permute.xlu0 %1695
        %v1698 = vsel %vm371, %v848, 0
        %v1701 = vsel %vm371, %v849, 0
        %v1704 = vsel %vm371, %v1666, 0
        %v1707 = vsel %vm371, %v1668, 0
        %v1710 = vsel %vm371, %v1670, 0
        %v1713 = vsel %vm371, %v1672, 0
        %v1716 = vsel %vm371, %v1674, 0
        %v1719 = vsel %vm371, %v1676, 0
        %v1722 = vsel %vm371, %v1678, 0
        %v1725 = vsel %vm371, %v1680, 0
        %v1728 = vsel %vm371, %v1682, 0
        %v1731 = vsel %vm371, %v1684, 0
        %v1734 = vsel %vm371, %v1686, 0
        %v1737 = vsel %vm371, %v1688, 0
        %v1740 = vsel %vm371, %v1690, 0
        %v1743 = vsel %vm371, %v1692, 0
        %v1746 = vsel %vm371, %v1694, 0
        %v1749 = vsel %vm371, %v1696, 0
        %1751 = vmatprep.subr.bf16.mxu0 0
        %1752 = vmatpush1.bf16.xpose.msra.mxu0 %v1704
        %1753 = vmatprep.subr.bf16.mxu0 0
        %1754 = vmatpush1.bf16.xpose.msra.mxu0 %v1707
        %1755 = vmatprep.subr.bf16.mxu0 0
        %1756 = vmatpush1.bf16.xpose.msra.mxu0 %v1710
        %1757 = vmatprep.subr.bf16.mxu0 0
        %1758 = vmatpush1.bf16.xpose.msra.mxu0 %v1713
        %1759 = vmatprep.subr.bf16.mxu0 0
        %1760 = vmatpush1.bf16.xpose.msra.mxu0 %v1716
        %1761 = vmatprep.subr.bf16.mxu0 0
        %1762 = vmatpush1.bf16.xpose.msra.mxu0 %v1719
        %1763 = vmatprep.subr.bf16.mxu0 0
        %1764 = vmatpush1.bf16.xpose.msra.mxu0 %v1722
        %1765 = vmatprep.subr.bf16.mxu0 0
        %1766 = vmatpush1.bf16.xpose.msra.mxu0 %v1725
        %1767 = vmatprep.subr.bf16.mxu0 0
        %1768 = vmatpush1.bf16.xpose.msra.mxu0 %v1728
        %1769 = vmatprep.subr.bf16.mxu0 0
        %1770 = vmatpush1.bf16.xpose.msra.mxu0 %v1731
        %1771 = vmatprep.subr.bf16.mxu0 0
        %1772 = vmatpush1.bf16.xpose.msra.mxu0 %v1734
        %1773 = vmatprep.subr.bf16.mxu0 0
        %1774 = vmatpush1.bf16.xpose.msra.mxu0 %v1737
        %1775 = vmatprep.subr.bf16.mxu0 0
        %1776 = vmatpush1.bf16.xpose.msra.mxu0 %v1740
        %1777 = vmatprep.subr.bf16.mxu0 0
        %1778 = vmatpush1.bf16.xpose.msra.mxu0 %v1743
        %1779 = vmatprep.subr.bf16.mxu0 0
        %1780 = vmatpush1.bf16.xpose.msra.mxu0 %v1746
        %1781 = vmatprep.subr.bf16.mxu0 0
        %1782 = vmatpush1.bf16.xpose.msra.mxu0 %v1749
        %1783 = vmatprep.mubr.bf16.mxu0 0
        %1784 = vmatmul.mubr.bf16.gmra.mrb[0].mxu0 %v1698
        %v1785 = vpop.f32.mrb[0].mxu0
        %v1786 = vadd.f32 %v1358, %v1785
        %v1787 = vpop.f32.mrb[0].mxu0
        %v1788 = vadd.f32 %v1359, %v1787
        %v1789 = vpop.f32.mrb[0].mxu0
        %v1790 = vadd.f32 %v1360, %v1789
        %v1791 = vpop.f32.mrb[0].mxu0
        %v1792 = vadd.f32 %v1361, %v1791
        %1793 = vmatprep.mubr.bf16.mxu0 0
        %1794 = vmatmul.mubr.bf16.gmra.mrb[0].mxu0 %v1701
        %v1795 = vpop.f32.mrb[0].mxu0
        %v1796 = vadd.f32 %v1362, %v1795
        %v1797 = vpop.f32.mrb[0].mxu0
        %v1798 = vadd.f32 %v1363, %v1797
        %v1799 = vpop.f32.mrb[0].mxu0
        %v1800 = vadd.f32 %v1364, %v1799
        %v1801 = vpop.f32.mrb[0].mxu0
        %v1802 = vadd.f32 %v1365, %v1801
        %1803 = vdwg.mxu0
        %v1836 = vunpack.c.l.b16 %v1102
        %v1837 = vunpack.c.l.b16 %v1103
        %v1838 = vunpack.c.l.b16 %v1104
        %v1839 = vunpack.c.l.b16 %v1105
        %v1840 = vunpack.c.l.b16 %v1106
        %v1841 = vunpack.c.l.b16 %v1107
        %v1842 = vunpack.c.l.b16 %v1108
        %v1843 = vunpack.c.l.b16 %v1109
        %v1844 = vunpack.c.l.b16 %v1110
        %v1845 = vunpack.c.l.b16 %v1111
        %v1846 = vunpack.c.l.b16 %v1112
        %v1847 = vunpack.c.l.b16 %v1113
        %v1848 = vunpack.c.l.b16 %v1114
        %v1849 = vunpack.c.l.b16 %v1115
        %v1850 = vunpack.c.l.b16 %v1116
        %v1851 = vunpack.c.l.b16 %v1117
        %v1852 = vunpack.c.l.b16 %v1118
        %v1853 = vunpack.c.l.b16 %v1119
        %v1854 = vunpack.c.l.b16 %v1120
        %v1855 = vunpack.c.l.b16 %v1121
        %v1856 = vunpack.c.l.b16 %v1122
        %v1857 = vunpack.c.l.b16 %v1123
        %v1858 = vunpack.c.l.b16 %v1124
        %v1859 = vunpack.c.l.b16 %v1125
        %v1860 = vunpack.c.l.b16 %v1126
        %v1861 = vunpack.c.l.b16 %v1127
        %v1862 = vunpack.c.l.b16 %v1128
        %v1863 = vunpack.c.l.b16 %v1129
        %v1864 = vunpack.c.l.b16 %v1130
        %v1865 = vunpack.c.l.b16 %v1131
        %v1866 = vunpack.c.l.b16 %v1132
        %v1867 = vunpack.c.l.b16 %v1133
        %v1868 = vpack.c.b16 %v1837, %v1836
        %v1869 = vpack.c.b16 %v1839, %v1838
        %v1870 = vpack.c.b16 %v1841, %v1840
        %v1871 = vpack.c.b16 %v1843, %v1842
        %v1872 = vpack.c.b16 %v1845, %v1844
        %v1873 = vpack.c.b16 %v1847, %v1846
        %v1874 = vpack.c.b16 %v1849, %v1848
        %v1875 = vpack.c.b16 %v1851, %v1850
        %v1876 = vpack.c.b16 %v1853, %v1852
        %v1877 = vpack.c.b16 %v1855, %v1854
        %v1878 = vpack.c.b16 %v1857, %v1856
        %v1879 = vpack.c.b16 %v1859, %v1858
        %v1880 = vpack.c.b16 %v1861, %v1860
        %v1881 = vpack.c.b16 %v1863, %v1862
        %v1882 = vpack.c.b16 %v1865, %v1864
        %v1883 = vpack.c.b16 %v1867, %v1866
        %1884 = vrot.lane.b32.xlu0 %v1868, 64
        %v1885 = vpop.permute.xlu0 %1884
        %1886 = vrot.lane.b32.xlu0 %v1869, 64
        %v1887 = vpop.permute.xlu0 %1886
        %1888 = vrot.lane.b32.xlu0 %v1870, 64
        %v1889 = vpop.permute.xlu0 %1888
        %1890 = vrot.lane.b32.xlu0 %v1871, 64
        %v1891 = vpop.permute.xlu0 %1890
        %1892 = vrot.lane.b32.xlu0 %v1872, 64
        %v1893 = vpop.permute.xlu0 %1892
        %1894 = vrot.lane.b32.xlu0 %v1873, 64
        %v1895 = vpop.permute.xlu0 %1894
        %1896 = vrot.lane.b32.xlu0 %v1874, 64
        %v1897 = vpop.permute.xlu0 %1896
        %1898 = vrot.lane.b32.xlu0 %v1875, 64
        %v1899 = vpop.permute.xlu0 %1898
        %1900 = vrot.lane.b32.xlu0 %v1876, 64
        %v1901 = vpop.permute.xlu0 %1900
        %1902 = vrot.lane.b32.xlu0 %v1877, 64
        %v1903 = vpop.permute.xlu0 %1902
        %1904 = vrot.lane.b32.xlu0 %v1878, 64
        %v1905 = vpop.permute.xlu0 %1904
        %1906 = vrot.lane.b32.xlu0 %v1879, 64
        %v1907 = vpop.permute.xlu0 %1906
        %1908 = vrot.lane.b32.xlu0 %v1880, 64
        %v1909 = vpop.permute.xlu0 %1908
        %1910 = vrot.lane.b32.xlu0 %v1881, 64
        %v1911 = vpop.permute.xlu0 %1910
        %1912 = vrot.lane.b32.xlu0 %v1882, 64
        %v1913 = vpop.permute.xlu0 %1912
        %1914 = vrot.lane.b32.xlu0 %v1883, 64
        %v1915 = vpop.permute.xlu0 %1914
        %v1917 = vsel %vm371, %v850, 0
        %v1920 = vsel %vm371, %v851, 0
        %v1923 = vsel %vm371, %v1885, 0
        %v1926 = vsel %vm371, %v1887, 0
        %v1929 = vsel %vm371, %v1889, 0
        %v1932 = vsel %vm371, %v1891, 0
        %v1935 = vsel %vm371, %v1893, 0
        %v1938 = vsel %vm371, %v1895, 0
        %v1941 = vsel %vm371, %v1897, 0
        %v1944 = vsel %vm371, %v1899, 0
        %v1947 = vsel %vm371, %v1901, 0
        %v1950 = vsel %vm371, %v1903, 0
        %v1953 = vsel %vm371, %v1905, 0
        %v1956 = vsel %vm371, %v1907, 0
        %v1959 = vsel %vm371, %v1909, 0
        %v1962 = vsel %vm371, %v1911, 0
        %v1965 = vsel %vm371, %v1913, 0
        %v1968 = vsel %vm371, %v1915, 0
        %1970 = vmatprep.subr.bf16.mxu0 0
        %1971 = vmatpush1.bf16.xpose.msra.mxu0 %v1923
        %1972 = vmatprep.subr.bf16.mxu0 0
        %1973 = vmatpush1.bf16.xpose.msra.mxu0 %v1926
        %1974 = vmatprep.subr.bf16.mxu0 0
        %1975 = vmatpush1.bf16.xpose.msra.mxu0 %v1929
        %1976 = vmatprep.subr.bf16.mxu0 0
        %1977 = vmatpush1.bf16.xpose.msra.mxu0 %v1932
        %1978 = vmatprep.subr.bf16.mxu0 0
        %1979 = vmatpush1.bf16.xpose.msra.mxu0 %v1935
        %1980 = vmatprep.subr.bf16.mxu0 0
        %1981 = vmatpush1.bf16.xpose.msra.mxu0 %v1938
        %1982 = vmatprep.subr.bf16.mxu0 0
        %1983 = vmatpush1.bf16.xpose.msra.mxu0 %v1941
        %1984 = vmatprep.subr.bf16.mxu0 0
        %1985 = vmatpush1.bf16.xpose.msra.mxu0 %v1944
        %1986 = vmatprep.subr.bf16.mxu0 0
        %1987 = vmatpush1.bf16.xpose.msra.mxu0 %v1947
        %1988 = vmatprep.subr.bf16.mxu0 0
        %1989 = vmatpush1.bf16.xpose.msra.mxu0 %v1950
        %1990 = vmatprep.subr.bf16.mxu0 0
        %1991 = vmatpush1.bf16.xpose.msra.mxu0 %v1953
        %1992 = vmatprep.subr.bf16.mxu0 0
        %1993 = vmatpush1.bf16.xpose.msra.mxu0 %v1956
        %1994 = vmatprep.subr.bf16.mxu0 0
        %1995 = vmatpush1.bf16.xpose.msra.mxu0 %v1959
        %1996 = vmatprep.subr.bf16.mxu0 0
        %1997 = vmatpush1.bf16.xpose.msra.mxu0 %v1962
        %1998 = vmatprep.subr.bf16.mxu0 0
        %1999 = vmatpush1.bf16.xpose.msra.mxu0 %v1965
        %2000 = vmatprep.subr.bf16.mxu0 0
        %2001 = vmatpush1.bf16.xpose.msra.mxu0 %v1968
        %2002 = vmatprep.mubr.bf16.mxu0 0
        %2003 = vmatmul.mubr.bf16.gmra.mrb[0].mxu0 %v1917
        %v2004 = vpop.f32.mrb[0].mxu0
        %v2005 = vadd.f32 %v1358, %v2004
        %v2006 = vpop.f32.mrb[0].mxu0
        %v2007 = vadd.f32 %v1359, %v2006
        %v2008 = vpop.f32.mrb[0].mxu0
        %v2009 = vadd.f32 %v1360, %v2008
        %v2010 = vpop.f32.mrb[0].mxu0
        %v2011 = vadd.f32 %v1361, %v2010
        %2012 = vmatprep.mubr.bf16.mxu0 0
        %2013 = vmatmul.mubr.bf16.gmra.mrb[0].mxu0 %v1920
        %v2014 = vpop.f32.mrb[0].mxu0
        %v2015 = vadd.f32 %v1362, %v2014
        %v2016 = vpop.f32.mrb[0].mxu0
        %v2017 = vadd.f32 %v1363, %v2016
        %v2018 = vpop.f32.mrb[0].mxu0
        %v2019 = vadd.f32 %v1364, %v2018
        %v2020 = vpop.f32.mrb[0].mxu0
        %v2021 = vadd.f32 %v1365, %v2020
        %2022 = vdwg.mxu0
        %v2055 = vunpack.c.l.b16 %v1134
        %v2056 = vunpack.c.l.b16 %v1135
        %v2057 = vunpack.c.l.b16 %v1136
        %v2058 = vunpack.c.l.b16 %v1137
        %v2059 = vunpack.c.l.b16 %v1138
        %v2060 = vunpack.c.l.b16 %v1139
        %v2061 = vunpack.c.l.b16 %v1140
        %v2062 = vunpack.c.l.b16 %v1141
        %v2063 = vunpack.c.l.b16 %v1142
        %v2064 = vunpack.c.l.b16 %v1143
        %v2065 = vunpack.c.l.b16 %v1144
        %v2066 = vunpack.c.l.b16 %v1145
        %v2067 = vunpack.c.l.b16 %v1146
        %v2068 = vunpack.c.l.b16 %v1147
        %v2069 = vunpack.c.l.b16 %v1148
        %v2070 = vunpack.c.l.b16 %v1149
        %v2071 = vunpack.c.l.b16 %v1150
        %v2072 = vunpack.c.l.b16 %v1151
        %v2073 = vunpack.c.l.b16 %v1152
        %v2074 = vunpack.c.l.b16 %v1153
        %v2075 = vunpack.c.l.b16 %v1154
        %v2076 = vunpack.c.l.b16 %v1155
        %v2077 = vunpack.c.l.b16 %v1156
        %v2078 = vunpack.c.l.b16 %v1157
        %v2079 = vunpack.c.l.b16 %v1158
        %v2080 = vunpack.c.l.b16 %v1159
        %v2081 = vunpack.c.l.b16 %v1160
        %v2082 = vunpack.c.l.b16 %v1161
        %v2083 = vunpack.c.l.b16 %v1162
        %v2084 = vunpack.c.l.b16 %v1163
        %v2085 = vunpack.c.l.b16 %v1164
        %v2086 = vunpack.c.l.b16 %v1165
        %v2087 = vpack.c.b16 %v2056, %v2055
        %v2088 = vpack.c.b16 %v2058, %v2057
        %v2089 = vpack.c.b16 %v2060, %v2059
        %v2090 = vpack.c.b16 %v2062, %v2061
        %v2091 = vpack.c.b16 %v2064, %v2063
        %v2092 = vpack.c.b16 %v2066, %v2065
        %v2093 = vpack.c.b16 %v2068, %v2067
        %v2094 = vpack.c.b16 %v2070, %v2069
        %v2095 = vpack.c.b16 %v2072, %v2071
        %v2096 = vpack.c.b16 %v2074, %v2073
        %v2097 = vpack.c.b16 %v2076, %v2075
        %v2098 = vpack.c.b16 %v2078, %v2077
        %v2099 = vpack.c.b16 %v2080, %v2079
        %v2100 = vpack.c.b16 %v2082, %v2081
        %v2101 = vpack.c.b16 %v2084, %v2083
        %v2102 = vpack.c.b16 %v2086, %v2085
        %2103 = vrot.lane.b32.xlu0 %v2087, 64
        %v2104 = vpop.permute.xlu0 %2103
        %2105 = vrot.lane.b32.xlu0 %v2088, 64
        %v2106 = vpop.permute.xlu0 %2105
        %2107 = vrot.lane.b32.xlu0 %v2089, 64
        %v2108 = vpop.permute.xlu0 %2107
        %2109 = vrot.lane.b32.xlu0 %v2090, 64
        %v2110 = vpop.permute.xlu0 %2109
        %2111 = vrot.lane.b32.xlu0 %v2091, 64
        %v2112 = vpop.permute.xlu0 %2111
        %2113 = vrot.lane.b32.xlu0 %v2092, 64
        %v2114 = vpop.permute.xlu0 %2113
        %2115 = vrot.lane.b32.xlu0 %v2093, 64
        %v2116 = vpop.permute.xlu0 %2115
        %2117 = vrot.lane.b32.xlu0 %v2094, 64
        %v2118 = vpop.permute.xlu0 %2117
        %2119 = vrot.lane.b32.xlu0 %v2095, 64
        %v2120 = vpop.permute.xlu0 %2119
        %2121 = vrot.lane.b32.xlu0 %v2096, 64
        %v2122 = vpop.permute.xlu0 %2121
        %2123 = vrot.lane.b32.xlu0 %v2097, 64
        %v2124 = vpop.permute.xlu0 %2123
        %2125 = vrot.lane.b32.xlu0 %v2098, 64
        %v2126 = vpop.permute.xlu0 %2125
        %2127 = vrot.lane.b32.xlu0 %v2099, 64
        %v2128 = vpop.permute.xlu0 %2127
        %2129 = vrot.lane.b32.xlu0 %v2100, 64
        %v2130 = vpop.permute.xlu0 %2129
        %2131 = vrot.lane.b32.xlu0 %v2101, 64
        %v2132 = vpop.permute.xlu0 %2131
        %2133 = vrot.lane.b32.xlu0 %v2102, 64
        %v2134 = vpop.permute.xlu0 %2133
        %v2136 = vsel %vm371, %v852, 0
        %v2139 = vsel %vm371, %v853, 0
        %v2142 = vsel %vm371, %v2104, 0
        %v2145 = vsel %vm371, %v2106, 0
        %v2148 = vsel %vm371, %v2108, 0
        %v2151 = vsel %vm371, %v2110, 0
        %v2154 = vsel %vm371, %v2112, 0
        %v2157 = vsel %vm371, %v2114, 0
        %v2160 = vsel %vm371, %v2116, 0
        %v2163 = vsel %vm371, %v2118, 0
        %v2166 = vsel %vm371, %v2120, 0
        %v2169 = vsel %vm371, %v2122, 0
        %v2172 = vsel %vm371, %v2124, 0
        %v2175 = vsel %vm371, %v2126, 0
        %v2178 = vsel %vm371, %v2128, 0
        %v2181 = vsel %vm371, %v2130, 0
        %v2184 = vsel %vm371, %v2132, 0
        %v2187 = vsel %vm371, %v2134, 0
        %2189 = vmatprep.subr.bf16.mxu0 0
        %2190 = vmatpush1.bf16.xpose.msra.mxu0 %v2142
        %2191 = vmatprep.subr.bf16.mxu0 0
        %2192 = vmatpush1.bf16.xpose.msra.mxu0 %v2145
        %2193 = vmatprep.subr.bf16.mxu0 0
        %2194 = vmatpush1.bf16.xpose.msra.mxu0 %v2148
        %2195 = vmatprep.subr.bf16.mxu0 0
        %2196 = vmatpush1.bf16.xpose.msra.mxu0 %v2151
        %2197 = vmatprep.subr.bf16.mxu0 0
        %2198 = vmatpush1.bf16.xpose.msra.mxu0 %v2154
        %2199 = vmatprep.subr.bf16.mxu0 0
        %2200 = vmatpush1.bf16.xpose.msra.mxu0 %v2157
        %2201 = vmatprep.subr.bf16.mxu0 0
        %2202 = vmatpush1.bf16.xpose.msra.mxu0 %v2160
        %2203 = vmatprep.subr.bf16.mxu0 0
        %2204 = vmatpush1.bf16.xpose.msra.mxu0 %v2163
        %2205 = vmatprep.subr.bf16.mxu0 0
        %2206 = vmatpush1.bf16.xpose.msra.mxu0 %v2166
        %2207 = vmatprep.subr.bf16.mxu0 0
        %2208 = vmatpush1.bf16.xpose.msra.mxu0 %v2169
        %2209 = vmatprep.subr.bf16.mxu0 0
        %2210 = vmatpush1.bf16.xpose.msra.mxu0 %v2172
        %2211 = vmatprep.subr.bf16.mxu0 0
        %2212 = vmatpush1.bf16.xpose.msra.mxu0 %v2175
        %2213 = vmatprep.subr.bf16.mxu0 0
        %2214 = vmatpush1.bf16.xpose.msra.mxu0 %v2178
        %2215 = vmatprep.subr.bf16.mxu0 0
        %2216 = vmatpush1.bf16.xpose.msra.mxu0 %v2181
        %2217 = vmatprep.subr.bf16.mxu0 0
        %2218 = vmatpush1.bf16.xpose.msra.mxu0 %v2184
        %2219 = vmatprep.subr.bf16.mxu0 0
        %2220 = vmatpush1.bf16.xpose.msra.mxu0 %v2187
        %2221 = vmatprep.mubr.bf16.mxu0 0
        %2222 = vmatmul.mubr.bf16.gmra.mrb[0].mxu0 %v2136
        %v2223 = vpop.f32.mrb[0].mxu0
        %v2224 = vadd.f32 %v1358, %v2223
        %v2225 = vpop.f32.mrb[0].mxu0
        %v2226 = vadd.f32 %v1359, %v2225
        %v2227 = vpop.f32.mrb[0].mxu0
        %v2228 = vadd.f32 %v1360, %v2227
        %v2229 = vpop.f32.mrb[0].mxu0
        %v2230 = vadd.f32 %v1361, %v2229
        %2231 = vmatprep.mubr.bf16.mxu0 0
        %2232 = vmatmul.mubr.bf16.gmra.mrb[0].mxu0 %v2139
        %v2233 = vpop.f32.mrb[0].mxu0
        %v2234 = vadd.f32 %v1362, %v2233
        %v2235 = vpop.f32.mrb[0].mxu0
        %v2236 = vadd.f32 %v1363, %v2235
        %v2237 = vpop.f32.mrb[0].mxu0
        %v2238 = vadd.f32 %v1364, %v2237
        %v2239 = vpop.f32.mrb[0].mxu0
        %v2240 = vadd.f32 %v1365, %v2239
        %2241 = vdwg.mxu0
        %v2242 = vmax.f32 %v1567, %v1569
        %2243 = vmax.xlane.f32.xlu0 %v2242
        %v2244 = vpop.xlane.xlu0 %2243
        %v2245 = vmax.f32 %v1571, %v1573
        %2246 = vmax.xlane.f32.xlu0 %v2245
        %v2247 = vpop.xlane.xlu0 %2246
        %v2248 = vmax.f32 %v1577, %v1579
        %2249 = vmax.xlane.f32.xlu0 %v2248
        %v2250 = vpop.xlane.xlu0 %2249
        %v2251 = vmax.f32 %v1581, %v1583
        %2252 = vmax.xlane.f32.xlu0 %v2251
        %v2253 = vpop.xlane.xlu0 %2252
        %v2254 = vmax.f32 %v1786, %v1788
        %2255 = vmax.xlane.f32.xlu0 %v2254
        %v2256 = vpop.xlane.xlu0 %2255
        %v2257 = vmax.f32 %v1790, %v1792
        %2258 = vmax.xlane.f32.xlu0 %v2257
        %v2259 = vpop.xlane.xlu0 %2258
        %v2260 = vmax.f32 %v1796, %v1798
        %2261 = vmax.xlane.f32.xlu0 %v2260
        %v2262 = vpop.xlane.xlu0 %2261
        %v2263 = vmax.f32 %v1800, %v1802
        %2264 = vmax.xlane.f32.xlu0 %v2263
        %v2265 = vpop.xlane.xlu0 %2264
        %v2266 = vmax.f32 %v2005, %v2007
        %2267 = vmax.xlane.f32.xlu0 %v2266
        %v2268 = vpop.xlane.xlu0 %2267
        %v2269 = vmax.f32 %v2009, %v2011
        %2270 = vmax.xlane.f32.xlu0 %v2269
        %v2271 = vpop.xlane.xlu0 %2270
        %v2272 = vmax.f32 %v2015, %v2017
        %2273 = vmax.xlane.f32.xlu0 %v2272
        %v2274 = vpop.xlane.xlu0 %2273
        %v2275 = vmax.f32 %v2019, %v2021
        %2276 = vmax.xlane.f32.xlu0 %v2275
        %v2277 = vpop.xlane.xlu0 %2276
        %v2278 = vmax.f32 %v2224, %v2226
        %2279 = vmax.xlane.f32.xlu0 %v2278
        %v2280 = vpop.xlane.xlu0 %2279
        %v2281 = vmax.f32 %v2228, %v2230
        %2282 = vmax.xlane.f32.xlu0 %v2281
        %v2283 = vpop.xlane.xlu0 %2282
        %v2284 = vmax.f32 %v2234, %v2236
        %2285 = vmax.xlane.f32.xlu0 %v2284
        %v2286 = vpop.xlane.xlu0 %2285
        %v2287 = vmax.f32 %v2238, %v2240
        %2288 = vmax.xlane.f32.xlu0 %v2287
        %v2289 = vpop.xlane.xlu0 %2288
        %v2290 = vsub.f32 %v1567, %v2244
        %v2291 = vsub.f32 %v1569, %v2244
        %v2292 = vsub.f32 %v1571, %v2247
        %v2293 = vsub.f32 %v1573, %v2247
        %v2294 = vsub.f32 %v1577, %v2250
        %v2295 = vsub.f32 %v1579, %v2250
        %v2296 = vsub.f32 %v1581, %v2253
        %v2297 = vsub.f32 %v1583, %v2253
        %v2298 = vsub.f32 %v1786, %v2256
        %v2299 = vsub.f32 %v1788, %v2256
        %v2300 = vsub.f32 %v1790, %v2259
        %v2301 = vsub.f32 %v1792, %v2259
        %v2302 = vsub.f32 %v1796, %v2262
        %v2303 = vsub.f32 %v1798, %v2262
        %v2304 = vsub.f32 %v1800, %v2265
        %v2305 = vsub.f32 %v1802, %v2265
        %v2306 = vsub.f32 %v2005, %v2268
        %v2307 = vsub.f32 %v2007, %v2268
        %v2308 = vsub.f32 %v2009, %v2271
        %v2309 = vsub.f32 %v2011, %v2271
        %v2310 = vsub.f32 %v2015, %v2274
        %v2311 = vsub.f32 %v2017, %v2274
        %v2312 = vsub.f32 %v2019, %v2277
        %v2313 = vsub.f32 %v2021, %v2277
        %v2314 = vsub.f32 %v2224, %v2280
        %v2315 = vsub.f32 %v2226, %v2280
        %v2316 = vsub.f32 %v2228, %v2283
        %v2317 = vsub.f32 %v2230, %v2283
        %v2318 = vsub.f32 %v2234, %v2286
        %v2319 = vsub.f32 %v2236, %v2286
        %v2320 = vsub.f32 %v2238, %v2289
        %v2321 = vsub.f32 %v2240, %v2289
        %v2322 = vmul.f32 %v2290, 1.442695
        %v2323 = vpow.pop %v2322
        %v2324 = vmul.f32 %v2291, 1.442695
        %v2325 = vpow.pop %v2324
        %v2326 = vmul.f32 %v2292, 1.442695
        %v2327 = vpow.pop %v2326
        %v2328 = vmul.f32 %v2293, 1.442695
        %v2329 = vpow.pop %v2328
        %v2330 = vmul.f32 %v2294, 1.442695
        %v2331 = vpow.pop %v2330
        %v2332 = vmul.f32 %v2295, 1.442695
        %v2333 = vpow.pop %v2332
        %v2334 = vmul.f32 %v2296, 1.442695
        %v2335 = vpow.pop %v2334
        %v2336 = vmul.f32 %v2297, 1.442695
        %v2337 = vpow.pop %v2336
        %v2338 = vmul.f32 %v2298, 1.442695
        %v2339 = vpow.pop %v2338
        %v2340 = vmul.f32 %v2299, 1.442695
        %v2341 = vpow.pop %v2340
        %v2342 = vmul.f32 %v2300, 1.442695
        %v2343 = vpow.pop %v2342
        %v2344 = vmul.f32 %v2301, 1.442695
        %v2345 = vpow.pop %v2344
        %v2346 = vmul.f32 %v2302, 1.442695
        %v2347 = vpow.pop %v2346
        %v2348 = vmul.f32 %v2303, 1.442695
        %v2349 = vpow.pop %v2348
        %v2350 = vmul.f32 %v2304, 1.442695
        %v2351 = vpow.pop %v2350
        %v2352 = vmul.f32 %v2305, 1.442695
        %v2353 = vpow.pop %v2352
        %v2354 = vmul.f32 %v2306, 1.442695
        %v2355 = vpow.pop %v2354
        %v2356 = vmul.f32 %v2307, 1.442695
        %v2357 = vpow.pop %v2356
        %v2358 = vmul.f32 %v2308, 1.442695
        %v2359 = vpow.pop %v2358
        %v2360 = vmul.f32 %v2309, 1.442695
        %v2361 = vpow.pop %v2360
        %v2362 = vmul.f32 %v2310, 1.442695
        %v2363 = vpow.pop %v2362
        %v2364 = vmul.f32 %v2311, 1.442695
        %v2365 = vpow.pop %v2364
        %v2366 = vmul.f32 %v2312, 1.442695
        %v2367 = vpow.pop %v2366
        %v2368 = vmul.f32 %v2313, 1.442695
        %v2369 = vpow.pop %v2368
        %v2370 = vmul.f32 %v2314, 1.442695
        %v2371 = vpow.pop %v2370
        %v2372 = vmul.f32 %v2315, 1.442695
        %v2373 = vpow.pop %v2372
        %v2374 = vmul.f32 %v2316, 1.442695
        %v2375 = vpow.pop %v2374
        %v2376 = vmul.f32 %v2317, 1.442695
        %v2377 = vpow.pop %v2376
        %v2378 = vmul.f32 %v2318, 1.442695
        %v2379 = vpow.pop %v2378
        %v2380 = vmul.f32 %v2319, 1.442695
        %v2381 = vpow.pop %v2380
        %v2382 = vmul.f32 %v2320, 1.442695
        %v2383 = vpow.pop %v2382
        %v2384 = vmul.f32 %v2321, 1.442695
        %v2385 = vpow.pop %v2384
        %v2386 = vpack.c.bf16 %v2327, %v2323
        %v2387 = vpack.c.bf16 %v2329, %v2325
        %v2388 = vpack.c.bf16 %v2335, %v2331
        %v2389 = vpack.c.bf16 %v2337, %v2333
        %v2390 = vpack.c.bf16 %v2343, %v2339
        %v2391 = vpack.c.bf16 %v2345, %v2341
        %v2392 = vpack.c.bf16 %v2351, %v2347
        %v2393 = vpack.c.bf16 %v2353, %v2349
        %v2394 = vpack.c.bf16 %v2359, %v2355
        %v2395 = vpack.c.bf16 %v2361, %v2357
        %v2396 = vpack.c.bf16 %v2367, %v2363
        %v2397 = vpack.c.bf16 %v2369, %v2365
        %v2398 = vpack.c.bf16 %v2375, %v2371
        %v2399 = vpack.c.bf16 %v2377, %v2373
        %v2400 = vpack.c.bf16 %v2383, %v2379
        %v2401 = vpack.c.bf16 %v2385, %v2381
        %v2434 = vunpack.c.l.b16 %v1230
        %v2435 = vunpack.c.l.b16 %v1231
        %v2436 = vunpack.c.l.b16 %v1232
        %v2437 = vunpack.c.l.b16 %v1233
        %v2438 = vunpack.c.l.b16 %v1234
        %v2439 = vunpack.c.l.b16 %v1235
        %v2440 = vunpack.c.l.b16 %v1236
        %v2441 = vunpack.c.l.b16 %v1237
        %v2442 = vunpack.c.l.b16 %v1238
        %v2443 = vunpack.c.l.b16 %v1239
        %v2444 = vunpack.c.l.b16 %v1240
        %v2445 = vunpack.c.l.b16 %v1241
        %v2446 = vunpack.c.l.b16 %v1242
        %v2447 = vunpack.c.l.b16 %v1243
        %v2448 = vunpack.c.l.b16 %v1244
        %v2449 = vunpack.c.l.b16 %v1245
        %v2450 = vunpack.c.l.b16 %v1246
        %v2451 = vunpack.c.l.b16 %v1247
        %v2452 = vunpack.c.l.b16 %v1248
        %v2453 = vunpack.c.l.b16 %v1249
        %v2454 = vunpack.c.l.b16 %v1250
        %v2455 = vunpack.c.l.b16 %v1251
        %v2456 = vunpack.c.l.b16 %v1252
        %v2457 = vunpack.c.l.b16 %v1253
        %v2458 = vunpack.c.l.b16 %v1254
        %v2459 = vunpack.c.l.b16 %v1255
        %v2460 = vunpack.c.l.b16 %v1256
        %v2461 = vunpack.c.l.b16 %v1257
        %v2462 = vunpack.c.l.b16 %v1258
        %v2463 = vunpack.c.l.b16 %v1259
        %v2464 = vunpack.c.l.b16 %v1260
        %v2465 = vunpack.c.l.b16 %v1261
        %v2466 = vpack.c.b16 %v2435, %v2434
        %v2467 = vpack.c.b16 %v2437, %v2436
        %v2468 = vpack.c.b16 %v2439, %v2438
        %v2469 = vpack.c.b16 %v2441, %v2440
        %v2470 = vpack.c.b16 %v2443, %v2442
        %v2471 = vpack.c.b16 %v2445, %v2444
        %v2472 = vpack.c.b16 %v2447, %v2446
        %v2473 = vpack.c.b16 %v2449, %v2448
        %v2474 = vpack.c.b16 %v2451, %v2450
        %v2475 = vpack.c.b16 %v2453, %v2452
        %v2476 = vpack.c.b16 %v2455, %v2454
        %v2477 = vpack.c.b16 %v2457, %v2456
        %v2478 = vpack.c.b16 %v2459, %v2458
        %v2479 = vpack.c.b16 %v2461, %v2460
        %v2480 = vpack.c.b16 %v2463, %v2462
        %v2481 = vpack.c.b16 %v2465, %v2464
        %2498 = vmatprep.subr.bf16.mxu0 0
        %2499 = vmatpush1.bf16.msra.mxu0 %v2466
        %2500 = vmatprep.subr.bf16.mxu0 0
        %2501 = vmatpush1.bf16.msra.mxu0 %v2467
        %2502 = vmatprep.subr.bf16.mxu0 0
        %2503 = vmatpush1.bf16.msra.mxu0 %v2468
        %2504 = vmatprep.subr.bf16.mxu0 0
        %2505 = vmatpush1.bf16.msra.mxu0 %v2469
        %2506 = vmatprep.subr.bf16.mxu0 0
        %2507 = vmatpush1.bf16.msra.mxu0 %v2470
        %2508 = vmatprep.subr.bf16.mxu0 0
        %2509 = vmatpush1.bf16.msra.mxu0 %v2471
        %2510 = vmatprep.subr.bf16.mxu0 0
        %2511 = vmatpush1.bf16.msra.mxu0 %v2472
        %2512 = vmatprep.subr.bf16.mxu0 0
        %2513 = vmatpush1.bf16.msra.mxu0 %v2473
        %2514 = vmatprep.subr.bf16.mxu0 0
        %2515 = vmatpush1.bf16.msra.mxu0 %v2474
        %2516 = vmatprep.subr.bf16.mxu0 0
        %2517 = vmatpush1.bf16.msra.mxu0 %v2475
        %2518 = vmatprep.subr.bf16.mxu0 0
        %2519 = vmatpush1.bf16.msra.mxu0 %v2476
        %2520 = vmatprep.subr.bf16.mxu0 0
        %2521 = vmatpush1.bf16.msra.mxu0 %v2477
        %2522 = vmatprep.subr.bf16.mxu0 0
        %2523 = vmatpush1.bf16.msra.mxu0 %v2478
        %2524 = vmatprep.subr.bf16.mxu0 0
        %2525 = vmatpush1.bf16.msra.mxu0 %v2479
        %2526 = vmatprep.subr.bf16.mxu0 0
        %2527 = vmatpush1.bf16.msra.mxu0 %v2480
        %2528 = vmatprep.subr.bf16.mxu0 0
        %2529 = vmatpush1.bf16.msra.mxu0 %v2481
        %2530 = vmatprep.mubr.bf16.mxu0 %v2387
        %2531 = vmatmul.mubr.bf16.gmra.mrb[0].mxu0 %v2386
        %v2532 = vpop.f32.mrb[0].mxu0
        %v2533 = vadd.f32 0.0, %v2532
        %v2534 = vpop.f32.mrb[0].mxu0
        %v2535 = vpop.f32.mrb[0].mxu0
        %v2536 = vadd.f32 0.0, %v2535
        %v2537 = vpop.f32.mrb[0].mxu0
        %2538 = vmatprep.mubr.bf16.mxu0 %v2389
        %2539 = vmatmul.mubr.bf16.gmra.mrb[0].mxu0 %v2388
        %v2540 = vpop.f32.mrb[0].mxu0
        %v2541 = vadd.f32 0.0, %v2540
        %v2542 = vpop.f32.mrb[0].mxu0
        %v2543 = vpop.f32.mrb[0].mxu0
        %v2544 = vadd.f32 0.0, %v2543
        %v2545 = vpop.f32.mrb[0].mxu0
        %2546 = vdwg.mxu0
        %v2579 = vunpack.c.l.b16 %v1262
        %v2580 = vunpack.c.l.b16 %v1263
        %v2581 = vunpack.c.l.b16 %v1264
        %v2582 = vunpack.c.l.b16 %v1265
        %v2583 = vunpack.c.l.b16 %v1266
        %v2584 = vunpack.c.l.b16 %v1267
        %v2585 = vunpack.c.l.b16 %v1268
        %v2586 = vunpack.c.l.b16 %v1269
        %v2587 = vunpack.c.l.b16 %v1270
        %v2588 = vunpack.c.l.b16 %v1271
        %v2589 = vunpack.c.l.b16 %v1272
        %v2590 = vunpack.c.l.b16 %v1273
        %v2591 = vunpack.c.l.b16 %v1274
        %v2592 = vunpack.c.l.b16 %v1275
        %v2593 = vunpack.c.l.b16 %v1276
        %v2594 = vunpack.c.l.b16 %v1277
        %v2595 = vunpack.c.l.b16 %v1278
        %v2596 = vunpack.c.l.b16 %v1279
        %v2597 = vunpack.c.l.b16 %v1280
        %v2598 = vunpack.c.l.b16 %v1281
        %v2599 = vunpack.c.l.b16 %v1282
        %v2600 = vunpack.c.l.b16 %v1283
        %v2601 = vunpack.c.l.b16 %v1284
        %v2602 = vunpack.c.l.b16 %v1285
        %v2603 = vunpack.c.l.b16 %v1286
        %v2604 = vunpack.c.l.b16 %v1287
        %v2605 = vunpack.c.l.b16 %v1288
        %v2606 = vunpack.c.l.b16 %v1289
        %v2607 = vunpack.c.l.b16 %v1290
        %v2608 = vunpack.c.l.b16 %v1291
        %v2609 = vunpack.c.l.b16 %v1292
        %v2610 = vunpack.c.l.b16 %v1293
        %v2611 = vpack.c.b16 %v2580, %v2579
        %v2612 = vpack.c.b16 %v2582, %v2581
        %v2613 = vpack.c.b16 %v2584, %v2583
        %v2614 = vpack.c.b16 %v2586, %v2585
        %v2615 = vpack.c.b16 %v2588, %v2587
        %v2616 = vpack.c.b16 %v2590, %v2589
        %v2617 = vpack.c.b16 %v2592, %v2591
        %v2618 = vpack.c.b16 %v2594, %v2593
        %v2619 = vpack.c.b16 %v2596, %v2595
        %v2620 = vpack.c.b16 %v2598, %v2597
        %v2621 = vpack.c.b16 %v2600, %v2599
        %v2622 = vpack.c.b16 %v2602, %v2601
        %v2623 = vpack.c.b16 %v2604, %v2603
        %v2624 = vpack.c.b16 %v2606, %v2605
        %v2625 = vpack.c.b16 %v2608, %v2607
        %v2626 = vpack.c.b16 %v2610, %v2609
        %2643 = vmatprep.subr.bf16.mxu0 0
        %2644 = vmatpush1.bf16.msra.mxu0 %v2611
        %2645 = vmatprep.subr.bf16.mxu0 0
        %2646 = vmatpush1.bf16.msra.mxu0 %v2612
        %2647 = vmatprep.subr.bf16.mxu0 0
        %2648 = vmatpush1.bf16.msra.mxu0 %v2613
        %2649 = vmatprep.subr.bf16.mxu0 0
        %2650 = vmatpush1.bf16.msra.mxu0 %v2614
        %2651 = vmatprep.subr.bf16.mxu0 0
        %2652 = vmatpush1.bf16.msra.mxu0 %v2615
        %2653 = vmatprep.subr.bf16.mxu0 0
        %2654 = vmatpush1.bf16.msra.mxu0 %v2616
        %2655 = vmatprep.subr.bf16.mxu0 0
        %2656 = vmatpush1.bf16.msra.mxu0 %v2617
        %2657 = vmatprep.subr.bf16.mxu0 0
        %2658 = vmatpush1.bf16.msra.mxu0 %v2618
        %2659 = vmatprep.subr.bf16.mxu0 0
        %2660 = vmatpush1.bf16.msra.mxu0 %v2619
        %2661 = vmatprep.subr.bf16.mxu0 0
        %2662 = vmatpush1.bf16.msra.mxu0 %v2620
        %2663 = vmatprep.subr.bf16.mxu0 0
        %2664 = vmatpush1.bf16.msra.mxu0 %v2621
        %2665 = vmatprep.subr.bf16.mxu0 0
        %2666 = vmatpush1.bf16.msra.mxu0 %v2622
        %2667 = vmatprep.subr.bf16.mxu0 0
        %2668 = vmatpush1.bf16.msra.mxu0 %v2623
        %2669 = vmatprep.subr.bf16.mxu0 0
        %2670 = vmatpush1.bf16.msra.mxu0 %v2624
        %2671 = vmatprep.subr.bf16.mxu0 0
        %2672 = vmatpush1.bf16.msra.mxu0 %v2625
        %2673 = vmatprep.subr.bf16.mxu0 0
        %2674 = vmatpush1.bf16.msra.mxu0 %v2626
        %2675 = vmatprep.mubr.bf16.mxu0 %v2391
        %2676 = vmatmul.mubr.bf16.gmra.mrb[0].mxu0 %v2390
        %v2677 = vpop.f32.mrb[0].mxu0
        %v2678 = vadd.f32 0.0, %v2677
        %v2679 = vpop.f32.mrb[0].mxu0
        %v2680 = vpop.f32.mrb[0].mxu0
        %v2681 = vadd.f32 0.0, %v2680
        %v2682 = vpop.f32.mrb[0].mxu0
        %2683 = vmatprep.mubr.bf16.mxu0 %v2393
        %2684 = vmatmul.mubr.bf16.gmra.mrb[0].mxu0 %v2392
        %v2685 = vpop.f32.mrb[0].mxu0
        %v2686 = vadd.f32 0.0, %v2685
        %v2687 = vpop.f32.mrb[0].mxu0
        %v2688 = vpop.f32.mrb[0].mxu0
        %v2689 = vadd.f32 0.0, %v2688
        %v2690 = vpop.f32.mrb[0].mxu0
        %2691 = vdwg.mxu0
        %v2724 = vunpack.c.l.b16 %v1294
        %v2725 = vunpack.c.l.b16 %v1295
        %v2726 = vunpack.c.l.b16 %v1296
        %v2727 = vunpack.c.l.b16 %v1297
        %v2728 = vunpack.c.l.b16 %v1298
        %v2729 = vunpack.c.l.b16 %v1299
        %v2730 = vunpack.c.l.b16 %v1300
        %v2731 = vunpack.c.l.b16 %v1301
        %v2732 = vunpack.c.l.b16 %v1302
        %v2733 = vunpack.c.l.b16 %v1303
        %v2734 = vunpack.c.l.b16 %v1304
        %v2735 = vunpack.c.l.b16 %v1305
        %v2736 = vunpack.c.l.b16 %v1306
        %v2737 = vunpack.c.l.b16 %v1307
        %v2738 = vunpack.c.l.b16 %v1308
        %v2739 = vunpack.c.l.b16 %v1309
        %v2740 = vunpack.c.l.b16 %v1310
        %v2741 = vunpack.c.l.b16 %v1311
        %v2742 = vunpack.c.l.b16 %v1312
        %v2743 = vunpack.c.l.b16 %v1313
        %v2744 = vunpack.c.l.b16 %v1314
        %v2745 = vunpack.c.l.b16 %v1315
        %v2746 = vunpack.c.l.b16 %v1316
        %v2747 = vunpack.c.l.b16 %v1317
        %v2748 = vunpack.c.l.b16 %v1318
        %v2749 = vunpack.c.l.b16 %v1319
        %v2750 = vunpack.c.l.b16 %v1320
        %v2751 = vunpack.c.l.b16 %v1321
        %v2752 = vunpack.c.l.b16 %v1322
        %v2753 = vunpack.c.l.b16 %v1323
        %v2754 = vunpack.c.l.b16 %v1324
        %v2755 = vunpack.c.l.b16 %v1325
        %v2756 = vpack.c.b16 %v2725, %v2724
        %v2757 = vpack.c.b16 %v2727, %v2726
        %v2758 = vpack.c.b16 %v2729, %v2728
        %v2759 = vpack.c.b16 %v2731, %v2730
        %v2760 = vpack.c.b16 %v2733, %v2732
        %v2761 = vpack.c.b16 %v2735, %v2734
        %v2762 = vpack.c.b16 %v2737, %v2736
        %v2763 = vpack.c.b16 %v2739, %v2738
        %v2764 = vpack.c.b16 %v2741, %v2740
        %v2765 = vpack.c.b16 %v2743, %v2742
        %v2766 = vpack.c.b16 %v2745, %v2744
        %v2767 = vpack.c.b16 %v2747, %v2746
        %v2768 = vpack.c.b16 %v2749, %v2748
        %v2769 = vpack.c.b16 %v2751, %v2750
        %v2770 = vpack.c.b16 %v2753, %v2752
        %v2771 = vpack.c.b16 %v2755, %v2754
        %2788 = vmatprep.subr.bf16.mxu0 0
        %2789 = vmatpush1.bf16.msra.mxu0 %v2756
        %2790 = vmatprep.subr.bf16.mxu0 0
        %2791 = vmatpush1.bf16.msra.mxu0 %v2757
        %2792 = vmatprep.subr.bf16.mxu0 0
        %2793 = vmatpush1.bf16.msra.mxu0 %v2758
        %2794 = vmatprep.subr.bf16.mxu0 0
        %2795 = vmatpush1.bf16.msra.mxu0 %v2759
        %2796 = vmatprep.subr.bf16.mxu0 0
        %2797 = vmatpush1.bf16.msra.mxu0 %v2760
        %2798 = vmatprep.subr.bf16.mxu0 0
        %2799 = vmatpush1.bf16.msra.mxu0 %v2761
        %2800 = vmatprep.subr.bf16.mxu0 0
        %2801 = vmatpush1.bf16.msra.mxu0 %v2762
        %2802 = vmatprep.subr.bf16.mxu0 0
        %2803 = vmatpush1.bf16.msra.mxu0 %v2763
        %2804 = vmatprep.subr.bf16.mxu0 0
        %2805 = vmatpush1.bf16.msra.mxu0 %v2764
        %2806 = vmatprep.subr.bf16.mxu0 0
        %2807 = vmatpush1.bf16.msra.mxu0 %v2765
        %2808 = vmatprep.subr.bf16.mxu0 0
        %2809 = vmatpush1.bf16.msra.mxu0 %v2766
        %2810 = vmatprep.subr.bf16.mxu0 0
        %2811 = vmatpush1.bf16.msra.mxu0 %v2767
        %2812 = vmatprep.subr.bf16.mxu0 0
        %2813 = vmatpush1.bf16.msra.mxu0 %v2768
        %2814 = vmatprep.subr.bf16.mxu0 0
        %2815 = vmatpush1.bf16.msra.mxu0 %v2769
        %2816 = vmatprep.subr.bf16.mxu0 0
        %2817 = vmatpush1.bf16.msra.mxu0 %v2770
        %2818 = vmatprep.subr.bf16.mxu0 0
        %2819 = vmatpush1.bf16.msra.mxu0 %v2771
        %2820 = vmatprep.mubr.bf16.mxu0 %v2395
        %2821 = vmatmul.mubr.bf16.gmra.mrb[0].mxu0 %v2394
        %v2822 = vpop.f32.mrb[0].mxu0
        %v2823 = vadd.f32 0.0, %v2822
        %v2824 = vpop.f32.mrb[0].mxu0
        %v2825 = vpop.f32.mrb[0].mxu0
        %v2826 = vadd.f32 0.0, %v2825
        %v2827 = vpop.f32.mrb[0].mxu0
        %2828 = vmatprep.mubr.bf16.mxu0 %v2397
        %2829 = vmatmul.mubr.bf16.gmra.mrb[0].mxu0 %v2396
        %v2830 = vpop.f32.mrb[0].mxu0
        %v2831 = vadd.f32 0.0, %v2830
        %v2832 = vpop.f32.mrb[0].mxu0
        %v2833 = vpop.f32.mrb[0].mxu0
        %v2834 = vadd.f32 0.0, %v2833
        %v2835 = vpop.f32.mrb[0].mxu0
        %2836 = vdwg.mxu0
        %v2869 = vunpack.c.l.b16 %v1326
        %v2870 = vunpack.c.l.b16 %v1327
        %v2871 = vunpack.c.l.b16 %v1328
        %v2872 = vunpack.c.l.b16 %v1329
        %v2873 = vunpack.c.l.b16 %v1330
        %v2874 = vunpack.c.l.b16 %v1331
        %v2875 = vunpack.c.l.b16 %v1332
        %v2876 = vunpack.c.l.b16 %v1333
        %v2877 = vunpack.c.l.b16 %v1334
        %v2878 = vunpack.c.l.b16 %v1335
        %v2879 = vunpack.c.l.b16 %v1336
        %v2880 = vunpack.c.l.b16 %v1337
        %v2881 = vunpack.c.l.b16 %v1338
        %v2882 = vunpack.c.l.b16 %v1339
        %v2883 = vunpack.c.l.b16 %v1340
        %v2884 = vunpack.c.l.b16 %v1341
        %v2885 = vunpack.c.l.b16 %v1342
        %v2886 = vunpack.c.l.b16 %v1343
        %v2887 = vunpack.c.l.b16 %v1344
        %v2888 = vunpack.c.l.b16 %v1345
        %v2889 = vunpack.c.l.b16 %v1346
        %v2890 = vunpack.c.l.b16 %v1347
        %v2891 = vunpack.c.l.b16 %v1348
        %v2892 = vunpack.c.l.b16 %v1349
        %v2893 = vunpack.c.l.b16 %v1350
        %v2894 = vunpack.c.l.b16 %v1351
        %v2895 = vunpack.c.l.b16 %v1352
        %v2896 = vunpack.c.l.b16 %v1353
        %v2897 = vunpack.c.l.b16 %v1354
        %v2898 = vunpack.c.l.b16 %v1355
        %v2899 = vunpack.c.l.b16 %v1356
        %v2900 = vunpack.c.l.b16 %v1357
        %v2901 = vpack.c.b16 %v2870, %v2869
        %v2902 = vpack.c.b16 %v2872, %v2871
        %v2903 = vpack.c.b16 %v2874, %v2873
        %v2904 = vpack.c.b16 %v2876, %v2875
        %v2905 = vpack.c.b16 %v2878, %v2877
        %v2906 = vpack.c.b16 %v2880, %v2879
        %v2907 = vpack.c.b16 %v2882, %v2881
        %v2908 = vpack.c.b16 %v2884, %v2883
        %v2909 = vpack.c.b16 %v2886, %v2885
        %v2910 = vpack.c.b16 %v2888, %v2887
        %v2911 = vpack.c.b16 %v2890, %v2889
        %v2912 = vpack.c.b16 %v2892, %v2891
        %v2913 = vpack.c.b16 %v2894, %v2893
        %v2914 = vpack.c.b16 %v2896, %v2895
        %v2915 = vpack.c.b16 %v2898, %v2897
        %v2916 = vpack.c.b16 %v2900, %v2899
        %2933 = vmatprep.subr.bf16.mxu0 0
        %2934 = vmatpush1.bf16.msra.mxu0 %v2901
        %2935 = vmatprep.subr.bf16.mxu0 0
        %2936 = vmatpush1.bf16.msra.mxu0 %v2902
        %2937 = vmatprep.subr.bf16.mxu0 0
        %2938 = vmatpush1.bf16.msra.mxu0 %v2903
        %2939 = vmatprep.subr.bf16.mxu0 0
        %2940 = vmatpush1.bf16.msra.mxu0 %v2904
        %2941 = vmatprep.subr.bf16.mxu0 0
        %2942 = vmatpush1.bf16.msra.mxu0 %v2905
        %2943 = vmatprep.subr.bf16.mxu0 0
        %2944 = vmatpush1.bf16.msra.mxu0 %v2906
        %2945 = vmatprep.subr.bf16.mxu0 0
        %2946 = vmatpush1.bf16.msra.mxu0 %v2907
        %2947 = vmatprep.subr.bf16.mxu0 0
        %2948 = vmatpush1.bf16.msra.mxu0 %v2908
        %2949 = vmatprep.subr.bf16.mxu0 0
        %2950 = vmatpush1.bf16.msra.mxu0 %v2909
        %2951 = vmatprep.subr.bf16.mxu0 0
        %2952 = vmatpush1.bf16.msra.mxu0 %v2910
        %2953 = vmatprep.subr.bf16.mxu0 0
        %2954 = vmatpush1.bf16.msra.mxu0 %v2911
        %2955 = vmatprep.subr.bf16.mxu0 0
        %2956 = vmatpush1.bf16.msra.mxu0 %v2912
        %2957 = vmatprep.subr.bf16.mxu0 0
        %2958 = vmatpush1.bf16.msra.mxu0 %v2913
        %2959 = vmatprep.subr.bf16.mxu0 0
        %2960 = vmatpush1.bf16.msra.mxu0 %v2914
        %2961 = vmatprep.subr.bf16.mxu0 0
        %2962 = vmatpush1.bf16.msra.mxu0 %v2915
        %2963 = vmatprep.subr.bf16.mxu0 0
        %2964 = vmatpush1.bf16.msra.mxu0 %v2916
        %2965 = vmatprep.mubr.bf16.mxu0 %v2399
        %2966 = vmatmul.mubr.bf16.gmra.mrb[0].mxu0 %v2398
        %v2967 = vpop.f32.mrb[0].mxu0
        %v2968 = vadd.f32 0.0, %v2967
        %v2969 = vpop.f32.mrb[0].mxu0
        %v2970 = vpop.f32.mrb[0].mxu0
        %v2971 = vadd.f32 0.0, %v2970
        %v2972 = vpop.f32.mrb[0].mxu0
        %2973 = vmatprep.mubr.bf16.mxu0 %v2401
        %2974 = vmatmul.mubr.bf16.gmra.mrb[0].mxu0 %v2400
        %v2975 = vpop.f32.mrb[0].mxu0
        %v2976 = vadd.f32 0.0, %v2975
        %v2977 = vpop.f32.mrb[0].mxu0
        %v2978 = vpop.f32.mrb[0].mxu0
        %v2979 = vadd.f32 0.0, %v2978
        %v2980 = vpop.f32.mrb[0].mxu0
        %2981 = vdwg.mxu0
        %v2982 = vunpack.c.l.b16 %v814
        %v2983 = vunpack.c.l.b16 %v815
        %v2984 = vunpack.c.l.b16 %v816
        %v2985 = vunpack.c.l.b16 %v817
        %v2986 = vunpack.c.l.b16 %v818
        %v2987 = vunpack.c.l.b16 %v819
        %v2988 = vunpack.c.l.b16 %v820
        %v2989 = vunpack.c.l.b16 %v821
        %v2990 = vunpack.c.l.b16 %v822
        %v2991 = vunpack.c.l.b16 %v823
        %v2992 = vunpack.c.l.b16 %v824
        %v2993 = vunpack.c.l.b16 %v825
        %v2994 = vunpack.c.l.b16 %v826
        %v2995 = vunpack.c.l.b16 %v827
        %v2996 = vunpack.c.l.b16 %v828
        %v2997 = vunpack.c.l.b16 %v829
        %v2998 = vunpack.c.l.b16 %v830
        %v2999 = vunpack.c.l.b16 %v831
        %v3000 = vunpack.c.l.b16 %v832
        %v3001 = vunpack.c.l.b16 %v833
        %v3002 = vunpack.c.l.b16 %v834
        %v3003 = vunpack.c.l.b16 %v835
        %v3004 = vunpack.c.l.b16 %v836
        %v3005 = vunpack.c.l.b16 %v837
        %v3006 = vunpack.c.l.b16 %v838
        %v3007 = vunpack.c.l.b16 %v839
        %v3008 = vunpack.c.l.b16 %v840
        %v3009 = vunpack.c.l.b16 %v841
        %v3010 = vunpack.c.l.b16 %v842
        %v3011 = vunpack.c.l.b16 %v843
        %v3012 = vunpack.c.l.b16 %v844
        %v3013 = vunpack.c.l.b16 %v845
        %v3014 = vpack.c.b16 %v2983, %v2982
        %v3015 = vpack.c.b16 %v2985, %v2984
        %v3016 = vpack.c.b16 %v2987, %v2986
        %v3017 = vpack.c.b16 %v2989, %v2988
        %v3018 = vpack.c.b16 %v2991, %v2990
        %v3019 = vpack.c.b16 %v2993, %v2992
        %v3020 = vpack.c.b16 %v2995, %v2994
        %v3021 = vpack.c.b16 %v2997, %v2996
        %v3022 = vpack.c.b16 %v2999, %v2998
        %v3023 = vpack.c.b16 %v3001, %v3000
        %v3024 = vpack.c.b16 %v3003, %v3002
        %v3025 = vpack.c.b16 %v3005, %v3004
        %v3026 = vpack.c.b16 %v3007, %v3006
        %v3027 = vpack.c.b16 %v3009, %v3008
        %v3028 = vpack.c.b16 %v3011, %v3010
        %v3029 = vpack.c.b16 %v3013, %v3012
        %3046 = vmatprep.subr.bf16.mxu0 0
        %3047 = vmatpush1.bf16.msra.mxu0 %v3014
        %3048 = vmatprep.subr.bf16.mxu0 0
        %3049 = vmatpush1.bf16.msra.mxu0 %v3015
        %3050 = vmatprep.subr.bf16.mxu0 0
        %3051 = vmatpush1.bf16.msra.mxu0 %v3016
        %3052 = vmatprep.subr.bf16.mxu0 0
        %3053 = vmatpush1.bf16.msra.mxu0 %v3017
        %3054 = vmatprep.subr.bf16.mxu0 0
        %3055 = vmatpush1.bf16.msra.mxu0 %v3018
        %3056 = vmatprep.subr.bf16.mxu0 0
        %3057 = vmatpush1.bf16.msra.mxu0 %v3019
        %3058 = vmatprep.subr.bf16.mxu0 0
        %3059 = vmatpush1.bf16.msra.mxu0 %v3020
        %3060 = vmatprep.subr.bf16.mxu0 0
        %3061 = vmatpush1.bf16.msra.mxu0 %v3021
        %3062 = vmatprep.subr.bf16.mxu0 0
        %3063 = vmatpush1.bf16.msra.mxu0 %v3022
        %3064 = vmatprep.subr.bf16.mxu0 0
        %3065 = vmatpush1.bf16.msra.mxu0 %v3023
        %3066 = vmatprep.subr.bf16.mxu0 0
        %3067 = vmatpush1.bf16.msra.mxu0 %v3024
        %3068 = vmatprep.subr.bf16.mxu0 0
        %3069 = vmatpush1.bf16.msra.mxu0 %v3025
        %3070 = vmatprep.subr.bf16.mxu0 0
        %3071 = vmatpush1.bf16.msra.mxu0 %v3026
        %3072 = vmatprep.subr.bf16.mxu0 0
        %3073 = vmatpush1.bf16.msra.mxu0 %v3027
        %3074 = vmatprep.subr.bf16.mxu0 0
        %3075 = vmatpush1.bf16.msra.mxu0 %v3028
        %3076 = vmatprep.subr.bf16.mxu0 0
        %3077 = vmatpush1.bf16.msra.mxu0 %v3029
        %3078 = vmatprep.mubr.bf16.mxu0 %v2387
        %3079 = vmatmul.mubr.bf16.gmra.mrb[0].mxu0 %v2386
        %v3080 = vpop.f32.mrb[0].mxu0
        %v3081 = vadd.f32 1e-30, %v3080
        %v3082 = vpop.f32.mrb[0].mxu0
        %v3083 = vpop.f32.mrb[0].mxu0
        %v3084 = vadd.f32 1e-30, %v3083
        %v3085 = vpop.f32.mrb[0].mxu0
        %3086 = vmatprep.mubr.bf16.mxu0 %v2389
        %3087 = vmatmul.mubr.bf16.gmra.mrb[0].mxu0 %v2388
        %v3088 = vpop.f32.mrb[0].mxu0
        %v3089 = vadd.f32 1e-30, %v3088
        %v3090 = vpop.f32.mrb[0].mxu0
        %v3091 = vpop.f32.mrb[0].mxu0
        %v3092 = vadd.f32 1e-30, %v3091
        %v3093 = vpop.f32.mrb[0].mxu0
        %3094 = vmatprep.mubr.bf16.mxu0 %v2391
        %3095 = vmatmul.mubr.bf16.gmra.mrb[0].mxu0 %v2390
        %v3096 = vpop.f32.mrb[0].mxu0
        %v3097 = vadd.f32 1e-30, %v3096
        %v3098 = vpop.f32.mrb[0].mxu0
        %v3099 = vpop.f32.mrb[0].mxu0
        %v3100 = vadd.f32 1e-30, %v3099
        %v3101 = vpop.f32.mrb[0].mxu0
        %3102 = vmatprep.mubr.bf16.mxu0 %v2393
        %3103 = vmatmul.mubr.bf16.gmra.mrb[0].mxu0 %v2392
        %v3104 = vpop.f32.mrb[0].mxu0
        %v3105 = vadd.f32 1e-30, %v3104
        %v3106 = vpop.f32.mrb[0].mxu0
        %v3107 = vpop.f32.mrb[0].mxu0
        %v3108 = vadd.f32 1e-30, %v3107
        %v3109 = vpop.f32.mrb[0].mxu0
        %3110 = vmatprep.mubr.bf16.mxu0 %v2395
        %3111 = vmatmul.mubr.bf16.gmra.mrb[0].mxu0 %v2394
        %v3112 = vpop.f32.mrb[0].mxu0
        %v3113 = vadd.f32 1e-30, %v3112
        %v3114 = vpop.f32.mrb[0].mxu0
        %v3115 = vpop.f32.mrb[0].mxu0
        %v3116 = vadd.f32 1e-30, %v3115
        %v3117 = vpop.f32.mrb[0].mxu0
        %3118 = vmatprep.mubr.bf16.mxu0 %v2397
        %3119 = vmatmul.mubr.bf16.gmra.mrb[0].mxu0 %v2396
        %v3120 = vpop.f32.mrb[0].mxu0
        %v3121 = vadd.f32 1e-30, %v3120
        %v3122 = vpop.f32.mrb[0].mxu0
        %v3123 = vpop.f32.mrb[0].mxu0
        %v3124 = vadd.f32 1e-30, %v3123
        %v3125 = vpop.f32.mrb[0].mxu0
        %3126 = vmatprep.mubr.bf16.mxu0 %v2399
        %3127 = vmatmul.mubr.bf16.gmra.mrb[0].mxu0 %v2398
        %v3128 = vpop.f32.mrb[0].mxu0
        %v3129 = vadd.f32 1e-30, %v3128
        %v3130 = vpop.f32.mrb[0].mxu0
        %v3131 = vpop.f32.mrb[0].mxu0
        %v3132 = vadd.f32 1e-30, %v3131
        %v3133 = vpop.f32.mrb[0].mxu0
        %3134 = vmatprep.mubr.bf16.mxu0 %v2401
        %3135 = vmatmul.mubr.bf16.gmra.mrb[0].mxu0 %v2400
        %v3136 = vpop.f32.mrb[0].mxu0
        %v3137 = vadd.f32 1e-30, %v3136
        %v3138 = vpop.f32.mrb[0].mxu0
        %v3139 = vpop.f32.mrb[0].mxu0
        %v3140 = vadd.f32 1e-30, %v3139
        %v3141 = vpop.f32.mrb[0].mxu0
        %3142 = vdwg.mxu0
        %v3143 = vrcp.pop %v3081
        %v3144 = vrcp.pop %v3084
        %v3145 = vrcp.pop %v3089
        %v3146 = vrcp.pop %v3092
        %v3147 = vrcp.pop %v3097
        %v3148 = vrcp.pop %v3100
        %v3149 = vrcp.pop %v3105
        %v3150 = vrcp.pop %v3108
        %v3151 = vrcp.pop %v3113
        %v3152 = vrcp.pop %v3116
        %v3153 = vrcp.pop %v3121
        %v3154 = vrcp.pop %v3124
        %v3155 = vrcp.pop %v3129
        %v3156 = vrcp.pop %v3132
        %v3157 = vrcp.pop %v3137
        %v3158 = vrcp.pop %v3140
        %v3159 = vmul.f32 %v2533, %v3143
        %v3160 = vmul.f32 %v2536, %v3144
        %v3161 = vmul.f32 %v2541, %v3145
        %v3162 = vmul.f32 %v2544, %v3146
        %v3163 = vmul.f32 %v2678, %v3147
        %v3164 = vmul.f32 %v2681, %v3148
        %v3165 = vmul.f32 %v2686, %v3149
        %v3166 = vmul.f32 %v2689, %v3150
        %v3167 = vmul.f32 %v2823, %v3151
        %v3168 = vmul.f32 %v2826, %v3152
        %v3169 = vmul.f32 %v2831, %v3153
        %v3170 = vmul.f32 %v2834, %v3154
        %v3171 = vmul.f32 %v2968, %v3155
        %v3172 = vmul.f32 %v2971, %v3156
        %v3173 = vmul.f32 %v2976, %v3157
        %v3174 = vmul.f32 %v2979, %v3158
        %v3175 = vpack.c.bf16 %v3160, %v3159
        %v3176 = vpack.c.bf16 %v3162, %v3161
        %v3177 = vpack.c.bf16 %v3164, %v3163
        %v3178 = vpack.c.bf16 %v3166, %v3165
        %v3179 = vpack.c.bf16 %v3168, %v3167
        %v3180 = vpack.c.bf16 %v3170, %v3169
        %v3181 = vpack.c.bf16 %v3172, %v3171
        %v3182 = vpack.c.bf16 %v3174, %v3173
        %v3183 = vld [vmem:[%s2] sm:$0xf]
        %v3184 = vld [vmem:[%s2 + $0x4] sm:$0xf]
        %v3185 = vld [vmem:[%s2 + $0x8] sm:$0xf]
        %v3186 = vld [vmem:[%s2 + $0xc] sm:$0xf]
        %v3187 = vld [vmem:[%s2 + $0x10] sm:$0xf]
        %v3188 = vld [vmem:[%s2 + $0x14] sm:$0xf]
        %v3189 = vld [vmem:[%s2 + $0x18] sm:$0xf]
        %v3190 = vld [vmem:[%s2 + $0x1c] sm:$0xf]
        %v3191 = vlaneseq
        %v3192 = vshrl.u32 %v3191, 7
        %v3193 = vsub.s32 4, %v3192
        %v3194 = vrot.slane %v354, %v3193
        %v3203 = vunpack.c.l.b16 %v3183
        %v3204 = vunpack.c.l.b16 %v3184
        %v3205 = vunpack.c.l.b16 %v3185
        %v3206 = vunpack.c.l.b16 %v3186
        %v3207 = vunpack.c.l.b16 %v3187
        %v3208 = vunpack.c.l.b16 %v3188
        %v3209 = vunpack.c.l.b16 %v3189
        %v3210 = vunpack.c.l.b16 %v3190
        %v3211 = vpack.c.b16 %v3204, %v3203
        %v3212 = vpack.c.b16 %v3206, %v3205
        %v3213 = vpack.c.b16 %v3208, %v3207
        %v3214 = vpack.c.b16 %v3210, %v3209
        %v3220 = vsel %vm371, %v3175, 0
        %v3223 = vsel %vm371, %v3176, 0
        %v3226 = vsel %vm371, %v3177, 0
        %v3229 = vsel %vm371, %v3178, 0
        %v3232 = vsel %vm371, %v3179, 0
        %v3235 = vsel %vm371, %v3180, 0
        %v3238 = vsel %vm371, %v3181, 0
        %v3241 = vsel %vm371, %v3182, 0
        %3243 = vmatprep.subr.bf16.mxu0 0
        %3244 = vmatpush1.bf16.msra.mxu0 %v3211
        %3245 = vmatprep.subr.bf16.mxu0 0
        %3246 = vmatpush1.bf16.msra.mxu0 %v3212
        %3247 = vmatprep.subr.bf16.mxu0 0
        %3248 = vmatpush1.bf16.msra.mxu0 %v3213
        %3249 = vmatprep.subr.bf16.mxu0 0
        %3250 = vmatpush1.bf16.msra.mxu0 %v3214
        %3251 = vmatprep.subr.bf16.mxu0 0
        %3252 = vmatpush1.bf16.msra.mxu0 0
        %3253 = vmatprep.subr.bf16.mxu0 0
        %3254 = vmatpush1.bf16.msra.mxu0 0
        %3255 = vmatprep.subr.bf16.mxu0 0
        %3256 = vmatpush1.bf16.msra.mxu0 0
        %3257 = vmatprep.subr.bf16.mxu0 0
        %3258 = vmatpush1.bf16.msra.mxu0 0
        %3259 = vmatprep.subr.bf16.mxu0 0
        %3260 = vmatpush1.bf16.msra.mxu0 0
        %3261 = vmatprep.subr.bf16.mxu0 0
        %3262 = vmatpush1.bf16.msra.mxu0 0
        %3263 = vmatprep.subr.bf16.mxu0 0
        %3264 = vmatpush1.bf16.msra.mxu0 0
        %3265 = vmatprep.subr.bf16.mxu0 0
        %3266 = vmatpush1.bf16.msra.mxu0 0
        %3267 = vmatprep.subr.bf16.mxu0 0
        %3268 = vmatpush1.bf16.msra.mxu0 0
        %3269 = vmatprep.subr.bf16.mxu0 0
        %3270 = vmatpush1.bf16.msra.mxu0 0
        %3271 = vmatprep.subr.bf16.mxu0 0
        %3272 = vmatpush1.bf16.msra.mxu0 0
        %3273 = vmatprep.subr.bf16.mxu0 0
        %3274 = vmatpush1.bf16.msra.mxu0 0
        %3275 = vmatprep.mubr.bf16.mxu0 0
        %3276 = vmatmul.mubr.bf16.gmra.mrb[0].mxu0 %v3220
        %v3277 = vpop.f32.mrb[0].mxu0
        %v3278 = vadd.f32 %v3194, %v3277
        %v3279 = vpop.f32.mrb[0].mxu0
        %v3280 = vpop.f32.mrb[0].mxu0
        %v3281 = vadd.f32 %v3194, %v3280
        %v3282 = vpop.f32.mrb[0].mxu0
        %3283 = vmatprep.mubr.bf16.mxu0 0
        %3284 = vmatmul.mubr.bf16.gmra.mrb[0].mxu0 %v3223
        %v3285 = vpop.f32.mrb[0].mxu0
        %v3286 = vadd.f32 %v3194, %v3285
        %v3287 = vpop.f32.mrb[0].mxu0
        %v3288 = vpop.f32.mrb[0].mxu0
        %v3289 = vadd.f32 %v3194, %v3288
        %v3290 = vpop.f32.mrb[0].mxu0
        %3291 = vmatprep.mubr.bf16.mxu0 0
        %3292 = vmatmul.mubr.bf16.gmra.mrb[0].mxu0 %v3226
        %v3293 = vpop.f32.mrb[0].mxu0
        %v3294 = vadd.f32 %v3194, %v3293
        %v3295 = vpop.f32.mrb[0].mxu0
        %v3296 = vpop.f32.mrb[0].mxu0
        %v3297 = vadd.f32 %v3194, %v3296
        %v3298 = vpop.f32.mrb[0].mxu0
        %3299 = vmatprep.mubr.bf16.mxu0 0
        %3300 = vmatmul.mubr.bf16.gmra.mrb[0].mxu0 %v3229
        %v3301 = vpop.f32.mrb[0].mxu0
        %v3302 = vadd.f32 %v3194, %v3301
        %v3303 = vpop.f32.mrb[0].mxu0
        %v3304 = vpop.f32.mrb[0].mxu0
        %v3305 = vadd.f32 %v3194, %v3304
        %v3306 = vpop.f32.mrb[0].mxu0
        %3307 = vmatprep.mubr.bf16.mxu0 0
        %3308 = vmatmul.mubr.bf16.gmra.mrb[0].mxu0 %v3232
        %v3309 = vpop.f32.mrb[0].mxu0
        %v3310 = vadd.f32 %v3194, %v3309
        %v3311 = vpop.f32.mrb[0].mxu0
        %v3312 = vpop.f32.mrb[0].mxu0
        %v3313 = vadd.f32 %v3194, %v3312
        %v3314 = vpop.f32.mrb[0].mxu0
        %3315 = vmatprep.mubr.bf16.mxu0 0
        %3316 = vmatmul.mubr.bf16.gmra.mrb[0].mxu0 %v3235
        %v3317 = vpop.f32.mrb[0].mxu0
        %v3318 = vadd.f32 %v3194, %v3317
        %v3319 = vpop.f32.mrb[0].mxu0
        %v3320 = vpop.f32.mrb[0].mxu0
        %v3321 = vadd.f32 %v3194, %v3320
        %v3322 = vpop.f32.mrb[0].mxu0
        %3323 = vmatprep.mubr.bf16.mxu0 0
        %3324 = vmatmul.mubr.bf16.gmra.mrb[0].mxu0 %v3238
        %v3325 = vpop.f32.mrb[0].mxu0
        %v3326 = vadd.f32 %v3194, %v3325
        %v3327 = vpop.f32.mrb[0].mxu0
        %v3328 = vpop.f32.mrb[0].mxu0
        %v3329 = vadd.f32 %v3194, %v3328
        %v3330 = vpop.f32.mrb[0].mxu0
        %3331 = vmatprep.mubr.bf16.mxu0 0
        %3332 = vmatmul.mubr.bf16.gmra.mrb[0].mxu0 %v3241
        %v3333 = vpop.f32.mrb[0].mxu0
        %v3334 = vadd.f32 %v3194, %v3333
        %v3335 = vpop.f32.mrb[0].mxu0
        %v3336 = vpop.f32.mrb[0].mxu0
        %v3337 = vadd.f32 %v3194, %v3336
        %v3338 = vpop.f32.mrb[0].mxu0
        %3339 = vdwg.mxu0
        %v3340 = vadd.f32 %v355, %v3278
        %v3341 = vadd.f32 %v356, %v3281
        %v3342 = vadd.f32 %v357, %v3286
        %v3343 = vadd.f32 %v358, %v3289
        %v3344 = vadd.f32 %v359, %v3294
        %v3345 = vadd.f32 %v360, %v3297
        %v3346 = vadd.f32 %v361, %v3302
        %v3347 = vadd.f32 %v362, %v3305
        %v3348 = vadd.f32 %v363, %v3310
        %v3349 = vadd.f32 %v364, %v3313
        %v3350 = vadd.f32 %v365, %v3318
        %v3351 = vadd.f32 %v366, %v3321
        %v3352 = vadd.f32 %v367, %v3326
        %v3353 = vadd.f32 %v368, %v3329
        %v3354 = vadd.f32 %v369, %v3334
        %v3355 = vadd.f32 %v370, %v3337
        %v3356 = vsel %vm371, %v3340, 0.0
        %3357 = vadd.xlane.f32.xlu0 %v3356
        %v3358 = vpop.xlane.xlu0 %3357
        %v3359 = vsel %vm371, %v3341, 0.0
        %3360 = vadd.xlane.f32.xlu0 %v3359
        %v3361 = vpop.xlane.xlu0 %3360
        %v3362 = vsel %vm371, %v3342, 0.0
        %3363 = vadd.xlane.f32.xlu0 %v3362
        %v3364 = vpop.xlane.xlu0 %3363
        %v3365 = vsel %vm371, %v3343, 0.0
        %3366 = vadd.xlane.f32.xlu0 %v3365
        %v3367 = vpop.xlane.xlu0 %3366
        %v3368 = vsel %vm371, %v3344, 0.0
        %3369 = vadd.xlane.f32.xlu0 %v3368
        %v3370 = vpop.xlane.xlu0 %3369
        %v3371 = vsel %vm371, %v3345, 0.0
        %3372 = vadd.xlane.f32.xlu0 %v3371
        %v3373 = vpop.xlane.xlu0 %3372
        %v3374 = vsel %vm371, %v3346, 0.0
        %3375 = vadd.xlane.f32.xlu0 %v3374
        %v3376 = vpop.xlane.xlu0 %3375
        %v3377 = vsel %vm371, %v3347, 0.0
        %3378 = vadd.xlane.f32.xlu0 %v3377
        %v3379 = vpop.xlane.xlu0 %3378
        %v3380 = vsel %vm371, %v3348, 0.0
        %3381 = vadd.xlane.f32.xlu0 %v3380
        %v3382 = vpop.xlane.xlu0 %3381
        %v3383 = vsel %vm371, %v3349, 0.0
        %3384 = vadd.xlane.f32.xlu0 %v3383
        %v3385 = vpop.xlane.xlu0 %3384
        %v3386 = vsel %vm371, %v3350, 0.0
        %3387 = vadd.xlane.f32.xlu0 %v3386
        %v3388 = vpop.xlane.xlu0 %3387
        %v3389 = vsel %vm371, %v3351, 0.0
        %3390 = vadd.xlane.f32.xlu0 %v3389
        %v3391 = vpop.xlane.xlu0 %3390
        %v3392 = vsel %vm371, %v3352, 0.0
        %3393 = vadd.xlane.f32.xlu0 %v3392
        %v3394 = vpop.xlane.xlu0 %3393
        %v3395 = vsel %vm371, %v3353, 0.0
        %3396 = vadd.xlane.f32.xlu0 %v3395
        %v3397 = vpop.xlane.xlu0 %3396
        %v3398 = vsel %vm371, %v3354, 0.0
        %3399 = vadd.xlane.f32.xlu0 %v3398
        %v3400 = vpop.xlane.xlu0 %3399
        %v3401 = vsel %vm371, %v3355, 0.0
        %3402 = vadd.xlane.f32.xlu0 %v3401
        %v3403 = vpop.xlane.xlu0 %3402
        %v3404 = vmul.f32 %v3358, %v420
        %v3405 = vmul.f32 %v3361, %v420
        %v3406 = vmul.f32 %v3364, %v420
        %v3407 = vmul.f32 %v3367, %v420
        %v3408 = vmul.f32 %v3370, %v420
        %v3409 = vmul.f32 %v3373, %v420
        %v3410 = vmul.f32 %v3376, %v420
        %v3411 = vmul.f32 %v3379, %v420
        %v3412 = vmul.f32 %v3382, %v420
        %v3413 = vmul.f32 %v3385, %v420
        %v3414 = vmul.f32 %v3388, %v420
        %v3415 = vmul.f32 %v3391, %v420
        %v3416 = vmul.f32 %v3394, %v420
        %v3417 = vmul.f32 %v3397, %v420
        %v3418 = vmul.f32 %v3400, %v420
        %v3419 = vmul.f32 %v3403, %v420
        %v3420 = vsub.f32 %v3340, %v3404
        %v3421 = vsub.f32 %v3341, %v3405
        %v3422 = vsub.f32 %v3342, %v3406
        %v3423 = vsub.f32 %v3343, %v3407
        %v3424 = vsub.f32 %v3344, %v3408
        %v3425 = vsub.f32 %v3345, %v3409
        %v3426 = vsub.f32 %v3346, %v3410
        %v3427 = vsub.f32 %v3347, %v3411
        %v3428 = vsub.f32 %v3348, %v3412
        %v3429 = vsub.f32 %v3349, %v3413
        %v3430 = vsub.f32 %v3350, %v3414
        %v3431 = vsub.f32 %v3351, %v3415
        %v3432 = vsub.f32 %v3352, %v3416
        %v3433 = vsub.f32 %v3353, %v3417
        %v3434 = vsub.f32 %v3354, %v3418
        %v3435 = vsub.f32 %v3355, %v3419
        %v3436 = vmul.f32 %v3420, %v3420
        %v3437 = vmul.f32 %v3421, %v3421
        %v3438 = vmul.f32 %v3422, %v3422
        %v3439 = vmul.f32 %v3423, %v3423
        %v3440 = vmul.f32 %v3424, %v3424
        %v3441 = vmul.f32 %v3425, %v3425
        %v3442 = vmul.f32 %v3426, %v3426
        %v3443 = vmul.f32 %v3427, %v3427
        %v3444 = vmul.f32 %v3428, %v3428
        %v3445 = vmul.f32 %v3429, %v3429
        %v3446 = vmul.f32 %v3430, %v3430
        %v3447 = vmul.f32 %v3431, %v3431
        %v3448 = vmul.f32 %v3432, %v3432
        %v3449 = vmul.f32 %v3433, %v3433
        %v3450 = vmul.f32 %v3434, %v3434
        %v3451 = vmul.f32 %v3435, %v3435
        %v3452 = vsel %vm371, %v3436, 0.0
        %3453 = vadd.xlane.f32.xlu0 %v3452
        %v3454 = vpop.xlane.xlu0 %3453
        %v3455 = vsel %vm371, %v3437, 0.0
        %3456 = vadd.xlane.f32.xlu0 %v3455
        %v3457 = vpop.xlane.xlu0 %3456
        %v3458 = vsel %vm371, %v3438, 0.0
        %3459 = vadd.xlane.f32.xlu0 %v3458
        %v3460 = vpop.xlane.xlu0 %3459
        %v3461 = vsel %vm371, %v3439, 0.0
        %3462 = vadd.xlane.f32.xlu0 %v3461
        %v3463 = vpop.xlane.xlu0 %3462
        %v3464 = vsel %vm371, %v3440, 0.0
        %3465 = vadd.xlane.f32.xlu0 %v3464
        %v3466 = vpop.xlane.xlu0 %3465
        %v3467 = vsel %vm371, %v3441, 0.0
        %3468 = vadd.xlane.f32.xlu0 %v3467
        %v3469 = vpop.xlane.xlu0 %3468
        %v3470 = vsel %vm371, %v3442, 0.0
        %3471 = vadd.xlane.f32.xlu0 %v3470
        %v3472 = vpop.xlane.xlu0 %3471
        %v3473 = vsel %vm371, %v3443, 0.0
        %3474 = vadd.xlane.f32.xlu0 %v3473
        %v3475 = vpop.xlane.xlu0 %3474
        %v3476 = vsel %vm371, %v3444, 0.0
        %3477 = vadd.xlane.f32.xlu0 %v3476
        %v3478 = vpop.xlane.xlu0 %3477
        %v3479 = vsel %vm371, %v3445, 0.0
        %3480 = vadd.xlane.f32.xlu0 %v3479
        %v3481 = vpop.xlane.xlu0 %3480
        %v3482 = vsel %vm371, %v3446, 0.0
        %3483 = vadd.xlane.f32.xlu0 %v3482
        %v3484 = vpop.xlane.xlu0 %3483
        %v3485 = vsel %vm371, %v3447, 0.0
        %3486 = vadd.xlane.f32.xlu0 %v3485
        %v3487 = vpop.xlane.xlu0 %3486
        %v3488 = vsel %vm371, %v3448, 0.0
        %3489 = vadd.xlane.f32.xlu0 %v3488
        %v3490 = vpop.xlane.xlu0 %3489
        %v3491 = vsel %vm371, %v3449, 0.0
        %3492 = vadd.xlane.f32.xlu0 %v3491
        %v3493 = vpop.xlane.xlu0 %3492
        %v3494 = vsel %vm371, %v3450, 0.0
        %3495 = vadd.xlane.f32.xlu0 %v3494
        %v3496 = vpop.xlane.xlu0 %3495
        %v3497 = vsel %vm371, %v3451, 0.0
        %3498 = vadd.xlane.f32.xlu0 %v3497
        %v3499 = vpop.xlane.xlu0 %3498
        %v3500 = vmul.f32 %v3454, %v420
        %v3501 = vmul.f32 %v3457, %v420
        %v3502 = vmul.f32 %v3460, %v420
        %v3503 = vmul.f32 %v3463, %v420
        %v3504 = vmul.f32 %v3466, %v420
        %v3505 = vmul.f32 %v3469, %v420
        %v3506 = vmul.f32 %v3472, %v420
        %v3507 = vmul.f32 %v3475, %v420
        %v3508 = vmul.f32 %v3478, %v420
        %v3509 = vmul.f32 %v3481, %v420
        %v3510 = vmul.f32 %v3484, %v420
        %v3511 = vmul.f32 %v3487, %v420
        %v3512 = vmul.f32 %v3490, %v420
        %v3513 = vmul.f32 %v3493, %v420
        %v3514 = vmul.f32 %v3496, %v420
        %v3515 = vmul.f32 %v3499, %v420
        %v3516 = vadd.f32 %v3500, 1e-05
        %v3517 = vadd.f32 %v3501, 1e-05
        %v3518 = vadd.f32 %v3502, 1e-05
        %v3519 = vadd.f32 %v3503, 1e-05
        %v3520 = vadd.f32 %v3504, 1e-05
        %v3521 = vadd.f32 %v3505, 1e-05
        %v3522 = vadd.f32 %v3506, 1e-05
        %v3523 = vadd.f32 %v3507, 1e-05
        %v3524 = vadd.f32 %v3508, 1e-05
        %v3525 = vadd.f32 %v3509, 1e-05
        %v3526 = vadd.f32 %v3510, 1e-05
        %v3527 = vadd.f32 %v3511, 1e-05
        %v3528 = vadd.f32 %v3512, 1e-05
        %v3529 = vadd.f32 %v3513, 1e-05
        %v3530 = vadd.f32 %v3514, 1e-05
        %v3531 = vadd.f32 %v3515, 1e-05
        %v3532 = vrsqrt.pop %v3516
        %v3533 = vrsqrt.pop %v3517
        %v3534 = vrsqrt.pop %v3518
        %v3535 = vrsqrt.pop %v3519
        %v3536 = vrsqrt.pop %v3520
        %v3537 = vrsqrt.pop %v3521
        %v3538 = vrsqrt.pop %v3522
        %v3539 = vrsqrt.pop %v3523
        %v3540 = vrsqrt.pop %v3524
        %v3541 = vrsqrt.pop %v3525
        %v3542 = vrsqrt.pop %v3526
        %v3543 = vrsqrt.pop %v3527
        %v3544 = vrsqrt.pop %v3528
        %v3545 = vrsqrt.pop %v3529
        %v3546 = vrsqrt.pop %v3530
        %v3547 = vrsqrt.pop %v3531
        %v3548 = vmul.f32 %v3420, %v3532
        %v3549 = vmul.f32 %v3421, %v3533
        %v3550 = vmul.f32 %v3422, %v3534
        %v3551 = vmul.f32 %v3423, %v3535
        %v3552 = vmul.f32 %v3424, %v3536
        %v3553 = vmul.f32 %v3425, %v3537
        %v3554 = vmul.f32 %v3426, %v3538
        %v3555 = vmul.f32 %v3427, %v3539
        %v3556 = vmul.f32 %v3428, %v3540
        %v3557 = vmul.f32 %v3429, %v3541
        %v3558 = vmul.f32 %v3430, %v3542
        %v3559 = vmul.f32 %v3431, %v3543
        %v3560 = vmul.f32 %v3432, %v3544
        %v3561 = vmul.f32 %v3433, %v3545
        %v3562 = vmul.f32 %v3434, %v3546
        %v3563 = vmul.f32 %v3435, %v3547
        %v3564 = vlaneseq
        %v3565 = vshrl.u32 %v3564, 7
        %v3566 = vsub.s32 2, %v3565
        %v3567 = vrot.slane %v354, %v3566
        %v3568 = vmul.f32 %v3548, %v3567
        %v3569 = vmul.f32 %v3549, %v3567
        %v3570 = vmul.f32 %v3550, %v3567
        %v3571 = vmul.f32 %v3551, %v3567
        %v3572 = vmul.f32 %v3552, %v3567
        %v3573 = vmul.f32 %v3553, %v3567
        %v3574 = vmul.f32 %v3554, %v3567
        %v3575 = vmul.f32 %v3555, %v3567
        %v3576 = vmul.f32 %v3556, %v3567
        %v3577 = vmul.f32 %v3557, %v3567
        %v3578 = vmul.f32 %v3558, %v3567
        %v3579 = vmul.f32 %v3559, %v3567
        %v3580 = vmul.f32 %v3560, %v3567
        %v3581 = vmul.f32 %v3561, %v3567
        %v3582 = vmul.f32 %v3562, %v3567
        %v3583 = vmul.f32 %v3563, %v3567
        %v3584 = vlaneseq
        %v3585 = vshrl.u32 %v3584, 7
        %v3586 = vsub.s32 3, %v3585
        %v3587 = vrot.slane %v354, %v3586
        %v3588 = vadd.f32 %v3568, %v3587
        %v3589 = vadd.f32 %v3569, %v3587
        %v3590 = vadd.f32 %v3570, %v3587
        %v3591 = vadd.f32 %v3571, %v3587
        %v3592 = vadd.f32 %v3572, %v3587
        %v3593 = vadd.f32 %v3573, %v3587
        %v3594 = vadd.f32 %v3574, %v3587
        %v3595 = vadd.f32 %v3575, %v3587
        %v3596 = vadd.f32 %v3576, %v3587
        %v3597 = vadd.f32 %v3577, %v3587
        %v3598 = vadd.f32 %v3578, %v3587
        %v3599 = vadd.f32 %v3579, %v3587
        %v3600 = vadd.f32 %v3580, %v3587
        %v3601 = vadd.f32 %v3581, %v3587
        %v3602 = vadd.f32 %v3582, %v3587
        %v3603 = vadd.f32 %v3583, %v3587
        %v3604 = vpack.c.bf16 %v3589, %v3588
        %v3605 = vpack.c.bf16 %v3591, %v3590
        %v3606 = vpack.c.bf16 %v3593, %v3592
        %v3607 = vpack.c.bf16 %v3595, %v3594
        %v3608 = vpack.c.bf16 %v3597, %v3596
        %v3609 = vpack.c.bf16 %v3599, %v3598
        %v3610 = vpack.c.bf16 %v3601, %v3600
        %v3611 = vpack.c.bf16 %v3603, %v3602
        %v3612 = vld [vmem:[%s3] sm:$0xff]
        %v3613 = vld [vmem:[%s3 + $0x8] sm:$0xff]
        %v3614 = vld [vmem:[%s3 + $0x10] sm:$0xff]
        %v3615 = vld [vmem:[%s3 + $0x18] sm:$0xff]
        %v3616 = vld [vmem:[%s3 + $0x20] sm:$0xff]
        %v3617 = vld [vmem:[%s3 + $0x28] sm:$0xff]
        %v3618 = vld [vmem:[%s3 + $0x30] sm:$0xff]
        %v3619 = vld [vmem:[%s3 + $0x38] sm:$0xff]
        %v3620 = vld [vmem:[%s6] sm:$0x3]
        %v3622 = vlaneseq
        %v3623 = vshrl.u32 %v3622, 7
        %v3624 = vsub.s32 0, %v3623
        %v3625 = vrot.slane %v3620, %v3624
        %v3626 = vlaneseq
        %v3627 = vshrl.u32 %v3626, 7
        %v3628 = vsub.s32 1, %v3627
        %v3629 = vrot.slane %v3620, %v3628
        %v3640 = vunpack.c.l.b16 %v3612
        %v3641 = vunpack.c.h.b16 %v3612
        %v3642 = vunpack.c.l.b16 %v3613
        %v3643 = vunpack.c.h.b16 %v3613
        %v3644 = vunpack.c.l.b16 %v3614
        %v3645 = vunpack.c.h.b16 %v3614
        %v3646 = vunpack.c.l.b16 %v3615
        %v3647 = vunpack.c.h.b16 %v3615
        %v3648 = vunpack.c.l.b16 %v3616
        %v3649 = vunpack.c.h.b16 %v3616
        %v3650 = vunpack.c.l.b16 %v3617
        %v3651 = vunpack.c.h.b16 %v3617
        %v3652 = vunpack.c.l.b16 %v3618
        %v3653 = vunpack.c.h.b16 %v3618
        %v3654 = vunpack.c.l.b16 %v3619
        %v3655 = vunpack.c.h.b16 %v3619
        %v3656 = vpack.c.b16 %v3642, %v3640
        %v3657 = vpack.c.b16 %v3643, %v3641
        %v3658 = vpack.c.b16 %v3646, %v3644
        %v3659 = vpack.c.b16 %v3647, %v3645
        %v3660 = vpack.c.b16 %v3650, %v3648
        %v3661 = vpack.c.b16 %v3651, %v3649
        %v3662 = vpack.c.b16 %v3654, %v3652
        %v3663 = vpack.c.b16 %v3655, %v3653
        %v3673 = vsel %vm371, %v3604, 0
        %v3676 = vsel %vm371, %v3605, 0
        %v3679 = vsel %vm371, %v3606, 0
        %v3682 = vsel %vm371, %v3607, 0
        %v3685 = vsel %vm371, %v3608, 0
        %v3688 = vsel %vm371, %v3609, 0
        %v3691 = vsel %vm371, %v3610, 0
        %v3694 = vsel %vm371, %v3611, 0
        %3696 = vmatprep.subr.bf16.mxu0 %v3657
        %3697 = vmatpush1.bf16.msra.mxu0 %v3656
        %3698 = vmatprep.subr.bf16.mxu0 %v3659
        %3699 = vmatpush1.bf16.msra.mxu0 %v3658
        %3700 = vmatprep.subr.bf16.mxu0 %v3661
        %3701 = vmatpush1.bf16.msra.mxu0 %v3660
        %3702 = vmatprep.subr.bf16.mxu0 %v3663
        %3703 = vmatpush1.bf16.msra.mxu0 %v3662
        %3704 = vmatprep.subr.bf16.mxu0 0
        %3705 = vmatpush1.bf16.msra.mxu0 0
        %3706 = vmatprep.subr.bf16.mxu0 0
        %3707 = vmatpush1.bf16.msra.mxu0 0
        %3708 = vmatprep.subr.bf16.mxu0 0
        %3709 = vmatpush1.bf16.msra.mxu0 0
        %3710 = vmatprep.subr.bf16.mxu0 0
        %3711 = vmatpush1.bf16.msra.mxu0 0
        %3712 = vmatprep.subr.bf16.mxu0 0
        %3713 = vmatpush1.bf16.msra.mxu0 0
        %3714 = vmatprep.subr.bf16.mxu0 0
        %3715 = vmatpush1.bf16.msra.mxu0 0
        %3716 = vmatprep.subr.bf16.mxu0 0
        %3717 = vmatpush1.bf16.msra.mxu0 0
        %3718 = vmatprep.subr.bf16.mxu0 0
        %3719 = vmatpush1.bf16.msra.mxu0 0
        %3720 = vmatprep.subr.bf16.mxu0 0
        %3721 = vmatpush1.bf16.msra.mxu0 0
        %3722 = vmatprep.subr.bf16.mxu0 0
        %3723 = vmatpush1.bf16.msra.mxu0 0
        %3724 = vmatprep.subr.bf16.mxu0 0
        %3725 = vmatpush1.bf16.msra.mxu0 0
        %3726 = vmatprep.subr.bf16.mxu0 0
        %3727 = vmatpush1.bf16.msra.mxu0 0
        %3728 = vmatprep.mubr.bf16.mxu0 0
        %3729 = vmatmul.mubr.bf16.gmra.mrb[0].mxu0 %v3673
        %v3730 = vpop.f32.mrb[0].mxu0
        %v3731 = vadd.f32 %v3625, %v3730
        %v3732 = vpop.f32.mrb[0].mxu0
        %v3733 = vadd.f32 %v3629, %v3732
        %v3734 = vpop.f32.mrb[0].mxu0
        %v3735 = vadd.f32 %v3625, %v3734
        %v3736 = vpop.f32.mrb[0].mxu0
        %v3737 = vadd.f32 %v3629, %v3736
        %3738 = vmatprep.mubr.bf16.mxu0 0
        %3739 = vmatmul.mubr.bf16.gmra.mrb[0].mxu0 %v3676
        %v3740 = vpop.f32.mrb[0].mxu0
        %v3741 = vadd.f32 %v3625, %v3740
        %v3742 = vpop.f32.mrb[0].mxu0
        %v3743 = vadd.f32 %v3629, %v3742
        %v3744 = vpop.f32.mrb[0].mxu0
        %v3745 = vadd.f32 %v3625, %v3744
        %v3746 = vpop.f32.mrb[0].mxu0
        %v3747 = vadd.f32 %v3629, %v3746
        %3748 = vmatprep.mubr.bf16.mxu0 0
        %3749 = vmatmul.mubr.bf16.gmra.mrb[0].mxu0 %v3679
        %v3750 = vpop.f32.mrb[0].mxu0
        %v3751 = vadd.f32 %v3625, %v3750
        %v3752 = vpop.f32.mrb[0].mxu0
        %v3753 = vadd.f32 %v3629, %v3752
        %v3754 = vpop.f32.mrb[0].mxu0
        %v3755 = vadd.f32 %v3625, %v3754
        %v3756 = vpop.f32.mrb[0].mxu0
        %v3757 = vadd.f32 %v3629, %v3756
        %3758 = vmatprep.mubr.bf16.mxu0 0
        %3759 = vmatmul.mubr.bf16.gmra.mrb[0].mxu0 %v3682
        %v3760 = vpop.f32.mrb[0].mxu0
        %v3761 = vadd.f32 %v3625, %v3760
        %v3762 = vpop.f32.mrb[0].mxu0
        %v3763 = vadd.f32 %v3629, %v3762
        %v3764 = vpop.f32.mrb[0].mxu0
        %v3765 = vadd.f32 %v3625, %v3764
        %v3766 = vpop.f32.mrb[0].mxu0
        %v3767 = vadd.f32 %v3629, %v3766
        %3768 = vmatprep.mubr.bf16.mxu0 0
        %3769 = vmatmul.mubr.bf16.gmra.mrb[0].mxu0 %v3685
        %v3770 = vpop.f32.mrb[0].mxu0
        %v3771 = vadd.f32 %v3625, %v3770
        %v3772 = vpop.f32.mrb[0].mxu0
        %v3773 = vadd.f32 %v3629, %v3772
        %v3774 = vpop.f32.mrb[0].mxu0
        %v3775 = vadd.f32 %v3625, %v3774
        %v3776 = vpop.f32.mrb[0].mxu0
        %v3777 = vadd.f32 %v3629, %v3776
        %3778 = vmatprep.mubr.bf16.mxu0 0
        %3779 = vmatmul.mubr.bf16.gmra.mrb[0].mxu0 %v3688
        %v3780 = vpop.f32.mrb[0].mxu0
        %v3781 = vadd.f32 %v3625, %v3780
        %v3782 = vpop.f32.mrb[0].mxu0
        %v3783 = vadd.f32 %v3629, %v3782
        %v3784 = vpop.f32.mrb[0].mxu0
        %v3785 = vadd.f32 %v3625, %v3784
        %v3786 = vpop.f32.mrb[0].mxu0
        %v3787 = vadd.f32 %v3629, %v3786
        %3788 = vmatprep.mubr.bf16.mxu0 0
        %3789 = vmatmul.mubr.bf16.gmra.mrb[0].mxu0 %v3691
        %v3790 = vpop.f32.mrb[0].mxu0
        %v3791 = vadd.f32 %v3625, %v3790
        %v3792 = vpop.f32.mrb[0].mxu0
        %v3793 = vadd.f32 %v3629, %v3792
        %v3794 = vpop.f32.mrb[0].mxu0
        %v3795 = vadd.f32 %v3625, %v3794
        %v3796 = vpop.f32.mrb[0].mxu0
        %v3797 = vadd.f32 %v3629, %v3796
        %3798 = vmatprep.mubr.bf16.mxu0 0
        %3799 = vmatmul.mubr.bf16.gmra.mrb[0].mxu0 %v3694
        %v3800 = vpop.f32.mrb[0].mxu0
        %v3801 = vadd.f32 %v3625, %v3800
        %v3802 = vpop.f32.mrb[0].mxu0
        %v3803 = vadd.f32 %v3629, %v3802
        %v3804 = vpop.f32.mrb[0].mxu0
        %v3805 = vadd.f32 %v3625, %v3804
        %v3806 = vpop.f32.mrb[0].mxu0
        %v3807 = vadd.f32 %v3629, %v3806
        %3808 = vdwg.mxu0
        %v3809 = vmax.f32 %v3731, 0.0
        %v3810 = vmax.f32 %v3733, 0.0
        %v3811 = vmax.f32 %v3735, 0.0
        %v3812 = vmax.f32 %v3737, 0.0
        %v3813 = vmax.f32 %v3741, 0.0
        %v3814 = vmax.f32 %v3743, 0.0
        %v3815 = vmax.f32 %v3745, 0.0
        %v3816 = vmax.f32 %v3747, 0.0
        %v3817 = vmax.f32 %v3751, 0.0
        %v3818 = vmax.f32 %v3753, 0.0
        %v3819 = vmax.f32 %v3755, 0.0
        %v3820 = vmax.f32 %v3757, 0.0
        %v3821 = vmax.f32 %v3761, 0.0
        %v3822 = vmax.f32 %v3763, 0.0
        %v3823 = vmax.f32 %v3765, 0.0
        %v3824 = vmax.f32 %v3767, 0.0
        %v3825 = vmax.f32 %v3771, 0.0
        %v3826 = vmax.f32 %v3773, 0.0
        %v3827 = vmax.f32 %v3775, 0.0
        %v3828 = vmax.f32 %v3777, 0.0
        %v3829 = vmax.f32 %v3781, 0.0
        %v3830 = vmax.f32 %v3783, 0.0
        %v3831 = vmax.f32 %v3785, 0.0
        %v3832 = vmax.f32 %v3787, 0.0
        %v3833 = vmax.f32 %v3791, 0.0
        %v3834 = vmax.f32 %v3793, 0.0
        %v3835 = vmax.f32 %v3795, 0.0
        %v3836 = vmax.f32 %v3797, 0.0
        %v3837 = vmax.f32 %v3801, 0.0
        %v3838 = vmax.f32 %v3803, 0.0
        %v3839 = vmax.f32 %v3805, 0.0
        %v3840 = vmax.f32 %v3807, 0.0
        %v3841 = vpack.c.bf16 %v3811, %v3809
        %v3842 = vpack.c.bf16 %v3812, %v3810
        %v3843 = vpack.c.bf16 %v3815, %v3813
        %v3844 = vpack.c.bf16 %v3816, %v3814
        %v3845 = vpack.c.bf16 %v3819, %v3817
        %v3846 = vpack.c.bf16 %v3820, %v3818
        %v3847 = vpack.c.bf16 %v3823, %v3821
        %v3848 = vpack.c.bf16 %v3824, %v3822
        %v3849 = vpack.c.bf16 %v3827, %v3825
        %v3850 = vpack.c.bf16 %v3828, %v3826
        %v3851 = vpack.c.bf16 %v3831, %v3829
        %v3852 = vpack.c.bf16 %v3832, %v3830
        %v3853 = vpack.c.bf16 %v3835, %v3833
        %v3854 = vpack.c.bf16 %v3836, %v3834
        %v3855 = vpack.c.bf16 %v3839, %v3837
        %v3856 = vpack.c.bf16 %v3840, %v3838
        %v3857 = vld [vmem:[%s4] sm:$0xf]
        %v3858 = vld [vmem:[%s4 + $0x4] sm:$0xf]
        %v3859 = vld [vmem:[%s4 + $0x8] sm:$0xf]
        %v3860 = vld [vmem:[%s4 + $0xc] sm:$0xf]
        %v3861 = vld [vmem:[%s4 + $0x10] sm:$0xf]
        %v3862 = vld [vmem:[%s4 + $0x14] sm:$0xf]
        %v3863 = vld [vmem:[%s4 + $0x18] sm:$0xf]
        %v3864 = vld [vmem:[%s4 + $0x1c] sm:$0xf]
        %v3865 = vld [vmem:[%s4 + $0x20] sm:$0xf]
        %v3866 = vld [vmem:[%s4 + $0x24] sm:$0xf]
        %v3867 = vld [vmem:[%s4 + $0x28] sm:$0xf]
        %v3868 = vld [vmem:[%s4 + $0x2c] sm:$0xf]
        %v3869 = vld [vmem:[%s4 + $0x30] sm:$0xf]
        %v3870 = vld [vmem:[%s4 + $0x34] sm:$0xf]
        %v3871 = vld [vmem:[%s4 + $0x38] sm:$0xf]
        %v3872 = vld [vmem:[%s4 + $0x3c] sm:$0xf]
        %v3873 = vld [vmem:[%s4 + $0x40] sm:$0xf]
        %v3874 = vld [vmem:[%s4 + $0x44] sm:$0xf]
        %v3875 = vld [vmem:[%s4 + $0x48] sm:$0xf]
        %v3876 = vld [vmem:[%s4 + $0x4c] sm:$0xf]
        %v3877 = vld [vmem:[%s4 + $0x50] sm:$0xf]
        %v3878 = vld [vmem:[%s4 + $0x54] sm:$0xf]
        %v3879 = vld [vmem:[%s4 + $0x58] sm:$0xf]
        %v3880 = vld [vmem:[%s4 + $0x5c] sm:$0xf]
        %v3881 = vld [vmem:[%s4 + $0x60] sm:$0xf]
        %v3882 = vld [vmem:[%s4 + $0x64] sm:$0xf]
        %v3883 = vld [vmem:[%s4 + $0x68] sm:$0xf]
        %v3884 = vld [vmem:[%s4 + $0x6c] sm:$0xf]
        %v3885 = vld [vmem:[%s4 + $0x70] sm:$0xf]
        %v3886 = vld [vmem:[%s4 + $0x74] sm:$0xf]
        %v3887 = vld [vmem:[%s4 + $0x78] sm:$0xf]
        %v3888 = vld [vmem:[%s4 + $0x7c] sm:$0xf]
        %v3889 = vlaneseq
        %v3890 = vshrl.u32 %v3889, 7
        %v3891 = vsub.s32 5, %v3890
        %v3892 = vrot.slane %v354, %v3891
        %v3925 = vunpack.c.l.b16 %v3857
        %v3926 = vunpack.c.l.b16 %v3858
        %v3927 = vunpack.c.l.b16 %v3859
        %v3928 = vunpack.c.l.b16 %v3860
        %v3929 = vunpack.c.l.b16 %v3861
        %v3930 = vunpack.c.l.b16 %v3862
        %v3931 = vunpack.c.l.b16 %v3863
        %v3932 = vunpack.c.l.b16 %v3864
        %v3933 = vunpack.c.l.b16 %v3865
        %v3934 = vunpack.c.l.b16 %v3866
        %v3935 = vunpack.c.l.b16 %v3867
        %v3936 = vunpack.c.l.b16 %v3868
        %v3937 = vunpack.c.l.b16 %v3869
        %v3938 = vunpack.c.l.b16 %v3870
        %v3939 = vunpack.c.l.b16 %v3871
        %v3940 = vunpack.c.l.b16 %v3872
        %v3941 = vunpack.c.l.b16 %v3873
        %v3942 = vunpack.c.l.b16 %v3874
        %v3943 = vunpack.c.l.b16 %v3875
        %v3944 = vunpack.c.l.b16 %v3876
        %v3945 = vunpack.c.l.b16 %v3877
        %v3946 = vunpack.c.l.b16 %v3878
        %v3947 = vunpack.c.l.b16 %v3879
        %v3948 = vunpack.c.l.b16 %v3880
        %v3949 = vunpack.c.l.b16 %v3881
        %v3950 = vunpack.c.l.b16 %v3882
        %v3951 = vunpack.c.l.b16 %v3883
        %v3952 = vunpack.c.l.b16 %v3884
        %v3953 = vunpack.c.l.b16 %v3885
        %v3954 = vunpack.c.l.b16 %v3886
        %v3955 = vunpack.c.l.b16 %v3887
        %v3956 = vunpack.c.l.b16 %v3888
        %v3957 = vpack.c.b16 %v3926, %v3925
        %v3958 = vpack.c.b16 %v3928, %v3927
        %v3959 = vpack.c.b16 %v3930, %v3929
        %v3960 = vpack.c.b16 %v3932, %v3931
        %v3961 = vpack.c.b16 %v3934, %v3933
        %v3962 = vpack.c.b16 %v3936, %v3935
        %v3963 = vpack.c.b16 %v3938, %v3937
        %v3964 = vpack.c.b16 %v3940, %v3939
        %v3965 = vpack.c.b16 %v3942, %v3941
        %v3966 = vpack.c.b16 %v3944, %v3943
        %v3967 = vpack.c.b16 %v3946, %v3945
        %v3968 = vpack.c.b16 %v3948, %v3947
        %v3969 = vpack.c.b16 %v3950, %v3949
        %v3970 = vpack.c.b16 %v3952, %v3951
        %v3971 = vpack.c.b16 %v3954, %v3953
        %v3972 = vpack.c.b16 %v3956, %v3955
        %3989 = vmatprep.subr.bf16.mxu0 0
        %3990 = vmatpush1.bf16.msra.mxu0 %v3957
        %3991 = vmatprep.subr.bf16.mxu0 0
        %3992 = vmatpush1.bf16.msra.mxu0 %v3958
        %3993 = vmatprep.subr.bf16.mxu0 0
        %3994 = vmatpush1.bf16.msra.mxu0 %v3959
        %3995 = vmatprep.subr.bf16.mxu0 0
        %3996 = vmatpush1.bf16.msra.mxu0 %v3960
        %3997 = vmatprep.subr.bf16.mxu0 0
        %3998 = vmatpush1.bf16.msra.mxu0 %v3961
        %3999 = vmatprep.subr.bf16.mxu0 0
        %4000 = vmatpush1.bf16.msra.mxu0 %v3962
        %4001 = vmatprep.subr.bf16.mxu0 0
        %4002 = vmatpush1.bf16.msra.mxu0 %v3963
        %4003 = vmatprep.subr.bf16.mxu0 0
        %4004 = vmatpush1.bf16.msra.mxu0 %v3964
        %4005 = vmatprep.subr.bf16.mxu0 0
        %4006 = vmatpush1.bf16.msra.mxu0 %v3965
        %4007 = vmatprep.subr.bf16.mxu0 0
        %4008 = vmatpush1.bf16.msra.mxu0 %v3966
        %4009 = vmatprep.subr.bf16.mxu0 0
        %4010 = vmatpush1.bf16.msra.mxu0 %v3967
        %4011 = vmatprep.subr.bf16.mxu0 0
        %4012 = vmatpush1.bf16.msra.mxu0 %v3968
        %4013 = vmatprep.subr.bf16.mxu0 0
        %4014 = vmatpush1.bf16.msra.mxu0 %v3969
        %4015 = vmatprep.subr.bf16.mxu0 0
        %4016 = vmatpush1.bf16.msra.mxu0 %v3970
        %4017 = vmatprep.subr.bf16.mxu0 0
        %4018 = vmatpush1.bf16.msra.mxu0 %v3971
        %4019 = vmatprep.subr.bf16.mxu0 0
        %4020 = vmatpush1.bf16.msra.mxu0 %v3972
        %4021 = vmatprep.mubr.bf16.mxu0 %v3842
        %4022 = vmatmul.mubr.bf16.gmra.mrb[0].mxu0 %v3841
        %v4023 = vpop.f32.mrb[0].mxu0
        %v4024 = vadd.f32 %v3892, %v4023
        %v4025 = vpop.f32.mrb[0].mxu0
        %v4026 = vpop.f32.mrb[0].mxu0
        %v4027 = vadd.f32 %v3892, %v4026
        %v4028 = vpop.f32.mrb[0].mxu0
        %4029 = vmatprep.mubr.bf16.mxu0 %v3844
        %4030 = vmatmul.mubr.bf16.gmra.mrb[0].mxu0 %v3843
        %v4031 = vpop.f32.mrb[0].mxu0
        %v4032 = vadd.f32 %v3892, %v4031
        %v4033 = vpop.f32.mrb[0].mxu0
        %v4034 = vpop.f32.mrb[0].mxu0
        %v4035 = vadd.f32 %v3892, %v4034
        %v4036 = vpop.f32.mrb[0].mxu0
        %4037 = vmatprep.mubr.bf16.mxu0 %v3846
        %4038 = vmatmul.mubr.bf16.gmra.mrb[0].mxu0 %v3845
        %v4039 = vpop.f32.mrb[0].mxu0
        %v4040 = vadd.f32 %v3892, %v4039
        %v4041 = vpop.f32.mrb[0].mxu0
        %v4042 = vpop.f32.mrb[0].mxu0
        %v4043 = vadd.f32 %v3892, %v4042
        %v4044 = vpop.f32.mrb[0].mxu0
        %4045 = vmatprep.mubr.bf16.mxu0 %v3848
        %4046 = vmatmul.mubr.bf16.gmra.mrb[0].mxu0 %v3847
        %v4047 = vpop.f32.mrb[0].mxu0
        %v4048 = vadd.f32 %v3892, %v4047
        %v4049 = vpop.f32.mrb[0].mxu0
        %v4050 = vpop.f32.mrb[0].mxu0
        %v4051 = vadd.f32 %v3892, %v4050
        %v4052 = vpop.f32.mrb[0].mxu0
        %4053 = vmatprep.mubr.bf16.mxu0 %v3850
        %4054 = vmatmul.mubr.bf16.gmra.mrb[0].mxu0 %v3849
        %v4055 = vpop.f32.mrb[0].mxu0
        %v4056 = vadd.f32 %v3892, %v4055
        %v4057 = vpop.f32.mrb[0].mxu0
        %v4058 = vpop.f32.mrb[0].mxu0
        %v4059 = vadd.f32 %v3892, %v4058
        %v4060 = vpop.f32.mrb[0].mxu0
        %4061 = vmatprep.mubr.bf16.mxu0 %v3852
        %4062 = vmatmul.mubr.bf16.gmra.mrb[0].mxu0 %v3851
        %v4063 = vpop.f32.mrb[0].mxu0
        %v4064 = vadd.f32 %v3892, %v4063
        %v4065 = vpop.f32.mrb[0].mxu0
        %v4066 = vpop.f32.mrb[0].mxu0
        %v4067 = vadd.f32 %v3892, %v4066
        %v4068 = vpop.f32.mrb[0].mxu0
        %4069 = vmatprep.mubr.bf16.mxu0 %v3854
        %4070 = vmatmul.mubr.bf16.gmra.mrb[0].mxu0 %v3853
        %v4071 = vpop.f32.mrb[0].mxu0
        %v4072 = vadd.f32 %v3892, %v4071
        %v4073 = vpop.f32.mrb[0].mxu0
        %v4074 = vpop.f32.mrb[0].mxu0
        %v4075 = vadd.f32 %v3892, %v4074
        %v4076 = vpop.f32.mrb[0].mxu0
        %4077 = vmatprep.mubr.bf16.mxu0 %v3856
        %4078 = vmatmul.mubr.bf16.gmra.mrb[0].mxu0 %v3855
        %v4079 = vpop.f32.mrb[0].mxu0
        %v4080 = vadd.f32 %v3892, %v4079
        %v4081 = vpop.f32.mrb[0].mxu0
        %v4082 = vpop.f32.mrb[0].mxu0
        %v4083 = vadd.f32 %v3892, %v4082
        %v4084 = vpop.f32.mrb[0].mxu0
        %4085 = vdwg.mxu0
        %v4086 = vadd.f32 %v3340, %v4024
        %v4087 = vadd.f32 %v3341, %v4027
        %v4088 = vadd.f32 %v3342, %v4032
        %v4089 = vadd.f32 %v3343, %v4035
        %v4090 = vadd.f32 %v3344, %v4040
        %v4091 = vadd.f32 %v3345, %v4043
        %v4092 = vadd.f32 %v3346, %v4048
        %v4093 = vadd.f32 %v3347, %v4051
        %v4094 = vadd.f32 %v3348, %v4056
        %v4095 = vadd.f32 %v3349, %v4059
        %v4096 = vadd.f32 %v3350, %v4064
        %v4097 = vadd.f32 %v3351, %v4067
        %v4098 = vadd.f32 %v3352, %v4072
        %v4099 = vadd.f32 %v3353, %v4075
        %v4100 = vadd.f32 %v3354, %v4080
        %v4101 = vadd.f32 %v3355, %v4083
        %4102 = vst.msk [vmem:[%s350] sm:$0xff] %vm371, %v4086
        %4103 = vst.msk [vmem:[%s350 + $0x8] sm:$0xff] %vm371, %v4087
        %4104 = vst.msk [vmem:[%s350 + $0x10] sm:$0xff] %vm371, %v4088
        %4105 = vst.msk [vmem:[%s350 + $0x18] sm:$0xff] %vm371, %v4089
        %4106 = vst.msk [vmem:[%s350 + $0x20] sm:$0xff] %vm371, %v4090
        %4107 = vst.msk [vmem:[%s350 + $0x28] sm:$0xff] %vm371, %v4091
        %4108 = vst.msk [vmem:[%s350 + $0x30] sm:$0xff] %vm371, %v4092
        %4109 = vst.msk [vmem:[%s350 + $0x38] sm:$0xff] %vm371, %v4093
        %4110 = vst.msk [vmem:[%s350 + $0x40] sm:$0xff] %vm371, %v4094
        %4111 = vst.msk [vmem:[%s350 + $0x48] sm:$0xff] %vm371, %v4095
        %4112 = vst.msk [vmem:[%s350 + $0x50] sm:$0xff] %vm371, %v4096
        %4113 = vst.msk [vmem:[%s350 + $0x58] sm:$0xff] %vm371, %v4097
        %4114 = vst.msk [vmem:[%s350 + $0x60] sm:$0xff] %vm371, %v4098
        %4115 = vst.msk [vmem:[%s350 + $0x68] sm:$0xff] %vm371, %v4099
        %4116 = vst.msk [vmem:[%s350 + $0x70] sm:$0xff] %vm371, %v4100
        %4117 = vst.msk [vmem:[%s350 + $0x78] sm:$0xff] %vm371, %v4101
        %s4118 = sand.u32 %s228, 1
        %s4119 = scalar_lea.sflag [#allocation4], %s4118
        %s4120 = sand.u32 %s228, 1
        %s4121 = smul.addr %s4120, 128
        %s4122 = scalar_lea.vmem [#allocation5], %s4121
        // Predicated region
        $region61: #{tpu_custom_call.1} parent=55 // pred_check
          %p4123 = pneg %p238
        $region62: #{tpu_custom_call.1} parent=55 // pred_check_branch
          %4125 = sbr.rel (%p4123) target = $region64
        $region63: #{tpu_custom_call.1} parent=55 // pred_region
          %s4126 = smul.u32 16, %s26
          %s4128 = ssub.s32 2048, 2048
          %4129 = vsyncadd %s4119, %s4128
          %s4130 = smul.addr %s4126, 128
          %s4131 = scalar_lea.hbm %s9, %s4130
          %s4132 = sshll.u32 %s4122, 4
          %s4133 = int_to_ptr.vmem [resolvable:$true] %s4132
          %4138 = dma.vmem_to_hbm [thread:$0]  %s4133, 2048, %s4131, %s4119, 128, 128, 8
        $region64: #{tpu_custom_call.1} parent=55 // pred_fallthru
          _
      $region56: #{tpu_custom_call.1} parent=5 // pred_fallthru
        _
      %p4139 = scmp.le.s32.totalorder 2, %s21
      // Predicated region
      $region65: #{tpu_custom_call.1} parent=5 // pred_check
        %p4140 = pneg %p4139
      $region66: #{tpu_custom_call.1} parent=5 // pred_check_branch
        %4142 = sbr.rel (%p4140) target = $region68
      $region67: #{tpu_custom_call.1} parent=5 // pred_region
        %s4143 = ssub.s32 %s21, 2
        // Predicated region
        $region69: #{tpu_custom_call.1} parent=67 // pred_check
          %p4144 = pneg %p244
        $region70: #{tpu_custom_call.1} parent=67 // pred_check_branch
          %4146 = sbr.rel (%p4144) target = $region72
        $region71: #{tpu_custom_call.1} parent=67 // pred_region
          %s4147 = sand.u32 %s229, 1
          %s4148 = scalar_lea.sflag [#allocation4], %s4147
          %s4149 = sand.u32 %s229, 1
          %s4150 = smul.addr %s4149, 128
          %s4151 = scalar_lea.vmem [#allocation5], %s4150
          %4152 = dma.done %s4148, 2048
        $region72: #{tpu_custom_call.1} parent=67 // pred_fallthru
          _
      $region68: #{tpu_custom_call.1} parent=5 // pred_fallthru
        _
    $region6: #{tpu_custom_call.1} parent=1 // loop_footer
      %s25 = sadd.s32 1, %s21
    $region7: #{tpu_custom_call.1} parent=1 // loop_footer_branch
      %20 = sbr.rel target = $region3
    $region8: #{tpu_custom_call.1} parent=1 // loop_exit
      _
    %4153 = vsyncpa [#allocation3], 1
    %s4154 = scalar_lea.sflag [#allocation3], 1
    %4155 = vsyncpa %s4154, 1
    %4156 = vsyncpa [#allocation4], 1
    %s4157 = scalar_lea.sflag [#allocation4], 1
    %4158 = vsyncpa %s4157, 1

</llo_original>
